<compile_context>
chip_gen: v7x
topology: tpu7x:2x2x1
jax: 0.10.0
libtpu: 0.0.40
codegen_flags: <defaults>
</compile_context>

<pallas_src>
import functools
import math

import jax
import jax.numpy as jnp
from jax import lax
from jax.experimental import pallas as pl
from jax.experimental.pallas import tpu as pltpu


# ---------------------------------------------------------------------------
# In-kernel helpers (traced inside the Pallas kernel body)
# ---------------------------------------------------------------------------
def _layernorm(x, gamma, beta, eps=1e-5):
    # x: (R, C) f32, gamma/beta: (1, C) f32
    mu = jnp.mean(x, axis=-1, keepdims=True)
    var = jnp.mean((x - mu) ** 2, axis=-1, keepdims=True)
    return (x - mu) * lax.rsqrt(var + eps) * gamma + beta


def _softmax(x):
    # x: (Nq, Nk) f32; the denominator reciprocal goes to the (idle) EUP slot.
    m = jnp.max(x, axis=-1, keepdims=True)
    e = jnp.exp(x - m)
    return e * pl.reciprocal(jnp.sum(e, axis=-1, keepdims=True), approx=True)


def _mm(a, b):
    # a @ b, f32 accumulation (operands already in the compute dtype).
    return lax.dot_general(a, b, dimension_numbers=(((1,), (0,)), ((), ())),
                           preferred_element_type=jnp.float32)


def _mm_nt(a, b):
    # a @ b.T (contract last dims of both) without an in-kernel transpose.
    return lax.dot_general(a, b, dimension_numbers=(((1,), (1,)), ((), ())),
                           preferred_element_type=jnp.float32)


def _mha(q_cd, k_cd, v_cd, in_w, in_b, out_w, out_b,
         num_heads, dtype, batch, n_q, n_k, attn_scr):
    """Multi-head attention on flattened (batch*rows, C) operands.

    q_cd:(batch*n_q,C)  k_cd/v_cd:(batch*n_k,C)  -- already in compute dtype.
    in_w:(C,3C) pre-transposed, Q columns pre-scaled by 1/sqrt(dh); in_b:(1,3C).
    out_w:(C,C) pre-transposed; out_b:(1,C).
    attn_scr: (batch*n_q, C) VMEM scratch in compute dtype (per-head staging).
    """
    C = attn_scr.shape[-1]
    dh = C // num_heads

    # Full-width projections over all batch rows; bias add in f32, one cast after.
    qp = (_mm(q_cd, in_w[:, :C]) + in_b[:, :C]).astype(dtype)
    kp = (_mm(k_cd, in_w[:, C:2 * C]) + in_b[:, C:2 * C]).astype(dtype)
    vp = (_mm(v_cd, in_w[:, 2 * C:]) + in_b[:, 2 * C:]).astype(dtype)

    # Per-(batch, head) attention; head outputs written to the scratch at static
    # lane offsets so the output projection below is a single C-deep matmul.
    for b in range(batch):                      # static, small
        rq, rk = b * n_q, b * n_k
        for h in range(num_heads):              # static, small
            lo = h * dh
            s = _mm_nt(qp[rq:rq + n_q, lo:lo + dh], kp[rk:rk + n_k, lo:lo + dh])
            p = _softmax(s).astype(dtype)
            oh = _mm(p, vp[rk:rk + n_k, lo:lo + dh])        # (n_q, dh) f32
            attn_scr[rq:rq + n_q, lo:lo + dh] = oh.astype(attn_scr.dtype)

    return _mm(attn_scr[...], out_w) + out_b                # (batch*n_q, C) f32


# ---------------------------------------------------------------------------
# Fused decoder-stack kernel: one (core, layer) grid point per invocation.
# ---------------------------------------------------------------------------
def decoder_stack_kernel(
    img_ref, pos_ref, qpe_ref,
    qkv_w_ref, qkv_b_ref, aow_ref, aob_ref,
    l1w_ref, l1b_ref, l2w_ref, l2b_ref,
    norms_ref, fnorm_ref,
    out_ref,
    q_scr, kv_scr, attn_scr,
    *, num_heads, compute_dtype, batch_per_block, n_queries, n_keys,
):
    C = q_scr.shape[-1]
    layer = pl.program_id(1)

    # queries start at zero (DETR semantics); cache img+pos / img once per core.
    @pl.when(layer == 0)
    def _init():
        q_scr[...] = jnp.zeros_like(q_scr)
        kv_scr[0] = (img_ref[...] + pos_ref[...]).astype(kv_scr.dtype)
        kv_scr[1] = img_ref[...].astype(kv_scr.dtype)

    x = q_scr[...]                    # (Bc*N, C) f32, carried across the layer axis
    qpe = qpe_ref[...]                # (Bc*N, C) f32

    qkv_w = qkv_w_ref[0]              # (2C, 3C): rows [0:C] self-attn, [C:2C] cross
    qkv_b = qkv_b_ref[0]              # (2, 3C)
    aow = aow_ref[0]                  # (2C, C)
    aob = aob_ref[0]                  # (2, C)
    norms = norms_ref[0]              # (6, C)

    # --- self attention (q = k = x + qpe, v = x) ---
    qk_cd = (x + qpe).astype(compute_dtype)
    sa = _mha(qk_cd, qk_cd, x.astype(compute_dtype),
              qkv_w[:C], qkv_b[0:1], aow[:C], aob[0:1],
              num_heads, compute_dtype, batch_per_block, n_queries, n_queries,
              attn_scr)
    x = _layernorm(x + sa, norms[0:1], norms[1:2])

    # --- cross attention (q = x + qpe, k = img + pos, v = img; both cached) ---
    q_cd = (x + qpe).astype(compute_dtype)
    ca = _mha(q_cd, kv_scr[0], kv_scr[1],
              qkv_w[C:], qkv_b[1:2], aow[C:], aob[1:2],
              num_heads, compute_dtype, batch_per_block, n_queries, n_keys,
              attn_scr)
    x = _layernorm(x + ca, norms[2:3], norms[3:4])

    # --- MLP ---
    h = jnp.maximum(_mm(x.astype(compute_dtype), l1w_ref[0]) + l1b_ref[0], 0.0)
    mlp = _mm(h.astype(compute_dtype), l2w_ref[0]) + l2b_ref[0]
    x = _layernorm(x + mlp, norms[4:5], norms[5:6])

    # carry un-normed queries to the next layer; emit final-norm'd intermediate
    q_scr[...] = x
    fn = fnorm_ref[...]               # (2, C)
    out_ref[0] = _layernorm(x, fn[0:1], fn[1:2]).astype(out_ref.dtype)


# ---------------------------------------------------------------------------
# Host-side packing: stack per-layer weights over L, pre-transpose, fold the
# 1/sqrt(dh) attention scale into the Q projection, cast matmul weights to the
# compute dtype (biases / norm params stay f32).
# ---------------------------------------------------------------------------
def pack_params(layers, final_norm, num_heads, compute_dtype=jnp.float32):
    C = layers[0]["n1_g"].shape[0]
    scale = (C // num_heads) ** -0.5

    def scaled_in_w_t(w):             # w: (3C, C) PyTorch layout -> (C, 3C) packed
        wt = w.T
        return jnp.concatenate([wt[:, :C] * scale, wt[:, C:]], axis=1)

    def scaled_in_b(b):               # (3C,)
        return jnp.concatenate([b[:C] * scale, b[C:]], axis=0)

    def stack(fn):
        return jnp.stack([fn(lw) for lw in layers], axis=0)

    wd = compute_dtype
    return dict(
        qkv_w=stack(lambda w: jnp.concatenate(
            [scaled_in_w_t(w["sa_in_w"]),
             scaled_in_w_t(w["ca_in_w"])], axis=0)).astype(wd),         # (L, 2C, 3C)
        qkv_b=stack(lambda w: jnp.stack(
            [scaled_in_b(w["sa_in_b"]),
             scaled_in_b(w["ca_in_b"])], axis=0)),                      # (L, 2, 3C)
        attn_out_w=stack(lambda w: jnp.concatenate(
            [w["sa_out_w"].T, w["ca_out_w"].T], axis=0)).astype(wd),    # (L, 2C, C)
        attn_out_b=stack(lambda w: jnp.stack(
            [w["sa_out_b"], w["ca_out_b"]], axis=0)),                   # (L, 2, C)
        l1_w=stack(lambda w: w["l1_w"].T).astype(wd),                   # (L, C, M)
        l1_b=stack(lambda w: w["l1_b"][None, :]),                       # (L, 1, M)
        l2_w=stack(lambda w: w["l2_w"].T).astype(wd),                   # (L, M, C)
        l2_b=stack(lambda w: w["l2_b"][None, :]),                       # (L, 1, C)
        norms=stack(lambda w: jnp.stack(
            [w["n1_g"], w["n1_b"], w["n2_g"],
             w["n2_b"], w["n3_g"], w["n3_b"]], axis=0)),                # (L, 6, C)
        fnorm=jnp.stack([final_norm["g"], final_norm["b"]], axis=0),    # (2, C)
    )


def transformer_decoder(img, pos, queries_in, packed, num_heads,
                        compute_dtype=jnp.float32, core_split=None):
    B, N, C = queries_in.shape
    _, HW, _ = img.shape
    L = packed["norms"].shape[0]

    # Explicit 2-way core split (v7x megacore) when the batch divides evenly;
    # on single-TC chips this only costs a 2x (not B x) weight re-stream.
    if core_split is None:
        core_split = 2 if (B % 2 == 0 and B >= 2) else 1
    assert B % core_split == 0
    Bc = B // core_split

    # Flatten batch into rows so in-kernel projections are single 2-D matmuls.
    img2 = img.reshape(B * HW, C)
    pos2 = pos.reshape(B * HW, C)
    qpe2 = queries_in.reshape(B * N, C)

    weight_names = ["qkv_w", "qkv_b", "attn_out_w", "attn_out_b",
                    "l1_w", "l1_b", "l2_w", "l2_b", "norms"]
    weight_args = [packed[n] for n in weight_names]

    def seq_spec(rows):
        return pl.BlockSpec((rows, C), lambda c, l: (c, 0))

    def layer_spec(arr):              # all stacked weights are rank-3 (L, A, B)
        return pl.BlockSpec((1,) + arr.shape[1:], lambda c, l: (l, 0, 0))

    in_specs = ([seq_spec(Bc * HW), seq_spec(Bc * HW), seq_spec(Bc * N)]
                + [layer_spec(w) for w in weight_args]
                + [pl.BlockSpec(packed["fnorm"].shape, lambda c, l: (0, 0))])

    kernel = functools.partial(
        decoder_stack_kernel, num_heads=num_heads, compute_dtype=compute_dtype,
        batch_per_block=Bc, n_queries=N, n_keys=HW)

    # Rough VMEM budget: double-buffered per-layer weights + resident sequence
    # blocks + output block + scratch, with headroom; clamped to [16, 48] MiB so
    # the same limit is safe on v5e/v6e (128 MiB) and v7x (64 MiB physical).
    cd_bytes = jnp.dtype(compute_dtype).itemsize
    w_bytes = sum(int(w.nbytes) // L for w in weight_args)
    seq_bytes = (2 * Bc * HW + Bc * N) * C * 4
    out_bytes = Bc * N * C * 4
    scr_bytes = Bc * N * C * 4 + (2 * Bc * HW + Bc * N) * C * cd_bytes
    vmem_limit = int(min(max(2 * (w_bytes + seq_bytes + out_bytes)
                             + scr_bytes + (4 << 20), 16 << 20), 48 << 20))

    out = pl.pallas_call(
        kernel,
        out_shape=jax.ShapeDtypeStruct((L, B * N, C), jnp.float32),
        grid_spec=pltpu.PrefetchScalarGridSpec(
            num_scalar_prefetch=0,
            grid=(core_split, L),     # layer innermost: weights stream once/core
            in_specs=in_specs,
            out_specs=pl.BlockSpec((1, Bc * N, C), lambda c, l: (l, c, 0)),
            scratch_shapes=[
                pltpu.VMEM((Bc * N, C), jnp.float32),        # carried queries
                pltpu.VMEM((2, Bc * HW, C), compute_dtype),  # cached img+pos, img
                pltpu.VMEM((Bc * N, C), compute_dtype),      # per-head staging
            ]),
        compiler_params=pltpu.CompilerParams(
            dimension_semantics=("parallel", "arbitrary"),
            vmem_limit_bytes=vmem_limit),
    )(img2, pos2, qpe2, *weight_args, packed["fnorm"])
    return out.reshape(L, B, N, C)


# ---------------------------------------------------------------------------
# Parameter init (deterministic; xavier-uniform for >1D like the PyTorch init)
# ---------------------------------------------------------------------------
def _xavier(key, shape):
    fan_out, fan_in = shape[0], shape[1]
    bound = math.sqrt(6.0 / (fan_in + fan_out))
    return jax.random.uniform(key, shape, jnp.float32, -bound, bound)


def init_params(key, num_layers, C, mlp_dim):
    layers = []
    for _ in range(num_layers):
        ks = jax.random.split(key, 13)
        key = ks[0]
        lw = dict(
            sa_in_w=_xavier(ks[1], (3 * C, C)),
            sa_in_b=0.05 * jax.random.normal(ks[2], (3 * C,), jnp.float32),
            sa_out_w=_xavier(ks[3], (C, C)),
            sa_out_b=0.05 * jax.random.normal(ks[4], (C,), jnp.float32),
            ca_in_w=_xavier(ks[5], (3 * C, C)),
            ca_in_b=0.05 * jax.random.normal(ks[6], (3 * C,), jnp.float32),
            ca_out_w=_xavier(ks[7], (C, C)),
            ca_out_b=0.05 * jax.random.normal(ks[8], (C,), jnp.float32),
            l1_w=_xavier(ks[9], (mlp_dim, C)),
            l1_b=0.05 * jax.random.normal(ks[10], (mlp_dim,), jnp.float32),
            l2_w=_xavier(ks[11], (C, mlp_dim)),
            l2_b=0.05 * jax.random.normal(ks[12], (C,), jnp.float32),
            n1_g=jnp.ones((C,), jnp.float32), n1_b=jnp.zeros((C,), jnp.float32),
            n2_g=jnp.ones((C,), jnp.float32), n2_b=jnp.zeros((C,), jnp.float32),
            n3_g=jnp.ones((C,), jnp.float32), n3_b=jnp.zeros((C,), jnp.float32),
        )
        layers.append(lw)
    final_norm = dict(g=jnp.ones((C,), jnp.float32), b=jnp.zeros((C,), jnp.float32))
    return layers, final_norm


# ---------------------------------------------------------------------------
# Pure-JAX reference (PyTorch-convention weights) for a sanity check
# ---------------------------------------------------------------------------
def _ref_layernorm(x, g, b, eps=1e-5):
    mu = x.mean(-1, keepdims=True)
    var = ((x - mu) ** 2).mean(-1, keepdims=True)
    return (x - mu) / jnp.sqrt(var + eps) * g + b


def _ref_mha(q, k, v, in_w, in_b, out_w, out_b, H):
    B, Nq, C = q.shape
    Nk = k.shape[1]
    dh = C // H
    qp = q @ in_w[:C].T + in_b[:C]
    kp = k @ in_w[C:2 * C].T + in_b[C:2 * C]
    vp = v @ in_w[2 * C:].T + in_b[2 * C:]
    qp = qp.reshape(B, Nq, H, dh).transpose(0, 2, 1, 3)
    kp = kp.reshape(B, Nk, H, dh).transpose(0, 2, 1, 3)
    vp = vp.reshape(B, Nk, H, dh).transpose(0, 2, 1, 3)
    s = jnp.einsum("bhnd,bhmd->bhnm", qp, kp) / math.sqrt(dh)
    p = jax.nn.softmax(s, axis=-1)
    o = jnp.einsum("bhnm,bhmd->bhnd", p, vp).transpose(0, 2, 1, 3).reshape(B, Nq, C)
    return o @ out_w.T + out_b


def reference_decoder(img, pos, queries_in, layers, final_norm, H):
    qpe = queries_in
    x = jnp.zeros_like(qpe)
    outs = []
    for w in layers:
        a = _ref_mha(x + qpe, x + qpe, x, w["sa_in_w"], w["sa_in_b"],
                     w["sa_out_w"], w["sa_out_b"], H)
        x = _ref_layernorm(x + a, w["n1_g"], w["n1_b"])
        a = _ref_mha(x + qpe, img + pos, img, w["ca_in_w"], w["ca_in_b"],
                     w["ca_out_w"], w["ca_out_b"], H)
        x = _ref_layernorm(x + a, w["n2_g"], w["n2_b"])
        h = jnp.maximum(x @ w["l1_w"].T + w["l1_b"], 0.0)
        m = h @ w["l2_w"].T + w["l2_b"]
        x = _ref_layernorm(x + m, w["n3_g"], w["n3_b"])
        outs.append(_ref_layernorm(x, final_norm["g"], final_norm["b"]))
    return jnp.stack(outs, axis=0)


if __name__ == "__main__":
    # Small shapes consistent with the module's forward
    B, HW, N, C = 2, 16, 8, 32
    num_heads, mlp_dim, num_layers = 4, 64, 2

    key = jax.random.PRNGKey(0)
    k1, k2, k3, k4 = jax.random.split(key, 4)
    image_embeddings = jax.random.normal(k1, (B, HW, C), jnp.float32)
    pos_embeddings = jax.random.normal(k2, (B, HW, C), jnp.float32)
    queries = jax.random.normal(k3, (B, N, C), jnp.float32)

    layers, final_norm = init_params(k4, num_layers, C, mlp_dim)
    ref = reference_decoder(image_embeddings, pos_embeddings, queries,
                            layers, final_norm, num_heads)

    # f32 matmul operands (approx softmax reciprocal -> slightly loose tolerance)
    packed_f32 = pack_params(layers, final_norm, num_heads, jnp.float32)
    out_f32 = transformer_decoder(image_embeddings, pos_embeddings, queries,
                                  packed_f32, num_heads, jnp.float32)
    out_f32 = jax.block_until_ready(out_f32)
    assert out_f32.shape == (num_layers, B, N, C), out_f32.shape
    assert jnp.allclose(out_f32, ref, atol=2e-2, rtol=2e-2), \
        float(jnp.max(jnp.abs(out_f32 - ref)))

    # bf16 weights / matmul operands, f32 accumulation + f32 LayerNorm/softmax
    packed_bf16 = pack_params(layers, final_norm, num_heads, jnp.bfloat16)
    out_bf16 = transformer_decoder(image_embeddings, pos_embeddings, queries,
                                   packed_bf16, num_heads, jnp.bfloat16)
    out_bf16 = jax.block_until_ready(out_bf16)
    assert jnp.allclose(out_bf16, ref, atol=2.5e-1, rtol=2.5e-1), \
        float(jnp.max(jnp.abs(out_bf16 - ref)))

    print("KERNEL_OK")
</pallas_src>

<mosaic_0001>
module attributes {stable_mosaic.version = 11 : i64} {
  func.func @decoder_stack_kernel(%arg0: i32, %arg1: i32, %arg2: memref<16x32xf32, #tpu.memory_space<vmem>>, %arg3: memref<16x32xf32, #tpu.memory_space<vmem>>, %arg4: memref<8x32xf32, #tpu.memory_space<vmem>>, %arg5: memref<1x64x96xf32, #tpu.memory_space<vmem>>, %arg6: memref<1x2x96xf32, #tpu.memory_space<vmem>>, %arg7: memref<1x64x32xf32, #tpu.memory_space<vmem>>, %arg8: memref<1x2x32xf32, #tpu.memory_space<vmem>>, %arg9: memref<1x32x64xf32, #tpu.memory_space<vmem>>, %arg10: memref<1x1x64xf32, #tpu.memory_space<vmem>>, %arg11: memref<1x64x32xf32, #tpu.memory_space<vmem>>, %arg12: memref<1x1x32xf32, #tpu.memory_space<vmem>>, %arg13: memref<1x6x32xf32, #tpu.memory_space<vmem>>, %arg14: memref<2x32xf32, #tpu.memory_space<vmem>>, %arg15: memref<1x8x32xf32, #tpu.memory_space<vmem>>, %arg16: memref<8x32xf32, #tpu.memory_space<vmem>>, %arg17: memref<2x16x32xf32, #tpu.memory_space<vmem>>, %arg18: memref<8x32xf32, #tpu.memory_space<vmem>>) attributes {dimension_semantics = [#tpu.dimension_semantics<parallel>, #tpu.dimension_semantics<arbitrary>], iteration_bounds = array<i64: 2, 2>, scalar_prefetch = 0 : i64, scratch_operands = 3 : i64, tpu.core_type = #tpu.core_type<tc>, window_params = [{transform_indices = @transform_0, window_bounds = array<i64: 16, 32>}, {transform_indices = @transform_1, window_bounds = array<i64: 16, 32>}, {transform_indices = @transform_2, window_bounds = array<i64: 8, 32>}, {transform_indices = @transform_3, window_bounds = array<i64: 1, 64, 96>}, {transform_indices = @transform_4, window_bounds = array<i64: 1, 2, 96>}, {transform_indices = @transform_5, window_bounds = array<i64: 1, 64, 32>}, {transform_indices = @transform_6, window_bounds = array<i64: 1, 2, 32>}, {transform_indices = @transform_7, window_bounds = array<i64: 1, 32, 64>}, {transform_indices = @transform_8, window_bounds = array<i64: 1, 1, 64>}, {transform_indices = @transform_9, window_bounds = array<i64: 1, 64, 32>}, {transform_indices = @transform_10, window_bounds = array<i64: 1, 1, 32>}, {transform_indices = @transform_11, window_bounds = array<i64: 1, 6, 32>}, {pipeline_mode = #tpu.pipeline_mode<synchronous>, transform_indices = @transform_12, window_bounds = array<i64: 2, 32>}, {transform_indices = @transform_13, window_bounds = array<i64: 1, 8, 32>}]} {
    %c0_i32 = arith.constant 0 : i32
    %0 = arith.cmpi eq, %arg1, %c0_i32 : i32
    %1 = arith.extui %0 : i1 to i32
    %c0_i32_0 = arith.constant 0 : i32
    %2 = arith.cmpi ne, %1, %c0_i32_0 : i32
    scf.if %2 {
      %cst_122 = arith.constant 0.000000e+00 : f32
      %315 = vector.broadcast %cst_122 : f32 to vector<8x32xf32>
      %c0_123 = arith.constant 0 : index
      %c0_124 = arith.constant 0 : index
      %316 = vector.load %arg16[%c0_123, %c0_124] : memref<8x32xf32, #tpu.memory_space<vmem>>, vector<8x32xf32>
      tpu.vector_store %arg16[%c0_123, %c0_124], %315 {strides = array<i32>} : memref<8x32xf32, #tpu.memory_space<vmem>>, vector<8x32xf32>,
      %c0_125 = arith.constant 0 : index
      %c0_126 = arith.constant 0 : index
      %317 = vector.load %arg2[%c0_125, %c0_126] : memref<16x32xf32, #tpu.memory_space<vmem>>, vector<16x32xf32>
      %c0_127 = arith.constant 0 : index
      %c0_128 = arith.constant 0 : index
      %318 = vector.load %arg3[%c0_127, %c0_128] : memref<16x32xf32, #tpu.memory_space<vmem>>, vector<16x32xf32>
      %319 = arith.addf %317, %318 : vector<16x32xf32>
      %c0_129 = arith.constant 0 : index
      %c0_130 = arith.constant 0 : index
      %c0_131 = arith.constant 0 : index
      %320 = vector.load %arg17[%c0_129, %c0_130, %c0_131] : memref<2x16x32xf32, #tpu.memory_space<vmem>>, vector<1x16x32xf32>
      %321 = vector.shape_cast %320 : vector<1x16x32xf32> to vector<16x32xf32>
      %322 = vector.shape_cast %319 : vector<16x32xf32> to vector<1x16x32xf32>
      tpu.vector_store %arg17[%c0_129, %c0_130, %c0_131], %322 {strides = array<i32>} : memref<2x16x32xf32, #tpu.memory_space<vmem>>, vector<1x16x32xf32>,
      %c0_132 = arith.constant 0 : index
      %c0_133 = arith.constant 0 : index
      %323 = vector.load %arg2[%c0_132, %c0_133] : memref<16x32xf32, #tpu.memory_space<vmem>>, vector<16x32xf32>
      %c1_134 = arith.constant 1 : index
      %c0_135 = arith.constant 0 : index
      %c0_136 = arith.constant 0 : index
      %324 = vector.load %arg17[%c1_134, %c0_135, %c0_136] : memref<2x16x32xf32, #tpu.memory_space<vmem>>, vector<1x16x32xf32>
      %325 = vector.shape_cast %324 : vector<1x16x32xf32> to vector<16x32xf32>
      %326 = vector.shape_cast %323 : vector<16x32xf32> to vector<1x16x32xf32>
      tpu.vector_store %arg17[%c1_134, %c0_135, %c0_136], %326 {strides = array<i32>} : memref<2x16x32xf32, #tpu.memory_space<vmem>>, vector<1x16x32xf32>,
    } else {
    }
    %c0 = arith.constant 0 : index
    %c0_1 = arith.constant 0 : index
    %3 = vector.load %arg16[%c0, %c0_1] : memref<8x32xf32, #tpu.memory_space<vmem>>, vector<8x32xf32>
    %c0_2 = arith.constant 0 : index
    %c0_3 = arith.constant 0 : index
    %4 = vector.load %arg4[%c0_2, %c0_3] : memref<8x32xf32, #tpu.memory_space<vmem>>, vector<8x32xf32>
    %c0_4 = arith.constant 0 : index
    %c0_5 = arith.constant 0 : index
    %c0_6 = arith.constant 0 : index
    %5 = vector.load %arg5[%c0_4, %c0_5, %c0_6] : memref<1x64x96xf32, #tpu.memory_space<vmem>>, vector<1x64x96xf32>
    %6 = vector.shape_cast %5 : vector<1x64x96xf32> to vector<64x96xf32>
    %c0_7 = arith.constant 0 : index
    %c0_8 = arith.constant 0 : index
    %c0_9 = arith.constant 0 : index
    %7 = vector.load %arg6[%c0_7, %c0_8, %c0_9] : memref<1x2x96xf32, #tpu.memory_space<vmem>>, vector<1x2x96xf32>
    %8 = vector.shape_cast %7 : vector<1x2x96xf32> to vector<2x96xf32>
    %c0_10 = arith.constant 0 : index
    %c0_11 = arith.constant 0 : index
    %c0_12 = arith.constant 0 : index
    %9 = vector.load %arg7[%c0_10, %c0_11, %c0_12] : memref<1x64x32xf32, #tpu.memory_space<vmem>>, vector<1x64x32xf32>
    %10 = vector.shape_cast %9 : vector<1x64x32xf32> to vector<64x32xf32>
    %c0_13 = arith.constant 0 : index
    %c0_14 = arith.constant 0 : index
    %c0_15 = arith.constant 0 : index
    %11 = vector.load %arg8[%c0_13, %c0_14, %c0_15] : memref<1x2x32xf32, #tpu.memory_space<vmem>>, vector<1x2x32xf32>
    %12 = vector.shape_cast %11 : vector<1x2x32xf32> to vector<2x32xf32>
    %c0_16 = arith.constant 0 : index
    %c0_17 = arith.constant 0 : index
    %c0_18 = arith.constant 0 : index
    %13 = vector.load %arg13[%c0_16, %c0_17, %c0_18] : memref<1x6x32xf32, #tpu.memory_space<vmem>>, vector<1x6x32xf32>
    %14 = vector.shape_cast %13 : vector<1x6x32xf32> to vector<6x32xf32>
    %15 = arith.addf %3, %4 : vector<8x32xf32>
    %16 = vector.extract_strided_slice %6 {offsets = [0, 0], sizes = [32, 96], strides = [1, 1]} : vector<64x96xf32> to vector<32x96xf32>
    %17 = vector.extract_strided_slice %8 {offsets = [0, 0], sizes = [1, 96], strides = [1, 1]} : vector<2x96xf32> to vector<1x96xf32>
    %18 = vector.extract_strided_slice %10 {offsets = [0, 0], sizes = [32, 32], strides = [1, 1]} : vector<64x32xf32> to vector<32x32xf32>
    %19 = vector.extract_strided_slice %12 {offsets = [0, 0], sizes = [1, 32], strides = [1, 1]} : vector<2x32xf32> to vector<1x32xf32>
    %20 = vector.extract_strided_slice %16 {offsets = [0, 0], sizes = [32, 32], strides = [1, 1]} : vector<32x96xf32> to vector<32x32xf32>
    %cst = arith.constant dense<0.000000e+00> : vector<8x32xf32>
    %21 = tpu.matmul %15, %20, %cst {dimension_numbers = #tpu.dot_dimension_numbers<[1], [0], [0], [1], [0, 0, 1, 1], [], []>} : vector<8x32xf32>, vector<32x32xf32>, vector<8x32xf32> -> vector<8x32xf32>
    %22 = vector.extract_strided_slice %17 {offsets = [0, 0], sizes = [1, 32], strides = [1, 1]} : vector<1x96xf32> to vector<1x32xf32>
    %23 = vector.broadcast %22 : vector<1x32xf32> to vector<8x32xf32>
    %24 = arith.addf %21, %23 : vector<8x32xf32>
    %25 = vector.extract_strided_slice %16 {offsets = [0, 32], sizes = [32, 32], strides = [1, 1]} : vector<32x96xf32> to vector<32x32xf32>
    %cst_19 = arith.constant dense<0.000000e+00> : vector<8x32xf32>
    %26 = tpu.matmul %15, %25, %cst_19 {dimension_numbers = #tpu.dot_dimension_numbers<[1], [0], [0], [1], [0, 0, 1, 1], [], []>} : vector<8x32xf32>, vector<32x32xf32>, vector<8x32xf32> -> vector<8x32xf32>
    %27 = vector.extract_strided_slice %17 {offsets = [0, 32], sizes = [1, 32], strides = [1, 1]} : vector<1x96xf32> to vector<1x32xf32>
    %28 = vector.broadcast %27 : vector<1x32xf32> to vector<8x32xf32>
    %29 = arith.addf %26, %28 : vector<8x32xf32>
    %30 = vector.extract_strided_slice %16 {offsets = [0, 64], sizes = [32, 32], strides = [1, 1]} : vector<32x96xf32> to vector<32x32xf32>
    %cst_20 = arith.constant dense<0.000000e+00> : vector<8x32xf32>
    %31 = tpu.matmul %3, %30, %cst_20 {dimension_numbers = #tpu.dot_dimension_numbers<[1], [0], [0], [1], [0, 0, 1, 1], [], []>} : vector<8x32xf32>, vector<32x32xf32>, vector<8x32xf32> -> vector<8x32xf32>
    %32 = vector.extract_strided_slice %17 {offsets = [0, 64], sizes = [1, 32], strides = [1, 1]} : vector<1x96xf32> to vector<1x32xf32>
    %33 = vector.broadcast %32 : vector<1x32xf32> to vector<8x32xf32>
    %34 = arith.addf %31, %33 : vector<8x32xf32>
    %35 = vector.extract_strided_slice %24 {offsets = [0, 0], sizes = [8, 8], strides = [1, 1]} : vector<8x32xf32> to vector<8x8xf32>
    %36 = vector.extract_strided_slice %29 {offsets = [0, 0], sizes = [8, 8], strides = [1, 1]} : vector<8x32xf32> to vector<8x8xf32>
    %cst_21 = arith.constant dense<0.000000e+00> : vector<8x8xf32>
    %37 = tpu.matmul %35, %36, %cst_21 {dimension_numbers = #tpu.dot_dimension_numbers<[1], [1], [0], [0], [0, 0, 1, 0], [], []>} : vector<8x8xf32>, vector<8x8xf32>, vector<8x8xf32> -> vector<8x8xf32>
    %cst_22 = arith.constant dense<0xFF800000> : vector<8xf32>
    %38 = vector.multi_reduction <maximumf>, %37, %cst_22 [1] : vector<8x8xf32> to vector<8xf32>
    %39 = vector.shape_cast %38 : vector<8xf32> to vector<8x1xf32>
    %40 = vector.broadcast %39 : vector<8x1xf32> to vector<8x8xf32>
    %41 = arith.subf %37, %40 : vector<8x8xf32>
    %42 = math.exp %41 : vector<8x8xf32>
    %cst_23 = arith.constant dense<0.000000e+00> : vector<8xf32>
    %43 = vector.multi_reduction <add>, %42, %cst_23 [1] : vector<8x8xf32> to vector<8xf32>
    %44 = vector.shape_cast %43 : vector<8xf32> to vector<8x1xf32>
    %45 = tpu.reciprocal %44 {approx = true} : vector<8x1xf32> -> vector<8x1xf32>
    %46 = vector.broadcast %45 : vector<8x1xf32> to vector<8x8xf32>
    %47 = arith.mulf %42, %46 : vector<8x8xf32>
    %48 = vector.extract_strided_slice %34 {offsets = [0, 0], sizes = [8, 8], strides = [1, 1]} : vector<8x32xf32> to vector<8x8xf32>
    %cst_24 = arith.constant dense<0.000000e+00> : vector<8x8xf32>
    %49 = tpu.matmul %47, %48, %cst_24 {dimension_numbers = #tpu.dot_dimension_numbers<[1], [0], [0], [1], [0, 0, 1, 1], [], []>} : vector<8x8xf32>, vector<8x8xf32>, vector<8x8xf32> -> vector<8x8xf32>
    %c0_25 = arith.constant 0 : index
    %c0_26 = arith.constant 0 : index
    %50 = vector.load %arg18[%c0_25, %c0_26] : memref<8x32xf32, #tpu.memory_space<vmem>>, vector<8x8xf32>
    tpu.vector_store %arg18[%c0_25, %c0_26], %49 {strides = array<i32>} : memref<8x32xf32, #tpu.memory_space<vmem>>, vector<8x8xf32>,
    %51 = vector.extract_strided_slice %24 {offsets = [0, 8], sizes = [8, 8], strides = [1, 1]} : vector<8x32xf32> to vector<8x8xf32>
    %52 = vector.extract_strided_slice %29 {offsets = [0, 8], sizes = [8, 8], strides = [1, 1]} : vector<8x32xf32> to vector<8x8xf32>
    %cst_27 = arith.constant dense<0.000000e+00> : vector<8x8xf32>
    %53 = tpu.matmul %51, %52, %cst_27 {dimension_numbers = #tpu.dot_dimension_numbers<[1], [1], [0], [0], [0, 0, 1, 0], [], []>} : vector<8x8xf32>, vector<8x8xf32>, vector<8x8xf32> -> vector<8x8xf32>
    %cst_28 = arith.constant dense<0xFF800000> : vector<8xf32>
    %54 = vector.multi_reduction <maximumf>, %53, %cst_28 [1] : vector<8x8xf32> to vector<8xf32>
    %55 = vector.shape_cast %54 : vector<8xf32> to vector<8x1xf32>
    %56 = vector.broadcast %55 : vector<8x1xf32> to vector<8x8xf32>
    %57 = arith.subf %53, %56 : vector<8x8xf32>
    %58 = math.exp %57 : vector<8x8xf32>
    %cst_29 = arith.constant dense<0.000000e+00> : vector<8xf32>
    %59 = vector.multi_reduction <add>, %58, %cst_29 [1] : vector<8x8xf32> to vector<8xf32>
    %60 = vector.shape_cast %59 : vector<8xf32> to vector<8x1xf32>
    %61 = tpu.reciprocal %60 {approx = true} : vector<8x1xf32> -> vector<8x1xf32>
    %62 = vector.broadcast %61 : vector<8x1xf32> to vector<8x8xf32>
    %63 = arith.mulf %58, %62 : vector<8x8xf32>
    %64 = vector.extract_strided_slice %34 {offsets = [0, 8], sizes = [8, 8], strides = [1, 1]} : vector<8x32xf32> to vector<8x8xf32>
    %cst_30 = arith.constant dense<0.000000e+00> : vector<8x8xf32>
    %65 = tpu.matmul %63, %64, %cst_30 {dimension_numbers = #tpu.dot_dimension_numbers<[1], [0], [0], [1], [0, 0, 1, 1], [], []>} : vector<8x8xf32>, vector<8x8xf32>, vector<8x8xf32> -> vector<8x8xf32>
    %c0_31 = arith.constant 0 : index
    %c8 = arith.constant 8 : index
    %66 = vector.load %arg18[%c0_31, %c8] : memref<8x32xf32, #tpu.memory_space<vmem>>, vector<8x8xf32>
    tpu.vector_store %arg18[%c0_31, %c8], %65 {strides = array<i32>} : memref<8x32xf32, #tpu.memory_space<vmem>>, vector<8x8xf32>,
    %67 = vector.extract_strided_slice %24 {offsets = [0, 16], sizes = [8, 8], strides = [1, 1]} : vector<8x32xf32> to vector<8x8xf32>
    %68 = vector.extract_strided_slice %29 {offsets = [0, 16], sizes = [8, 8], strides = [1, 1]} : vector<8x32xf32> to vector<8x8xf32>
    %cst_32 = arith.constant dense<0.000000e+00> : vector<8x8xf32>
    %69 = tpu.matmul %67, %68, %cst_32 {dimension_numbers = #tpu.dot_dimension_numbers<[1], [1], [0], [0], [0, 0, 1, 0], [], []>} : vector<8x8xf32>, vector<8x8xf32>, vector<8x8xf32> -> vector<8x8xf32>
    %cst_33 = arith.constant dense<0xFF800000> : vector<8xf32>
    %70 = vector.multi_reduction <maximumf>, %69, %cst_33 [1] : vector<8x8xf32> to vector<8xf32>
    %71 = vector.shape_cast %70 : vector<8xf32> to vector<8x1xf32>
    %72 = vector.broadcast %71 : vector<8x1xf32> to vector<8x8xf32>
    %73 = arith.subf %69, %72 : vector<8x8xf32>
    %74 = math.exp %73 : vector<8x8xf32>
    %cst_34 = arith.constant dense<0.000000e+00> : vector<8xf32>
    %75 = vector.multi_reduction <add>, %74, %cst_34 [1] : vector<8x8xf32> to vector<8xf32>
    %76 = vector.shape_cast %75 : vector<8xf32> to vector<8x1xf32>
    %77 = tpu.reciprocal %76 {approx = true} : vector<8x1xf32> -> vector<8x1xf32>
    %78 = vector.broadcast %77 : vector<8x1xf32> to vector<8x8xf32>
    %79 = arith.mulf %74, %78 : vector<8x8xf32>
    %80 = vector.extract_strided_slice %34 {offsets = [0, 16], sizes = [8, 8], strides = [1, 1]} : vector<8x32xf32> to vector<8x8xf32>
    %cst_35 = arith.constant dense<0.000000e+00> : vector<8x8xf32>
    %81 = tpu.matmul %79, %80, %cst_35 {dimension_numbers = #tpu.dot_dimension_numbers<[1], [0], [0], [1], [0, 0, 1, 1], [], []>} : vector<8x8xf32>, vector<8x8xf32>, vector<8x8xf32> -> vector<8x8xf32>
    %c0_36 = arith.constant 0 : index
    %c16 = arith.constant 16 : index
    %82 = vector.load %arg18[%c0_36, %c16] : memref<8x32xf32, #tpu.memory_space<vmem>>, vector<8x8xf32>
    tpu.vector_store %arg18[%c0_36, %c16], %81 {strides = array<i32>} : memref<8x32xf32, #tpu.memory_space<vmem>>, vector<8x8xf32>,
    %83 = vector.extract_strided_slice %24 {offsets = [0, 24], sizes = [8, 8], strides = [1, 1]} : vector<8x32xf32> to vector<8x8xf32>
    %84 = vector.extract_strided_slice %29 {offsets = [0, 24], sizes = [8, 8], strides = [1, 1]} : vector<8x32xf32> to vector<8x8xf32>
    %cst_37 = arith.constant dense<0.000000e+00> : vector<8x8xf32>
    %85 = tpu.matmul %83, %84, %cst_37 {dimension_numbers = #tpu.dot_dimension_numbers<[1], [1], [0], [0], [0, 0, 1, 0], [], []>} : vector<8x8xf32>, vector<8x8xf32>, vector<8x8xf32> -> vector<8x8xf32>
    %cst_38 = arith.constant dense<0xFF800000> : vector<8xf32>
    %86 = vector.multi_reduction <maximumf>, %85, %cst_38 [1] : vector<8x8xf32> to vector<8xf32>
    %87 = vector.shape_cast %86 : vector<8xf32> to vector<8x1xf32>
    %88 = vector.broadcast %87 : vector<8x1xf32> to vector<8x8xf32>
    %89 = arith.subf %85, %88 : vector<8x8xf32>
    %90 = math.exp %89 : vector<8x8xf32>
    %cst_39 = arith.constant dense<0.000000e+00> : vector<8xf32>
    %91 = vector.multi_reduction <add>, %90, %cst_39 [1] : vector<8x8xf32> to vector<8xf32>
    %92 = vector.shape_cast %91 : vector<8xf32> to vector<8x1xf32>
    %93 = tpu.reciprocal %92 {approx = true} : vector<8x1xf32> -> vector<8x1xf32>
    %94 = vector.broadcast %93 : vector<8x1xf32> to vector<8x8xf32>
    %95 = arith.mulf %90, %94 : vector<8x8xf32>
    %96 = vector.extract_strided_slice %34 {offsets = [0, 24], sizes = [8, 8], strides = [1, 1]} : vector<8x32xf32> to vector<8x8xf32>
    %cst_40 = arith.constant dense<0.000000e+00> : vector<8x8xf32>
    %97 = tpu.matmul %95, %96, %cst_40 {dimension_numbers = #tpu.dot_dimension_numbers<[1], [0], [0], [1], [0, 0, 1, 1], [], []>} : vector<8x8xf32>, vector<8x8xf32>, vector<8x8xf32> -> vector<8x8xf32>
    %c0_41 = arith.constant 0 : index
    %c24 = arith.constant 24 : index
    %98 = vector.load %arg18[%c0_41, %c24] : memref<8x32xf32, #tpu.memory_space<vmem>>, vector<8x8xf32>
    tpu.vector_store %arg18[%c0_41, %c24], %97 {strides = array<i32>} : memref<8x32xf32, #tpu.memory_space<vmem>>, vector<8x8xf32>,
    %c0_42 = arith.constant 0 : index
    %c0_43 = arith.constant 0 : index
    %99 = vector.load %arg18[%c0_42, %c0_43] : memref<8x32xf32, #tpu.memory_space<vmem>>, vector<8x32xf32>
    %cst_44 = arith.constant dense<0.000000e+00> : vector<8x32xf32>
    %100 = tpu.matmul %99, %18, %cst_44 {dimension_numbers = #tpu.dot_dimension_numbers<[1], [0], [0], [1], [0, 0, 1, 1], [], []>} : vector<8x32xf32>, vector<32x32xf32>, vector<8x32xf32> -> vector<8x32xf32>
    %101 = vector.broadcast %19 : vector<1x32xf32> to vector<8x32xf32>
    %102 = arith.addf %100, %101 : vector<8x32xf32>
    %103 = arith.addf %3, %102 : vector<8x32xf32>
    %104 = vector.extract_strided_slice %14 {offsets = [0, 0], sizes = [1, 32], strides = [1, 1]} : vector<6x32xf32> to vector<1x32xf32>
    %105 = vector.extract_strided_slice %14 {offsets = [1, 0], sizes = [1, 32], strides = [1, 1]} : vector<6x32xf32> to vector<1x32xf32>
    %cst_45 = arith.constant dense<0.000000e+00> : vector<8xf32>
    %106 = vector.multi_reduction <add>, %103, %cst_45 [1] : vector<8x32xf32> to vector<8xf32>
    %107 = vector.shape_cast %106 : vector<8xf32> to vector<8x1xf32>
    %cst_46 = arith.constant 3.200000e+01 : f32
    %108 = vector.broadcast %cst_46 : f32 to vector<8x1xf32>
    %109 = arith.divf %107, %108 : vector<8x1xf32>
    %110 = vector.broadcast %109 : vector<8x1xf32> to vector<8x32xf32>
    %111 = arith.subf %103, %110 : vector<8x32xf32>
    %112 = arith.mulf %111, %111 : vector<8x32xf32>
    %cst_47 = arith.constant dense<0.000000e+00> : vector<8xf32>
    %113 = vector.multi_reduction <add>, %112, %cst_47 [1] : vector<8x32xf32> to vector<8xf32>
    %114 = vector.shape_cast %113 : vector<8xf32> to vector<8x1xf32>
    %cst_48 = arith.constant 3.200000e+01 : f32
    %115 = vector.broadcast %cst_48 : f32 to vector<8x1xf32>
    %116 = arith.divf %114, %115 : vector<8x1xf32>
    %117 = vector.broadcast %109 : vector<8x1xf32> to vector<8x32xf32>
    %118 = arith.subf %103, %117 : vector<8x32xf32>
    %cst_49 = arith.constant 9.99999974E-6 : f32
    %119 = vector.broadcast %cst_49 : f32 to vector<8x1xf32>
    %120 = arith.addf %116, %119 : vector<8x1xf32>
    %121 = math.rsqrt %120 : vector<8x1xf32>
    %122 = vector.broadcast %121 : vector<8x1xf32> to vector<8x32xf32>
    %123 = arith.mulf %118, %122 : vector<8x32xf32>
    %124 = vector.broadcast %104 : vector<1x32xf32> to vector<8x32xf32>
    %125 = arith.mulf %123, %124 : vector<8x32xf32>
    %126 = vector.broadcast %105 : vector<1x32xf32> to vector<8x32xf32>
    %127 = arith.addf %125, %126 : vector<8x32xf32>
    %128 = arith.addf %127, %4 : vector<8x32xf32>
    %c0_50 = arith.constant 0 : index
    %c0_51 = arith.constant 0 : index
    %c0_52 = arith.constant 0 : index
    %129 = vector.load %arg17[%c0_50, %c0_51, %c0_52] : memref<2x16x32xf32, #tpu.memory_space<vmem>>, vector<1x16x32xf32>
    %130 = vector.shape_cast %129 : vector<1x16x32xf32> to vector<16x32xf32>
    %c1 = arith.constant 1 : index
    %c0_53 = arith.constant 0 : index
    %c0_54 = arith.constant 0 : index
    %131 = vector.load %arg17[%c1, %c0_53, %c0_54] : memref<2x16x32xf32, #tpu.memory_space<vmem>>, vector<1x16x32xf32>
    %132 = vector.shape_cast %131 : vector<1x16x32xf32> to vector<16x32xf32>
    %133 = vector.extract_strided_slice %6 {offsets = [32, 0], sizes = [32, 96], strides = [1, 1]} : vector<64x96xf32> to vector<32x96xf32>
    %134 = vector.extract_strided_slice %8 {offsets = [1, 0], sizes = [1, 96], strides = [1, 1]} : vector<2x96xf32> to vector<1x96xf32>
    %135 = vector.extract_strided_slice %10 {offsets = [32, 0], sizes = [32, 32], strides = [1, 1]} : vector<64x32xf32> to vector<32x32xf32>
    %136 = vector.extract_strided_slice %12 {offsets = [1, 0], sizes = [1, 32], strides = [1, 1]} : vector<2x32xf32> to vector<1x32xf32>
    %137 = vector.extract_strided_slice %133 {offsets = [0, 0], sizes = [32, 32], strides = [1, 1]} : vector<32x96xf32> to vector<32x32xf32>
    %cst_55 = arith.constant dense<0.000000e+00> : vector<8x32xf32>
    %138 = tpu.matmul %128, %137, %cst_55 {dimension_numbers = #tpu.dot_dimension_numbers<[1], [0], [0], [1], [0, 0, 1, 1], [], []>} : vector<8x32xf32>, vector<32x32xf32>, vector<8x32xf32> -> vector<8x32xf32>
    %139 = vector.extract_strided_slice %134 {offsets = [0, 0], sizes = [1, 32], strides = [1, 1]} : vector<1x96xf32> to vector<1x32xf32>
    %140 = vector.broadcast %139 : vector<1x32xf32> to vector<8x32xf32>
    %141 = arith.addf %138, %140 : vector<8x32xf32>
    %142 = vector.extract_strided_slice %133 {offsets = [0, 32], sizes = [32, 32], strides = [1, 1]} : vector<32x96xf32> to vector<32x32xf32>
    %cst_56 = arith.constant dense<0.000000e+00> : vector<16x32xf32>
    %143 = tpu.matmul %130, %142, %cst_56 {dimension_numbers = #tpu.dot_dimension_numbers<[1], [0], [0], [1], [0, 0, 1, 1], [], []>} : vector<16x32xf32>, vector<32x32xf32>, vector<16x32xf32> -> vector<16x32xf32>
    %144 = vector.extract_strided_slice %134 {offsets = [0, 32], sizes = [1, 32], strides = [1, 1]} : vector<1x96xf32> to vector<1x32xf32>
    %145 = vector.broadcast %144 : vector<1x32xf32> to vector<16x32xf32>
    %146 = arith.addf %143, %145 : vector<16x32xf32>
    %147 = vector.extract_strided_slice %133 {offsets = [0, 64], sizes = [32, 32], strides = [1, 1]} : vector<32x96xf32> to vector<32x32xf32>
    %cst_57 = arith.constant dense<0.000000e+00> : vector<16x32xf32>
    %148 = tpu.matmul %132, %147, %cst_57 {dimension_numbers = #tpu.dot_dimension_numbers<[1], [0], [0], [1], [0, 0, 1, 1], [], []>} : vector<16x32xf32>, vector<32x32xf32>, vector<16x32xf32> -> vector<16x32xf32>
    %149 = vector.extract_strided_slice %134 {offsets = [0, 64], sizes = [1, 32], strides = [1, 1]} : vector<1x96xf32> to vector<1x32xf32>
    %150 = vector.broadcast %149 : vector<1x32xf32> to vector<16x32xf32>
    %151 = arith.addf %148, %150 : vector<16x32xf32>
    %152 = vector.extract_strided_slice %141 {offsets = [0, 0], sizes = [8, 8], strides = [1, 1]} : vector<8x32xf32> to vector<8x8xf32>
    %153 = vector.extract_strided_slice %146 {offsets = [0, 0], sizes = [16, 8], strides = [1, 1]} : vector<16x32xf32> to vector<16x8xf32>
    %cst_58 = arith.constant dense<0.000000e+00> : vector<8x16xf32>
    %154 = tpu.matmul %152, %153, %cst_58 {dimension_numbers = #tpu.dot_dimension_numbers<[1], [1], [0], [0], [0, 0, 1, 0], [], []>} : vector<8x8xf32>, vector<16x8xf32>, vector<8x16xf32> -> vector<8x16xf32>
    %cst_59 = arith.constant dense<0xFF800000> : vector<8xf32>
    %155 = vector.multi_reduction <maximumf>, %154, %cst_59 [1] : vector<8x16xf32> to vector<8xf32>
    %156 = vector.shape_cast %155 : vector<8xf32> to vector<8x1xf32>
    %157 = vector.broadcast %156 : vector<8x1xf32> to vector<8x16xf32>
    %158 = arith.subf %154, %157 : vector<8x16xf32>
    %159 = math.exp %158 : vector<8x16xf32>
    %cst_60 = arith.constant dense<0.000000e+00> : vector<8xf32>
    %160 = vector.multi_reduction <add>, %159, %cst_60 [1] : vector<8x16xf32> to vector<8xf32>
    %161 = vector.shape_cast %160 : vector<8xf32> to vector<8x1xf32>
    %162 = tpu.reciprocal %161 {approx = true} : vector<8x1xf32> -> vector<8x1xf32>
    %163 = vector.broadcast %162 : vector<8x1xf32> to vector<8x16xf32>
    %164 = arith.mulf %159, %163 : vector<8x16xf32>
    %165 = vector.extract_strided_slice %151 {offsets = [0, 0], sizes = [16, 8], strides = [1, 1]} : vector<16x32xf32> to vector<16x8xf32>
    %cst_61 = arith.constant dense<0.000000e+00> : vector<8x8xf32>
    %166 = tpu.matmul %164, %165, %cst_61 {dimension_numbers = #tpu.dot_dimension_numbers<[1], [0], [0], [1], [0, 0, 1, 1], [], []>} : vector<8x16xf32>, vector<16x8xf32>, vector<8x8xf32> -> vector<8x8xf32>
    %c0_62 = arith.constant 0 : index
    %c0_63 = arith.constant 0 : index
    %167 = vector.load %arg18[%c0_62, %c0_63] : memref<8x32xf32, #tpu.memory_space<vmem>>, vector<8x8xf32>
    tpu.vector_store %arg18[%c0_62, %c0_63], %166 {strides = array<i32>} : memref<8x32xf32, #tpu.memory_space<vmem>>, vector<8x8xf32>,
    %168 = vector.extract_strided_slice %141 {offsets = [0, 8], sizes = [8, 8], strides = [1, 1]} : vector<8x32xf32> to vector<8x8xf32>
    %169 = vector.extract_strided_slice %146 {offsets = [0, 8], sizes = [16, 8], strides = [1, 1]} : vector<16x32xf32> to vector<16x8xf32>
    %cst_64 = arith.constant dense<0.000000e+00> : vector<8x16xf32>
    %170 = tpu.matmul %168, %169, %cst_64 {dimension_numbers = #tpu.dot_dimension_numbers<[1], [1], [0], [0], [0, 0, 1, 0], [], []>} : vector<8x8xf32>, vector<16x8xf32>, vector<8x16xf32> -> vector<8x16xf32>
    %cst_65 = arith.constant dense<0xFF800000> : vector<8xf32>
    %171 = vector.multi_reduction <maximumf>, %170, %cst_65 [1] : vector<8x16xf32> to vector<8xf32>
    %172 = vector.shape_cast %171 : vector<8xf32> to vector<8x1xf32>
    %173 = vector.broadcast %172 : vector<8x1xf32> to vector<8x16xf32>
    %174 = arith.subf %170, %173 : vector<8x16xf32>
    %175 = math.exp %174 : vector<8x16xf32>
    %cst_66 = arith.constant dense<0.000000e+00> : vector<8xf32>
    %176 = vector.multi_reduction <add>, %175, %cst_66 [1] : vector<8x16xf32> to vector<8xf32>
    %177 = vector.shape_cast %176 : vector<8xf32> to vector<8x1xf32>
    %178 = tpu.reciprocal %177 {approx = true} : vector<8x1xf32> -> vector<8x1xf32>
    %179 = vector.broadcast %178 : vector<8x1xf32> to vector<8x16xf32>
    %180 = arith.mulf %175, %179 : vector<8x16xf32>
    %181 = vector.extract_strided_slice %151 {offsets = [0, 8], sizes = [16, 8], strides = [1, 1]} : vector<16x32xf32> to vector<16x8xf32>
    %cst_67 = arith.constant dense<0.000000e+00> : vector<8x8xf32>
    %182 = tpu.matmul %180, %181, %cst_67 {dimension_numbers = #tpu.dot_dimension_numbers<[1], [0], [0], [1], [0, 0, 1, 1], [], []>} : vector<8x16xf32>, vector<16x8xf32>, vector<8x8xf32> -> vector<8x8xf32>
    %c0_68 = arith.constant 0 : index
    %c8_69 = arith.constant 8 : index
    %183 = vector.load %arg18[%c0_68, %c8_69] : memref<8x32xf32, #tpu.memory_space<vmem>>, vector<8x8xf32>
    tpu.vector_store %arg18[%c0_68, %c8_69], %182 {strides = array<i32>} : memref<8x32xf32, #tpu.memory_space<vmem>>, vector<8x8xf32>,
    %184 = vector.extract_strided_slice %141 {offsets = [0, 16], sizes = [8, 8], strides = [1, 1]} : vector<8x32xf32> to vector<8x8xf32>
    %185 = vector.extract_strided_slice %146 {offsets = [0, 16], sizes = [16, 8], strides = [1, 1]} : vector<16x32xf32> to vector<16x8xf32>
    %cst_70 = arith.constant dense<0.000000e+00> : vector<8x16xf32>
    %186 = tpu.matmul %184, %185, %cst_70 {dimension_numbers = #tpu.dot_dimension_numbers<[1], [1], [0], [0], [0, 0, 1, 0], [], []>} : vector<8x8xf32>, vector<16x8xf32>, vector<8x16xf32> -> vector<8x16xf32>
    %cst_71 = arith.constant dense<0xFF800000> : vector<8xf32>
    %187 = vector.multi_reduction <maximumf>, %186, %cst_71 [1] : vector<8x16xf32> to vector<8xf32>
    %188 = vector.shape_cast %187 : vector<8xf32> to vector<8x1xf32>
    %189 = vector.broadcast %188 : vector<8x1xf32> to vector<8x16xf32>
    %190 = arith.subf %186, %189 : vector<8x16xf32>
    %191 = math.exp %190 : vector<8x16xf32>
    %cst_72 = arith.constant dense<0.000000e+00> : vector<8xf32>
    %192 = vector.multi_reduction <add>, %191, %cst_72 [1] : vector<8x16xf32> to vector<8xf32>
    %193 = vector.shape_cast %192 : vector<8xf32> to vector<8x1xf32>
    %194 = tpu.reciprocal %193 {approx = true} : vector<8x1xf32> -> vector<8x1xf32>
    %195 = vector.broadcast %194 : vector<8x1xf32> to vector<8x16xf32>
    %196 = arith.mulf %191, %195 : vector<8x16xf32>
    %197 = vector.extract_strided_slice %151 {offsets = [0, 16], sizes = [16, 8], strides = [1, 1]} : vector<16x32xf32> to vector<16x8xf32>
    %cst_73 = arith.constant dense<0.000000e+00> : vector<8x8xf32>
    %198 = tpu.matmul %196, %197, %cst_73 {dimension_numbers = #tpu.dot_dimension_numbers<[1], [0], [0], [1], [0, 0, 1, 1], [], []>} : vector<8x16xf32>, vector<16x8xf32>, vector<8x8xf32> -> vector<8x8xf32>
    %c0_74 = arith.constant 0 : index
    %c16_75 = arith.constant 16 : index
    %199 = vector.load %arg18[%c0_74, %c16_75] : memref<8x32xf32, #tpu.memory_space<vmem>>, vector<8x8xf32>
    tpu.vector_store %arg18[%c0_74, %c16_75], %198 {strides = array<i32>} : memref<8x32xf32, #tpu.memory_space<vmem>>, vector<8x8xf32>,
    %200 = vector.extract_strided_slice %141 {offsets = [0, 24], sizes = [8, 8], strides = [1, 1]} : vector<8x32xf32> to vector<8x8xf32>
    %201 = vector.extract_strided_slice %146 {offsets = [0, 24], sizes = [16, 8], strides = [1, 1]} : vector<16x32xf32> to vector<16x8xf32>
    %cst_76 = arith.constant dense<0.000000e+00> : vector<8x16xf32>
    %202 = tpu.matmul %200, %201, %cst_76 {dimension_numbers = #tpu.dot_dimension_numbers<[1], [1], [0], [0], [0, 0, 1, 0], [], []>} : vector<8x8xf32>, vector<16x8xf32>, vector<8x16xf32> -> vector<8x16xf32>
    %cst_77 = arith.constant dense<0xFF800000> : vector<8xf32>
    %203 = vector.multi_reduction <maximumf>, %202, %cst_77 [1] : vector<8x16xf32> to vector<8xf32>
    %204 = vector.shape_cast %203 : vector<8xf32> to vector<8x1xf32>
    %205 = vector.broadcast %204 : vector<8x1xf32> to vector<8x16xf32>
    %206 = arith.subf %202, %205 : vector<8x16xf32>
    %207 = math.exp %206 : vector<8x16xf32>
    %cst_78 = arith.constant dense<0.000000e+00> : vector<8xf32>
    %208 = vector.multi_reduction <add>, %207, %cst_78 [1] : vector<8x16xf32> to vector<8xf32>
    %209 = vector.shape_cast %208 : vector<8xf32> to vector<8x1xf32>
    %210 = tpu.reciprocal %209 {approx = true} : vector<8x1xf32> -> vector<8x1xf32>
    %211 = vector.broadcast %210 : vector<8x1xf32> to vector<8x16xf32>
    %212 = arith.mulf %207, %211 : vector<8x16xf32>
    %213 = vector.extract_strided_slice %151 {offsets = [0, 24], sizes = [16, 8], strides = [1, 1]} : vector<16x32xf32> to vector<16x8xf32>
    %cst_79 = arith.constant dense<0.000000e+00> : vector<8x8xf32>
    %214 = tpu.matmul %212, %213, %cst_79 {dimension_numbers = #tpu.dot_dimension_numbers<[1], [0], [0], [1], [0, 0, 1, 1], [], []>} : vector<8x16xf32>, vector<16x8xf32>, vector<8x8xf32> -> vector<8x8xf32>
    %c0_80 = arith.constant 0 : index
    %c24_81 = arith.constant 24 : index
    %215 = vector.load %arg18[%c0_80, %c24_81] : memref<8x32xf32, #tpu.memory_space<vmem>>, vector<8x8xf32>
    tpu.vector_store %arg18[%c0_80, %c24_81], %214 {strides = array<i32>} : memref<8x32xf32, #tpu.memory_space<vmem>>, vector<8x8xf32>,
    %c0_82 = arith.constant 0 : index
    %c0_83 = arith.constant 0 : index
    %216 = vector.load %arg18[%c0_82, %c0_83] : memref<8x32xf32, #tpu.memory_space<vmem>>, vector<8x32xf32>
    %cst_84 = arith.constant dense<0.000000e+00> : vector<8x32xf32>
    %217 = tpu.matmul %216, %135, %cst_84 {dimension_numbers = #tpu.dot_dimension_numbers<[1], [0], [0], [1], [0, 0, 1, 1], [], []>} : vector<8x32xf32>, vector<32x32xf32>, vector<8x32xf32> -> vector<8x32xf32>
    %218 = vector.broadcast %136 : vector<1x32xf32> to vector<8x32xf32>
    %219 = arith.addf %217, %218 : vector<8x32xf32>
    %220 = arith.addf %127, %219 : vector<8x32xf32>
    %221 = vector.extract_strided_slice %14 {offsets = [2, 0], sizes = [1, 32], strides = [1, 1]} : vector<6x32xf32> to vector<1x32xf32>
    %222 = vector.extract_strided_slice %14 {offsets = [3, 0], sizes = [1, 32], strides = [1, 1]} : vector<6x32xf32> to vector<1x32xf32>
    %cst_85 = arith.constant dense<0.000000e+00> : vector<8xf32>
    %223 = vector.multi_reduction <add>, %220, %cst_85 [1] : vector<8x32xf32> to vector<8xf32>
    %224 = vector.shape_cast %223 : vector<8xf32> to vector<8x1xf32>
    %cst_86 = arith.constant 3.200000e+01 : f32
    %225 = vector.broadcast %cst_86 : f32 to vector<8x1xf32>
    %226 = arith.divf %224, %225 : vector<8x1xf32>
    %227 = vector.broadcast %226 : vector<8x1xf32> to vector<8x32xf32>
    %228 = arith.subf %220, %227 : vector<8x32xf32>
    %229 = arith.mulf %228, %228 : vector<8x32xf32>
    %cst_87 = arith.constant dense<0.000000e+00> : vector<8xf32>
    %230 = vector.multi_reduction <add>, %229, %cst_87 [1] : vector<8x32xf32> to vector<8xf32>
    %231 = vector.shape_cast %230 : vector<8xf32> to vector<8x1xf32>
    %cst_88 = arith.constant 3.200000e+01 : f32
    %232 = vector.broadcast %cst_88 : f32 to vector<8x1xf32>
    %233 = arith.divf %231, %232 : vector<8x1xf32>
    %234 = vector.broadcast %226 : vector<8x1xf32> to vector<8x32xf32>
    %235 = arith.subf %220, %234 : vector<8x32xf32>
    %cst_89 = arith.constant 9.99999974E-6 : f32
    %236 = vector.broadcast %cst_89 : f32 to vector<8x1xf32>
    %237 = arith.addf %233, %236 : vector<8x1xf32>
    %238 = math.rsqrt %237 : vector<8x1xf32>
    %239 = vector.broadcast %238 : vector<8x1xf32> to vector<8x32xf32>
    %240 = arith.mulf %235, %239 : vector<8x32xf32>
    %241 = vector.broadcast %221 : vector<1x32xf32> to vector<8x32xf32>
    %242 = arith.mulf %240, %241 : vector<8x32xf32>
    %243 = vector.broadcast %222 : vector<1x32xf32> to vector<8x32xf32>
    %244 = arith.addf %242, %243 : vector<8x32xf32>
    %c0_90 = arith.constant 0 : index
    %c0_91 = arith.constant 0 : index
    %c0_92 = arith.constant 0 : index
    %245 = vector.load %arg9[%c0_90, %c0_91, %c0_92] : memref<1x32x64xf32, #tpu.memory_space<vmem>>, vector<1x32x64xf32>
    %246 = vector.shape_cast %245 : vector<1x32x64xf32> to vector<32x64xf32>
    %cst_93 = arith.constant dense<0.000000e+00> : vector<8x64xf32>
    %247 = tpu.matmul %244, %246, %cst_93 {dimension_numbers = #tpu.dot_dimension_numbers<[1], [0], [0], [1], [0, 0, 1, 1], [], []>} : vector<8x32xf32>, vector<32x64xf32>, vector<8x64xf32> -> vector<8x64xf32>
    %c0_94 = arith.constant 0 : index
    %c0_95 = arith.constant 0 : index
    %c0_96 = arith.constant 0 : index
    %248 = vector.load %arg10[%c0_94, %c0_95, %c0_96] : memref<1x1x64xf32, #tpu.memory_space<vmem>>, vector<1x1x64xf32>
    %249 = vector.shape_cast %248 : vector<1x1x64xf32> to vector<1x64xf32>
    %250 = vector.broadcast %249 : vector<1x64xf32> to vector<8x64xf32>
    %251 = arith.addf %247, %250 : vector<8x64xf32>
    %cst_97 = arith.constant 0.000000e+00 : f32
    %252 = vector.broadcast %cst_97 : f32 to vector<8x64xf32>
    %253 = arith.maximumf %251, %252 : vector<8x64xf32>
    %c0_98 = arith.constant 0 : index
    %c0_99 = arith.constant 0 : index
    %c0_100 = arith.constant 0 : index
    %254 = vector.load %arg11[%c0_98, %c0_99, %c0_100] : memref<1x64x32xf32, #tpu.memory_space<vmem>>, vector<1x64x32xf32>
    %255 = vector.shape_cast %254 : vector<1x64x32xf32> to vector<64x32xf32>
    %cst_101 = arith.constant dense<0.000000e+00> : vector<8x32xf32>
    %256 = tpu.matmul %253, %255, %cst_101 {dimension_numbers = #tpu.dot_dimension_numbers<[1], [0], [0], [1], [0, 0, 1, 1], [], []>} : vector<8x64xf32>, vector<64x32xf32>, vector<8x32xf32> -> vector<8x32xf32>
    %c0_102 = arith.constant 0 : index
    %c0_103 = arith.constant 0 : index
    %c0_104 = arith.constant 0 : index
    %257 = vector.load %arg12[%c0_102, %c0_103, %c0_104] : memref<1x1x32xf32, #tpu.memory_space<vmem>>, vector<1x1x32xf32>
    %258 = vector.shape_cast %257 : vector<1x1x32xf32> to vector<1x32xf32>
    %259 = vector.broadcast %258 : vector<1x32xf32> to vector<8x32xf32>
    %260 = arith.addf %256, %259 : vector<8x32xf32>
    %261 = arith.addf %244, %260 : vector<8x32xf32>
    %262 = vector.extract_strided_slice %14 {offsets = [4, 0], sizes = [1, 32], strides = [1, 1]} : vector<6x32xf32> to vector<1x32xf32>
    %263 = vector.extract_strided_slice %14 {offsets = [5, 0], sizes = [1, 32], strides = [1, 1]} : vector<6x32xf32> to vector<1x32xf32>
    %cst_105 = arith.constant dense<0.000000e+00> : vector<8xf32>
    %264 = vector.multi_reduction <add>, %261, %cst_105 [1] : vector<8x32xf32> to vector<8xf32>
    %265 = vector.shape_cast %264 : vector<8xf32> to vector<8x1xf32>
    %cst_106 = arith.constant 3.200000e+01 : f32
    %266 = vector.broadcast %cst_106 : f32 to vector<8x1xf32>
    %267 = arith.divf %265, %266 : vector<8x1xf32>
    %268 = vector.broadcast %267 : vector<8x1xf32> to vector<8x32xf32>
    %269 = arith.subf %261, %268 : vector<8x32xf32>
    %270 = arith.mulf %269, %269 : vector<8x32xf32>
    %cst_107 = arith.constant dense<0.000000e+00> : vector<8xf32>
    %271 = vector.multi_reduction <add>, %270, %cst_107 [1] : vector<8x32xf32> to vector<8xf32>
    %272 = vector.shape_cast %271 : vector<8xf32> to vector<8x1xf32>
    %cst_108 = arith.constant 3.200000e+01 : f32
    %273 = vector.broadcast %cst_108 : f32 to vector<8x1xf32>
    %274 = arith.divf %272, %273 : vector<8x1xf32>
    %275 = vector.broadcast %267 : vector<8x1xf32> to vector<8x32xf32>
    %276 = arith.subf %261, %275 : vector<8x32xf32>
    %cst_109 = arith.constant 9.99999974E-6 : f32
    %277 = vector.broadcast %cst_109 : f32 to vector<8x1xf32>
    %278 = arith.addf %274, %277 : vector<8x1xf32>
    %279 = math.rsqrt %278 : vector<8x1xf32>
    %280 = vector.broadcast %279 : vector<8x1xf32> to vector<8x32xf32>
    %281 = arith.mulf %276, %280 : vector<8x32xf32>
    %282 = vector.broadcast %262 : vector<1x32xf32> to vector<8x32xf32>
    %283 = arith.mulf %281, %282 : vector<8x32xf32>
    %284 = vector.broadcast %263 : vector<1x32xf32> to vector<8x32xf32>
    %285 = arith.addf %283, %284 : vector<8x32xf32>
    %c0_110 = arith.constant 0 : index
    %c0_111 = arith.constant 0 : index
    %286 = vector.load %arg16[%c0_110, %c0_111] : memref<8x32xf32, #tpu.memory_space<vmem>>, vector<8x32xf32>
    tpu.vector_store %arg16[%c0_110, %c0_111], %285 {strides = array<i32>} : memref<8x32xf32, #tpu.memory_space<vmem>>, vector<8x32xf32>,
    %c0_112 = arith.constant 0 : index
    %c0_113 = arith.constant 0 : index
    %287 = vector.load %arg14[%c0_112, %c0_113] : memref<2x32xf32, #tpu.memory_space<vmem>>, vector<2x32xf32>
    %288 = vector.extract_strided_slice %287 {offsets = [0, 0], sizes = [1, 32], strides = [1, 1]} : vector<2x32xf32> to vector<1x32xf32>
    %289 = vector.extract_strided_slice %287 {offsets = [1, 0], sizes = [1, 32], strides = [1, 1]} : vector<2x32xf32> to vector<1x32xf32>
    %cst_114 = arith.constant dense<0.000000e+00> : vector<8xf32>
    %290 = vector.multi_reduction <add>, %285, %cst_114 [1] : vector<8x32xf32> to vector<8xf32>
    %291 = vector.shape_cast %290 : vector<8xf32> to vector<8x1xf32>
    %cst_115 = arith.constant 3.200000e+01 : f32
    %292 = vector.broadcast %cst_115 : f32 to vector<8x1xf32>
    %293 = arith.divf %291, %292 : vector<8x1xf32>
    %294 = vector.broadcast %293 : vector<8x1xf32> to vector<8x32xf32>
    %295 = arith.subf %285, %294 : vector<8x32xf32>
    %296 = arith.mulf %295, %295 : vector<8x32xf32>
    %cst_116 = arith.constant dense<0.000000e+00> : vector<8xf32>
    %297 = vector.multi_reduction <add>, %296, %cst_116 [1] : vector<8x32xf32> to vector<8xf32>
    %298 = vector.shape_cast %297 : vector<8xf32> to vector<8x1xf32>
    %cst_117 = arith.constant 3.200000e+01 : f32
    %299 = vector.broadcast %cst_117 : f32 to vector<8x1xf32>
    %300 = arith.divf %298, %299 : vector<8x1xf32>
    %301 = vector.broadcast %293 : vector<8x1xf32> to vector<8x32xf32>
    %302 = arith.subf %285, %301 : vector<8x32xf32>
    %cst_118 = arith.constant 9.99999974E-6 : f32
    %303 = vector.broadcast %cst_118 : f32 to vector<8x1xf32>
    %304 = arith.addf %300, %303 : vector<8x1xf32>
    %305 = math.rsqrt %304 : vector<8x1xf32>
    %306 = vector.broadcast %305 : vector<8x1xf32> to vector<8x32xf32>
    %307 = arith.mulf %302, %306 : vector<8x32xf32>
    %308 = vector.broadcast %288 : vector<1x32xf32> to vector<8x32xf32>
    %309 = arith.mulf %307, %308 : vector<8x32xf32>
    %310 = vector.broadcast %289 : vector<1x32xf32> to vector<8x32xf32>
    %311 = arith.addf %309, %310 : vector<8x32xf32>
    %c0_119 = arith.constant 0 : index
    %c0_120 = arith.constant 0 : index
    %c0_121 = arith.constant 0 : index
    %312 = vector.load %arg15[%c0_119, %c0_120, %c0_121] : memref<1x8x32xf32, #tpu.memory_space<vmem>>, vector<1x8x32xf32>
    %313 = vector.shape_cast %312 : vector<1x8x32xf32> to vector<8x32xf32>
    %314 = vector.shape_cast %311 : vector<8x32xf32> to vector<1x8x32xf32>
    tpu.vector_store %arg15[%c0_119, %c0_120, %c0_121], %314 {strides = array<i32>} : memref<1x8x32xf32, #tpu.memory_space<vmem>>, vector<1x8x32xf32>,
    return
  }
  func.func @transform_0(%arg0: i32, %arg1: i32) -> (i32, i32) {
    %c0_i32 = arith.constant 0 : i32
    %c0_i32_0 = arith.constant 0 : i32
    return %arg0, %c0_i32 : i32, i32
  }
  func.func @transform_1(%arg0: i32, %arg1: i32) -> (i32, i32) {
    %c0_i32 = arith.constant 0 : i32
    %c0_i32_0 = arith.constant 0 : i32
    return %arg0, %c0_i32 : i32, i32
  }
  func.func @transform_2(%arg0: i32, %arg1: i32) -> (i32, i32) {
    %c0_i32 = arith.constant 0 : i32
    %c0_i32_0 = arith.constant 0 : i32
    return %arg0, %c0_i32 : i32, i32
  }
  func.func @transform_3(%arg0: i32, %arg1: i32) -> (i32, i32, i32) {
    %c0_i32 = arith.constant 0 : i32
    %c0_i32_0 = arith.constant 0 : i32
    %c0_i32_1 = arith.constant 0 : i32
    return %arg1, %c0_i32, %c0_i32_0 : i32, i32, i32
  }
  func.func @transform_4(%arg0: i32, %arg1: i32) -> (i32, i32, i32) {
    %c0_i32 = arith.constant 0 : i32
    %c0_i32_0 = arith.constant 0 : i32
    %c0_i32_1 = arith.constant 0 : i32
    return %arg1, %c0_i32, %c0_i32_0 : i32, i32, i32
  }
  func.func @transform_5(%arg0: i32, %arg1: i32) -> (i32, i32, i32) {
    %c0_i32 = arith.constant 0 : i32
    %c0_i32_0 = arith.constant 0 : i32
    %c0_i32_1 = arith.constant 0 : i32
    return %arg1, %c0_i32, %c0_i32_0 : i32, i32, i32
  }
  func.func @transform_6(%arg0: i32, %arg1: i32) -> (i32, i32, i32) {
    %c0_i32 = arith.constant 0 : i32
    %c0_i32_0 = arith.constant 0 : i32
    %c0_i32_1 = arith.constant 0 : i32
    return %arg1, %c0_i32, %c0_i32_0 : i32, i32, i32
  }
  func.func @transform_7(%arg0: i32, %arg1: i32) -> (i32, i32, i32) {
    %c0_i32 = arith.constant 0 : i32
    %c0_i32_0 = arith.constant 0 : i32
    %c0_i32_1 = arith.constant 0 : i32
    return %arg1, %c0_i32, %c0_i32_0 : i32, i32, i32
  }
  func.func @transform_8(%arg0: i32, %arg1: i32) -> (i32, i32, i32) {
    %c0_i32 = arith.constant 0 : i32
    %c0_i32_0 = arith.constant 0 : i32
    %c0_i32_1 = arith.constant 0 : i32
    return %arg1, %c0_i32, %c0_i32_0 : i32, i32, i32
  }
  func.func @transform_9(%arg0: i32, %arg1: i32) -> (i32, i32, i32) {
    %c0_i32 = arith.constant 0 : i32
    %c0_i32_0 = arith.constant 0 : i32
    %c0_i32_1 = arith.constant 0 : i32
    return %arg1, %c0_i32, %c0_i32_0 : i32, i32, i32
  }
  func.func @transform_10(%arg0: i32, %arg1: i32) -> (i32, i32, i32) {
    %c0_i32 = arith.constant 0 : i32
    %c0_i32_0 = arith.constant 0 : i32
    %c0_i32_1 = arith.constant 0 : i32
    return %arg1, %c0_i32, %c0_i32_0 : i32, i32, i32
  }
  func.func @transform_11(%arg0: i32, %arg1: i32) -> (i32, i32, i32) {
    %c0_i32 = arith.constant 0 : i32
    %c0_i32_0 = arith.constant 0 : i32
    %c0_i32_1 = arith.constant 0 : i32
    return %arg1, %c0_i32, %c0_i32_0 : i32, i32, i32
  }
  func.func @transform_12(%arg0: i32, %arg1: i32) -> (i32, i32) {
    %c0_i32 = arith.constant 0 : i32
    %c0_i32_0 = arith.constant 0 : i32
    %c0_i32_1 = arith.constant 0 : i32
    return %c0_i32, %c0_i32_0 : i32, i32
  }
  func.func @transform_13(%arg0: i32, %arg1: i32) -> (i32, i32, i32) {
    %c0_i32 = arith.constant 0 : i32
    %c0_i32_0 = arith.constant 0 : i32
    return %arg1, %arg0, %c0_i32 : i32, i32, i32
  }
}

</mosaic_0001>

<llo_original>
// kernel: tpu_custom_call.1
$region0: #{tpu_custom_call.1}
  #allocation0 [shape = 'u32[]', space=smem, size = 0x4, offset = 0x4, fixed_abs, tag = 'smem constant byte address 0x4 - core index']
  #allocation1 [shape = 'u32[144,128]{1,0:T(1,128)}', space=vmem, size = 0x12000, scoped, tag = 'internal scratch']
  #allocation2 [shape = 'f32[8,32]{1,0:T(8,128)}', space=vmem, size = 0x1000, scoped, tag = 'scratch operand']
  #allocation3 [shape = 'f32[2,16,32]{2,1,0:T(8,128)}', space=vmem, size = 0x4000, scoped, tag = 'scratch operand']
  #allocation4 [shape = 'f32[8,32]{1,0:T(8,128)}', space=vmem, size = 0x1000, scoped, tag = 'scratch operand']
  %s0 = inlined_call_operand.vmem [shape: f32[32,32], index: 0, kind: input, shape index: {}]
  %s1 = inlined_call_operand.vmem [shape: f32[32,32], index: 1, kind: input, shape index: {}]
  %s2 = inlined_call_operand.vmem [shape: f32[16,32], index: 2, kind: input, shape index: {}]
  %s3 = inlined_call_operand.vmem [shape: f32[2,64,96], index: 3, kind: input, shape index: {}]
  %s4 = inlined_call_operand.vmem [shape: f32[2,2,96], index: 4, kind: input, shape index: {}]
  %s5 = inlined_call_operand.vmem [shape: f32[2,64,32], index: 5, kind: input, shape index: {}]
  %s6 = inlined_call_operand.vmem [shape: f32[2,2,32], index: 6, kind: input, shape index: {}]
  %s7 = inlined_call_operand.vmem [shape: f32[2,32,64], index: 7, kind: input, shape index: {}]
  %s8 = inlined_call_operand.vmem [shape: f32[2,1,64], index: 8, kind: input, shape index: {}]
  %s9 = inlined_call_operand.vmem [shape: f32[2,64,32], index: 9, kind: input, shape index: {}]
  %s10 = inlined_call_operand.vmem [shape: f32[2,1,32], index: 10, kind: input, shape index: {}]
  %s11 = inlined_call_operand.vmem [shape: f32[2,6,32], index: 11, kind: input, shape index: {}]
  %s12 = inlined_call_operand.vmem [shape: f32[2,32], index: 12, kind: input, shape index: {}]
  %s13 = inlined_call_operand.hbm [shape: f32[2,16,32], index: 13, kind: output, shape index: {}]
  %s14 = sld [smem:[#allocation0]]
  $region89: #{tpu_custom_call.1} parent=0
    _
  %s16 = ssub.s32 1, %s14
  %s17 = scalar_select 0, %s16, %s14
  $region1: #{tpu_custom_call.1} parent=0
    #allocation5 [shape = 'u8[8192]{0}', space=vmem, size = 0x2000, scoped, tag = 'output window, operand 0']
    #allocation6 [shape = 's32[2]{0}', space=sflag, size = 0x8, scoped, tag = 'scoped memory for tpu_custom_call.1']
    %18 = vsyncpa [#allocation6], 0
    %s19 = scalar_lea.sflag [#allocation6], 1
    %20 = vsyncpa %s19, 0
    loop: start=0, step=1, limit=6
    $region2: #{tpu_custom_call.1} parent=1 // loop_pre_header
      _
    $region3: #{tpu_custom_call.1} parent=1 // loop_header
      %s22 = sphi 0, %s26
      %p23 = scmp.ge.s32.totalorder %s22, 6
      %s29 = sphi 0, %s41
      %s30 = sphi 0, %s37
      %s31 = sphi 0, %s29
      %s32 = sphi 0, %s30
      %s33 = sphi 0, %s31
      %s34 = sphi 0, %s32
      %s44 = sphi 0, %s46
      %s47 = sphi 0, %s44
      %s48 = sphi 0, %s47
      %s64 = sphi 0, %s48
      %s70 = sphi 0, %s72
      %s73 = sphi 0, %s70
      %s74 = sphi 0, %s73
      %s90 = sphi 0, %s74
      %s96 = sphi 0, %s98
      %s99 = sphi 0, %s96
      %s100 = sphi 0, %s99
      %s116 = sphi 0, %s100
      %s122 = sphi 0, %s124
      %s125 = sphi 0, %s122
      %s126 = sphi 0, %s125
      %s142 = sphi 0, %s126
      %s148 = sphi 0, %s150
      %s151 = sphi 0, %s148
      %s152 = sphi 0, %s151
      %s168 = sphi 0, %s152
      %s174 = sphi 0, %s176
      %s177 = sphi 0, %s174
      %s178 = sphi 0, %s177
      %s194 = sphi 0, %s178
      %s200 = sphi 0, %s202
      %s203 = sphi 0, %s200
      %s204 = sphi 0, %s203
      %s220 = sphi 0, %s204
      %s226 = sphi 0, %s228
      %s229 = sphi 0, %s226
      %s230 = sphi 0, %s229
      %s246 = sphi 0, %s230
      %s252 = sphi 0, %s254
      %s255 = sphi 0, %s252
      %s256 = sphi 0, %s255
      %s272 = sphi 0, %s256
      %s278 = sphi 0, %s280
      %s281 = sphi 0, %s278
      %s282 = sphi 0, %s281
      %s298 = sphi 0, %s282
      %s304 = sphi 0, %s306
      %s307 = sphi 0, %s304
      %s308 = sphi 0, %s307
      %s324 = sphi 0, %s308
      %s330 = sphi 0, %s332
      %s333 = sphi 0, %s330
      %s334 = sphi 0, %s333
      %s350 = sphi 0, %s334
      %s354 = sphi 0, %s354
      %s356 = sphi 0, %s354
      %s357 = sphi 0, %s356
      %s371 = sphi 0, %s357
      %s379 = sphi 0, %s381
      %s382 = sphi 0, %s379
      %s383 = sphi 0, %s382
      %s399 = sphi 0, %s383
    $region4: #{tpu_custom_call.1} parent=1 // loop_header_branch
      %25 = sbr.rel (%p23) target = $region8
    $region5: #{tpu_custom_call.1} parent=1 // loop_body
      %s27 = ssub.s32 %s22, 1
      %s28 = ssub.s32 %s22, 2
      %s35 = sadd.s32 1, %s30
      %p36 = scmp.ge.s32.totalorder %s35, 2
      %s37 = scalar_select %p36, 0, %s35
      %s38 = sadd.s32 1, %s29
      %s39 = scalar_select %p36, %s38, %s29
      %p40 = scmp.ge.s32.totalorder %s39, 2
      %s41 = scalar_select %p40, 0, %s39
      %s42 = ssub.s32 %s29, %s41
      %p43 = scmp.eq.s32.totalorder %s42, 0
      %s45 = sadd.s32 %s44, 1
      %s46 = scalar_select %p43, %s44, %s45
      %p49 = pneg %p43
      %p50 = scmp.eq.s32.totalorder %s22, 3
      %p51 = por %p49, %p50
      %p52 = scmp.ne.s32.totalorder %s44, %s47
      %p53 = scmp.eq.s32.totalorder %s22, 0
      %p54 = por %p52, %p53
      %p55 = scmp.ne.s32.totalorder %s44, %s47
      %p56 = scmp.eq.s32.totalorder %s27, 3
      %p57 = por %p55, %p56
      %p58 = scmp.ne.s32.totalorder %s47, %s48
      %p59 = scmp.eq.s32.totalorder %s27, 0
      %p60 = por %p58, %p59
      %p61 = scmp.ne.s32.totalorder %s47, %s48
      %p62 = scmp.eq.s32.totalorder %s28, 3
      %p63 = por %p61, %p62
      %p65 = scmp.ne.s32.totalorder %s48, %s64
      %p66 = scmp.eq.s32.totalorder %s28, 0
      %p67 = por %p65, %p66
      %s68 = ssub.s32 %s29, %s41
      %p69 = scmp.eq.s32.totalorder %s68, 0
      %s71 = sadd.s32 %s70, 1
      %s72 = scalar_select %p69, %s70, %s71
      %p75 = pneg %p69
      %p76 = scmp.eq.s32.totalorder %s22, 3
      %p77 = por %p75, %p76
      %p78 = scmp.ne.s32.totalorder %s70, %s73
      %p79 = scmp.eq.s32.totalorder %s22, 0
      %p80 = por %p78, %p79
      %p81 = scmp.ne.s32.totalorder %s70, %s73
      %p82 = scmp.eq.s32.totalorder %s27, 3
      %p83 = por %p81, %p82
      %p84 = scmp.ne.s32.totalorder %s73, %s74
      %p85 = scmp.eq.s32.totalorder %s27, 0
      %p86 = por %p84, %p85
      %p87 = scmp.ne.s32.totalorder %s73, %s74
      %p88 = scmp.eq.s32.totalorder %s28, 3
      %p89 = por %p87, %p88
      %p91 = scmp.ne.s32.totalorder %s74, %s90
      %p92 = scmp.eq.s32.totalorder %s28, 0
      %p93 = por %p91, %p92
      %s94 = ssub.s32 %s29, %s41
      %p95 = scmp.eq.s32.totalorder %s94, 0
      %s97 = sadd.s32 %s96, 1
      %s98 = scalar_select %p95, %s96, %s97
      %p101 = pneg %p95
      %p102 = scmp.eq.s32.totalorder %s22, 3
      %p103 = por %p101, %p102
      %p104 = scmp.ne.s32.totalorder %s96, %s99
      %p105 = scmp.eq.s32.totalorder %s22, 0
      %p106 = por %p104, %p105
      %p107 = scmp.ne.s32.totalorder %s96, %s99
      %p108 = scmp.eq.s32.totalorder %s27, 3
      %p109 = por %p107, %p108
      %p110 = scmp.ne.s32.totalorder %s99, %s100
      %p111 = scmp.eq.s32.totalorder %s27, 0
      %p112 = por %p110, %p111
      %p113 = scmp.ne.s32.totalorder %s99, %s100
      %p114 = scmp.eq.s32.totalorder %s28, 3
      %p115 = por %p113, %p114
      %p117 = scmp.ne.s32.totalorder %s100, %s116
      %p118 = scmp.eq.s32.totalorder %s28, 0
      %p119 = por %p117, %p118
      %s120 = ssub.s32 %s30, %s37
      %p121 = scmp.eq.s32.totalorder %s120, 0
      %s123 = sadd.s32 %s122, 1
      %s124 = scalar_select %p121, %s122, %s123
      %p127 = pneg %p121
      %p128 = scmp.eq.s32.totalorder %s22, 3
      %p129 = por %p127, %p128
      %p130 = scmp.ne.s32.totalorder %s122, %s125
      %p131 = scmp.eq.s32.totalorder %s22, 0
      %p132 = por %p130, %p131
      %p133 = scmp.ne.s32.totalorder %s122, %s125
      %p134 = scmp.eq.s32.totalorder %s27, 3
      %p135 = por %p133, %p134
      %p136 = scmp.ne.s32.totalorder %s125, %s126
      %p137 = scmp.eq.s32.totalorder %s27, 0
      %p138 = por %p136, %p137
      %p139 = scmp.ne.s32.totalorder %s125, %s126
      %p140 = scmp.eq.s32.totalorder %s28, 3
      %p141 = por %p139, %p140
      %p143 = scmp.ne.s32.totalorder %s126, %s142
      %p144 = scmp.eq.s32.totalorder %s28, 0
      %p145 = por %p143, %p144
      %s146 = ssub.s32 %s30, %s37
      %p147 = scmp.eq.s32.totalorder %s146, 0
      %s149 = sadd.s32 %s148, 1
      %s150 = scalar_select %p147, %s148, %s149
      %p153 = pneg %p147
      %p154 = scmp.eq.s32.totalorder %s22, 3
      %p155 = por %p153, %p154
      %p156 = scmp.ne.s32.totalorder %s148, %s151
      %p157 = scmp.eq.s32.totalorder %s22, 0
      %p158 = por %p156, %p157
      %p159 = scmp.ne.s32.totalorder %s148, %s151
      %p160 = scmp.eq.s32.totalorder %s27, 3
      %p161 = por %p159, %p160
      %p162 = scmp.ne.s32.totalorder %s151, %s152
      %p163 = scmp.eq.s32.totalorder %s27, 0
      %p164 = por %p162, %p163
      %p165 = scmp.ne.s32.totalorder %s151, %s152
      %p166 = scmp.eq.s32.totalorder %s28, 3
      %p167 = por %p165, %p166
      %p169 = scmp.ne.s32.totalorder %s152, %s168
      %p170 = scmp.eq.s32.totalorder %s28, 0
      %p171 = por %p169, %p170
      %s172 = ssub.s32 %s30, %s37
      %p173 = scmp.eq.s32.totalorder %s172, 0
      %s175 = sadd.s32 %s174, 1
      %s176 = scalar_select %p173, %s174, %s175
      %p179 = pneg %p173
      %p180 = scmp.eq.s32.totalorder %s22, 3
      %p181 = por %p179, %p180
      %p182 = scmp.ne.s32.totalorder %s174, %s177
      %p183 = scmp.eq.s32.totalorder %s22, 0
      %p184 = por %p182, %p183
      %p185 = scmp.ne.s32.totalorder %s174, %s177
      %p186 = scmp.eq.s32.totalorder %s27, 3
      %p187 = por %p185, %p186
      %p188 = scmp.ne.s32.totalorder %s177, %s178
      %p189 = scmp.eq.s32.totalorder %s27, 0
      %p190 = por %p188, %p189
      %p191 = scmp.ne.s32.totalorder %s177, %s178
      %p192 = scmp.eq.s32.totalorder %s28, 3
      %p193 = por %p191, %p192
      %p195 = scmp.ne.s32.totalorder %s178, %s194
      %p196 = scmp.eq.s32.totalorder %s28, 0
      %p197 = por %p195, %p196
      %s198 = ssub.s32 %s30, %s37
      %p199 = scmp.eq.s32.totalorder %s198, 0
      %s201 = sadd.s32 %s200, 1
      %s202 = scalar_select %p199, %s200, %s201
      %p205 = pneg %p199
      %p206 = scmp.eq.s32.totalorder %s22, 3
      %p207 = por %p205, %p206
      %p208 = scmp.ne.s32.totalorder %s200, %s203
      %p209 = scmp.eq.s32.totalorder %s22, 0
      %p210 = por %p208, %p209
      %p211 = scmp.ne.s32.totalorder %s200, %s203
      %p212 = scmp.eq.s32.totalorder %s27, 3
      %p213 = por %p211, %p212
      %p214 = scmp.ne.s32.totalorder %s203, %s204
      %p215 = scmp.eq.s32.totalorder %s27, 0
      %p216 = por %p214, %p215
      %p217 = scmp.ne.s32.totalorder %s203, %s204
      %p218 = scmp.eq.s32.totalorder %s28, 3
      %p219 = por %p217, %p218
      %p221 = scmp.ne.s32.totalorder %s204, %s220
      %p222 = scmp.eq.s32.totalorder %s28, 0
      %p223 = por %p221, %p222
      %s224 = ssub.s32 %s30, %s37
      %p225 = scmp.eq.s32.totalorder %s224, 0
      %s227 = sadd.s32 %s226, 1
      %s228 = scalar_select %p225, %s226, %s227
      %p231 = pneg %p225
      %p232 = scmp.eq.s32.totalorder %s22, 3
      %p233 = por %p231, %p232
      %p234 = scmp.ne.s32.totalorder %s226, %s229
      %p235 = scmp.eq.s32.totalorder %s22, 0
      %p236 = por %p234, %p235
      %p237 = scmp.ne.s32.totalorder %s226, %s229
      %p238 = scmp.eq.s32.totalorder %s27, 3
      %p239 = por %p237, %p238
      %p240 = scmp.ne.s32.totalorder %s229, %s230
      %p241 = scmp.eq.s32.totalorder %s27, 0
      %p242 = por %p240, %p241
      %p243 = scmp.ne.s32.totalorder %s229, %s230
      %p244 = scmp.eq.s32.totalorder %s28, 3
      %p245 = por %p243, %p244
      %p247 = scmp.ne.s32.totalorder %s230, %s246
      %p248 = scmp.eq.s32.totalorder %s28, 0
      %p249 = por %p247, %p248
      %s250 = ssub.s32 %s30, %s37
      %p251 = scmp.eq.s32.totalorder %s250, 0
      %s253 = sadd.s32 %s252, 1
      %s254 = scalar_select %p251, %s252, %s253
      %p257 = pneg %p251
      %p258 = scmp.eq.s32.totalorder %s22, 3
      %p259 = por %p257, %p258
      %p260 = scmp.ne.s32.totalorder %s252, %s255
      %p261 = scmp.eq.s32.totalorder %s22, 0
      %p262 = por %p260, %p261
      %p263 = scmp.ne.s32.totalorder %s252, %s255
      %p264 = scmp.eq.s32.totalorder %s27, 3
      %p265 = por %p263, %p264
      %p266 = scmp.ne.s32.totalorder %s255, %s256
      %p267 = scmp.eq.s32.totalorder %s27, 0
      %p268 = por %p266, %p267
      %p269 = scmp.ne.s32.totalorder %s255, %s256
      %p270 = scmp.eq.s32.totalorder %s28, 3
      %p271 = por %p269, %p270
      %p273 = scmp.ne.s32.totalorder %s256, %s272
      %p274 = scmp.eq.s32.totalorder %s28, 0
      %p275 = por %p273, %p274
      %s276 = ssub.s32 %s30, %s37
      %p277 = scmp.eq.s32.totalorder %s276, 0
      %s279 = sadd.s32 %s278, 1
      %s280 = scalar_select %p277, %s278, %s279
      %p283 = pneg %p277
      %p284 = scmp.eq.s32.totalorder %s22, 3
      %p285 = por %p283, %p284
      %p286 = scmp.ne.s32.totalorder %s278, %s281
      %p287 = scmp.eq.s32.totalorder %s22, 0
      %p288 = por %p286, %p287
      %p289 = scmp.ne.s32.totalorder %s278, %s281
      %p290 = scmp.eq.s32.totalorder %s27, 3
      %p291 = por %p289, %p290
      %p292 = scmp.ne.s32.totalorder %s281, %s282
      %p293 = scmp.eq.s32.totalorder %s27, 0
      %p294 = por %p292, %p293
      %p295 = scmp.ne.s32.totalorder %s281, %s282
      %p296 = scmp.eq.s32.totalorder %s28, 3
      %p297 = por %p295, %p296
      %p299 = scmp.ne.s32.totalorder %s282, %s298
      %p300 = scmp.eq.s32.totalorder %s28, 0
      %p301 = por %p299, %p300
      %s302 = ssub.s32 %s30, %s37
      %p303 = scmp.eq.s32.totalorder %s302, 0
      %s305 = sadd.s32 %s304, 1
      %s306 = scalar_select %p303, %s304, %s305
      %p309 = pneg %p303
      %p310 = scmp.eq.s32.totalorder %s22, 3
      %p311 = por %p309, %p310
      %p312 = scmp.ne.s32.totalorder %s304, %s307
      %p313 = scmp.eq.s32.totalorder %s22, 0
      %p314 = por %p312, %p313
      %p315 = scmp.ne.s32.totalorder %s304, %s307
      %p316 = scmp.eq.s32.totalorder %s27, 3
      %p317 = por %p315, %p316
      %p318 = scmp.ne.s32.totalorder %s307, %s308
      %p319 = scmp.eq.s32.totalorder %s27, 0
      %p320 = por %p318, %p319
      %p321 = scmp.ne.s32.totalorder %s307, %s308
      %p322 = scmp.eq.s32.totalorder %s28, 3
      %p323 = por %p321, %p322
      %p325 = scmp.ne.s32.totalorder %s308, %s324
      %p326 = scmp.eq.s32.totalorder %s28, 0
      %p327 = por %p325, %p326
      %s328 = ssub.s32 %s30, %s37
      %p329 = scmp.eq.s32.totalorder %s328, 0
      %s331 = sadd.s32 %s330, 1
      %s332 = scalar_select %p329, %s330, %s331
      %p335 = pneg %p329
      %p336 = scmp.eq.s32.totalorder %s22, 3
      %p337 = por %p335, %p336
      %p338 = scmp.ne.s32.totalorder %s330, %s333
      %p339 = scmp.eq.s32.totalorder %s22, 0
      %p340 = por %p338, %p339
      %p341 = scmp.ne.s32.totalorder %s330, %s333
      %p342 = scmp.eq.s32.totalorder %s27, 3
      %p343 = por %p341, %p342
      %p344 = scmp.ne.s32.totalorder %s333, %s334
      %p345 = scmp.eq.s32.totalorder %s27, 0
      %p346 = por %p344, %p345
      %p347 = scmp.ne.s32.totalorder %s333, %s334
      %p348 = scmp.eq.s32.totalorder %s28, 3
      %p349 = por %p347, %p348
      %p351 = scmp.ne.s32.totalorder %s334, %s350
      %p352 = scmp.eq.s32.totalorder %s28, 0
      %p353 = por %p351, %p352
      %s355 = sadd.s32 %s354, 1
      %p358 = scmp.eq.s32.totalorder %s22, 3
      %p359 = scmp.ne.s32.totalorder %s354, %s356
      %p360 = scmp.eq.s32.totalorder %s22, 0
      %p361 = por %p359, %p360
      %p362 = scmp.ne.s32.totalorder %s354, %s356
      %p363 = scmp.eq.s32.totalorder %s27, 3
      %p364 = por %p362, %p363
      %p365 = scmp.ne.s32.totalorder %s356, %s357
      %p366 = scmp.eq.s32.totalorder %s27, 0
      %p367 = por %p365, %p366
      %p368 = scmp.ne.s32.totalorder %s356, %s357
      %p369 = scmp.eq.s32.totalorder %s28, 3
      %p370 = por %p368, %p369
      %p372 = scmp.ne.s32.totalorder %s357, %s371
      %p373 = scmp.eq.s32.totalorder %s28, 0
      %p374 = por %p372, %p373
      %s375 = ssub.s32 %s30, %s37
      %s376 = ssub.s32 %s29, %s41
      %s377 = sor.u32 %s375, %s376
      %p378 = scmp.eq.s32.totalorder %s377, 0
      %s380 = sadd.s32 %s379, 1
      %s381 = scalar_select %p378, %s379, %s380
      %p384 = pneg %p378
      %p385 = scmp.eq.s32.totalorder %s22, 3
      %p386 = por %p384, %p385
      %p387 = scmp.ne.s32.totalorder %s379, %s382
      %p388 = scmp.eq.s32.totalorder %s22, 0
      %p389 = por %p387, %p388
      %p390 = scmp.ne.s32.totalorder %s379, %s382
      %p391 = scmp.eq.s32.totalorder %s27, 3
      %p392 = por %p390, %p391
      %p393 = scmp.ne.s32.totalorder %s382, %s383
      %p394 = scmp.eq.s32.totalorder %s27, 0
      %p395 = por %p393, %p394
      %p396 = scmp.ne.s32.totalorder %s382, %s383
      %p397 = scmp.eq.s32.totalorder %s28, 3
      %p398 = por %p396, %p397
      %p400 = scmp.ne.s32.totalorder %s383, %s399
      %p401 = scmp.eq.s32.totalorder %s28, 0
      %p402 = por %p400, %p401
      %p403 = scmp.le.s32.totalorder 1, %s22
      %p404 = scmp.lt.s32.totalorder %s22, 5
      %p405 = pnand %p403, %p404
      %p406 = pneg %p405
      // Predicated region
      $region9: #{tpu_custom_call.1} parent=5 // pred_check
        _
      $region10: #{tpu_custom_call.1} parent=5 // pred_check_branch
        %408 = sbr.rel (%p405) target = $region12
      $region11: #{tpu_custom_call.1} parent=5 // pred_region
        %s409 = ssub.s32 %s22, 1
        // Predicated region
        $region13: #{tpu_custom_call.1} parent=11 // pred_check
          %p410 = pneg %p367
        $region14: #{tpu_custom_call.1} parent=11 // pred_check_branch
          %412 = sbr.rel (%p410) target = $region16
        $region15: #{tpu_custom_call.1} parent=11 // pred_region
          _
        $region16: #{tpu_custom_call.1} parent=11 // pred_fallthru
          _
      $region12: #{tpu_custom_call.1} parent=5 // pred_fallthru
        _
      %p413 = scmp.lt.s32.totalorder %s22, 4
      // Predicated region
      $region17: #{tpu_custom_call.1} parent=5 // pred_check
        %p414 = pneg %p413
      $region18: #{tpu_custom_call.1} parent=5 // pred_check_branch
        %416 = sbr.rel (%p414) target = $region20
      $region19: #{tpu_custom_call.1} parent=5 // pred_region
        // Predicated region
        $region21: #{tpu_custom_call.1} parent=19 // pred_check
          %p417 = pneg %p54
        $region22: #{tpu_custom_call.1} parent=19 // pred_check_branch
          %419 = sbr.rel (%p417) target = $region24
        $region23: #{tpu_custom_call.1} parent=19 // pred_region
          %s420 = smul.u32 2, %s29
          %p421 = scmp.lt.s32.totalorder %s420, 3
          %s422 = scalar_select %p421, %s420, 3
          %s423 = smul.addr %s422, 8
          %s424 = scalar_lea.vmem %s0, %s423
          %s425 = smul.u32 2, %s29
        $region24: #{tpu_custom_call.1} parent=19 // pred_fallthru
          _
        // Predicated region
        $region25: #{tpu_custom_call.1} parent=19 // pred_check
          %p426 = pneg %p80
        $region26: #{tpu_custom_call.1} parent=19 // pred_check_branch
          %428 = sbr.rel (%p426) target = $region28
        $region27: #{tpu_custom_call.1} parent=19 // pred_region
          %s429 = smul.u32 2, %s29
          %p430 = scmp.lt.s32.totalorder %s429, 3
          %s431 = scalar_select %p430, %s429, 3
          %s432 = smul.addr %s431, 8
          %s433 = scalar_lea.vmem %s1, %s432
          %s434 = smul.u32 2, %s29
        $region28: #{tpu_custom_call.1} parent=19 // pred_fallthru
          _
        // Predicated region
        $region29: #{tpu_custom_call.1} parent=19 // pred_check
          %p435 = pneg %p106
        $region30: #{tpu_custom_call.1} parent=19 // pred_check_branch
          %437 = sbr.rel (%p435) target = $region32
        $region31: #{tpu_custom_call.1} parent=19 // pred_region
          %p438 = scmp.lt.s32.totalorder %s29, 1
          %s439 = scalar_select %p438, %s29, 1
          %s440 = smul.addr %s439, 8
          %s441 = scalar_lea.vmem %s2, %s440
        $region32: #{tpu_custom_call.1} parent=19 // pred_fallthru
          _
        // Predicated region
        $region33: #{tpu_custom_call.1} parent=19 // pred_check
          %p442 = pneg %p132
        $region34: #{tpu_custom_call.1} parent=19 // pred_check_branch
          %444 = sbr.rel (%p442) target = $region36
        $region35: #{tpu_custom_call.1} parent=19 // pred_region
          %p445 = scmp.lt.s32.totalorder %s30, 1
          %s446 = scalar_select %p445, %s30, 1
          %s447 = smul.addr %s446, 8
          %s448 = smul.addr %s447, 8
          %s449 = scalar_lea.vmem %s3, %s448
        $region36: #{tpu_custom_call.1} parent=19 // pred_fallthru
          _
        // Predicated region
        $region37: #{tpu_custom_call.1} parent=19 // pred_check
          %p450 = pneg %p158
        $region38: #{tpu_custom_call.1} parent=19 // pred_check_branch
          %452 = sbr.rel (%p450) target = $region40
        $region39: #{tpu_custom_call.1} parent=19 // pred_region
          %p453 = scmp.lt.s32.totalorder %s30, 1
          %s454 = scalar_select %p453, %s30, 1
          %s455 = smul.addr %s454, 2
          %s456 = scalar_lea.vmem %s4, %s455
        $region40: #{tpu_custom_call.1} parent=19 // pred_fallthru
          _
        // Predicated region
        $region41: #{tpu_custom_call.1} parent=19 // pred_check
          %p457 = pneg %p184
        $region42: #{tpu_custom_call.1} parent=19 // pred_check_branch
          %459 = sbr.rel (%p457) target = $region44
        $region43: #{tpu_custom_call.1} parent=19 // pred_region
          %p460 = scmp.lt.s32.totalorder %s30, 1
          %s461 = scalar_select %p460, %s30, 1
          %s462 = smul.addr %s461, 8
          %s463 = smul.addr %s462, 8
          %s464 = scalar_lea.vmem %s5, %s463
        $region44: #{tpu_custom_call.1} parent=19 // pred_fallthru
          _
        // Predicated region
        $region45: #{tpu_custom_call.1} parent=19 // pred_check
          %p465 = pneg %p210
        $region46: #{tpu_custom_call.1} parent=19 // pred_check_branch
          %467 = sbr.rel (%p465) target = $region48
        $region47: #{tpu_custom_call.1} parent=19 // pred_region
          %p468 = scmp.lt.s32.totalorder %s30, 1
          %s469 = scalar_select %p468, %s30, 1
          %s470 = smul.addr %s469, 2
          %s471 = scalar_lea.vmem %s6, %s470
        $region48: #{tpu_custom_call.1} parent=19 // pred_fallthru
          _
        // Predicated region
        $region49: #{tpu_custom_call.1} parent=19 // pred_check
          %p472 = pneg %p236
        $region50: #{tpu_custom_call.1} parent=19 // pred_check_branch
          %474 = sbr.rel (%p472) target = $region52
        $region51: #{tpu_custom_call.1} parent=19 // pred_region
          %p475 = scmp.lt.s32.totalorder %s30, 1
          %s476 = scalar_select %p475, %s30, 1
          %s477 = smul.addr %s476, 4
          %s478 = smul.addr %s477, 8
          %s479 = scalar_lea.vmem %s7, %s478
        $region52: #{tpu_custom_call.1} parent=19 // pred_fallthru
          _
        // Predicated region
        $region53: #{tpu_custom_call.1} parent=19 // pred_check
          %p480 = pneg %p262
        $region54: #{tpu_custom_call.1} parent=19 // pred_check_branch
          %482 = sbr.rel (%p480) target = $region56
        $region55: #{tpu_custom_call.1} parent=19 // pred_region
          %p483 = scmp.lt.s32.totalorder %s30, 1
          %s484 = scalar_select %p483, %s30, 1
          %s485 = scalar_lea.vmem %s8, %s484
        $region56: #{tpu_custom_call.1} parent=19 // pred_fallthru
          _
        // Predicated region
        $region57: #{tpu_custom_call.1} parent=19 // pred_check
          %p486 = pneg %p288
        $region58: #{tpu_custom_call.1} parent=19 // pred_check_branch
          %488 = sbr.rel (%p486) target = $region60
        $region59: #{tpu_custom_call.1} parent=19 // pred_region
          %p489 = scmp.lt.s32.totalorder %s30, 1
          %s490 = scalar_select %p489, %s30, 1
          %s491 = smul.addr %s490, 8
          %s492 = smul.addr %s491, 8
          %s493 = scalar_lea.vmem %s9, %s492
        $region60: #{tpu_custom_call.1} parent=19 // pred_fallthru
          _
        // Predicated region
        $region61: #{tpu_custom_call.1} parent=19 // pred_check
          %p494 = pneg %p314
        $region62: #{tpu_custom_call.1} parent=19 // pred_check_branch
          %496 = sbr.rel (%p494) target = $region64
        $region63: #{tpu_custom_call.1} parent=19 // pred_region
          %p497 = scmp.lt.s32.totalorder %s30, 1
          %s498 = scalar_select %p497, %s30, 1
          %s499 = scalar_lea.vmem %s10, %s498
        $region64: #{tpu_custom_call.1} parent=19 // pred_fallthru
          _
        // Predicated region
        $region65: #{tpu_custom_call.1} parent=19 // pred_check
          %p500 = pneg %p340
        $region66: #{tpu_custom_call.1} parent=19 // pred_check_branch
          %502 = sbr.rel (%p500) target = $region68
        $region67: #{tpu_custom_call.1} parent=19 // pred_region
          %p503 = scmp.lt.s32.totalorder %s30, 1
          %s504 = scalar_select %p503, %s30, 1
          %s505 = smul.addr %s504, 8
          %s506 = scalar_lea.vmem %s11, %s505
        $region68: #{tpu_custom_call.1} parent=19 // pred_fallthru
          _
      $region20: #{tpu_custom_call.1} parent=5 // pred_fallthru
        _
      %p507 = scmp.le.s32.totalorder 1, %s22
      %p508 = scmp.lt.s32.totalorder %s22, 5
      %p509 = pnand %p507, %p508
      %p510 = pneg %p509
      // Predicated region
      $region69: #{tpu_custom_call.1} parent=5 // pred_check
        _
      $region70: #{tpu_custom_call.1} parent=5 // pred_check_branch
        %512 = sbr.rel (%p509) target = $region72
      $region71: #{tpu_custom_call.1} parent=5 // pred_region
        %s513 = ssub.s32 %s22, 1
        %s514 = smul.u32 2, %s31
        %p515 = scmp.lt.s32.totalorder %s514, 3
        %s516 = scalar_select %p515, %s514, 3
        %s517 = smul.addr %s516, 8
        %s518 = scalar_lea.vmem %s0, %s517
        %p519 = pneg %p60
        %p520 = pneg %p57
        %s521 = smul.u32 2, %s31
        %p522 = scmp.lt.s32.totalorder %s521, 3
        %s523 = scalar_select %p522, %s521, 3
        %s524 = smul.addr %s523, 8
        %s525 = scalar_lea.vmem %s1, %s524
        %p526 = pneg %p86
        %p527 = pneg %p83
        %p528 = scmp.lt.s32.totalorder %s31, 1
        %s529 = scalar_select %p528, %s31, 1
        %s530 = smul.addr %s529, 8
        %s531 = scalar_lea.vmem %s2, %s530
        %p532 = pneg %p112
        %p533 = pneg %p109
        %p534 = scmp.lt.s32.totalorder %s32, 1
        %s535 = scalar_select %p534, %s32, 1
        %s536 = smul.addr %s535, 8
        %s537 = smul.addr %s536, 8
        %s538 = scalar_lea.vmem %s3, %s537
        %p539 = pneg %p138
        %p540 = pneg %p135
        %p541 = scmp.lt.s32.totalorder %s32, 1
        %s542 = scalar_select %p541, %s32, 1
        %s543 = smul.addr %s542, 2
        %s544 = scalar_lea.vmem %s4, %s543
        %p545 = pneg %p164
        %p546 = pneg %p161
        %p547 = scmp.lt.s32.totalorder %s32, 1
        %s548 = scalar_select %p547, %s32, 1
        %s549 = smul.addr %s548, 8
        %s550 = smul.addr %s549, 8
        %s551 = scalar_lea.vmem %s5, %s550
        %p552 = pneg %p190
        %p553 = pneg %p187
        %p554 = scmp.lt.s32.totalorder %s32, 1
        %s555 = scalar_select %p554, %s32, 1
        %s556 = smul.addr %s555, 2
        %s557 = scalar_lea.vmem %s6, %s556
        %p558 = pneg %p216
        %p559 = pneg %p213
        %p560 = scmp.lt.s32.totalorder %s32, 1
        %s561 = scalar_select %p560, %s32, 1
        %s562 = smul.addr %s561, 4
        %s563 = smul.addr %s562, 8
        %s564 = scalar_lea.vmem %s7, %s563
        %p565 = pneg %p242
        %p566 = pneg %p239
        %p567 = scmp.lt.s32.totalorder %s32, 1
        %s568 = scalar_select %p567, %s32, 1
        %s569 = scalar_lea.vmem %s8, %s568
        %p570 = pneg %p268
        %p571 = pneg %p265
        %p572 = scmp.lt.s32.totalorder %s32, 1
        %s573 = scalar_select %p572, %s32, 1
        %s574 = smul.addr %s573, 8
        %s575 = smul.addr %s574, 8
        %s576 = scalar_lea.vmem %s9, %s575
        %p577 = pneg %p294
        %p578 = pneg %p291
        %p579 = scmp.lt.s32.totalorder %s32, 1
        %s580 = scalar_select %p579, %s32, 1
        %s581 = scalar_lea.vmem %s10, %s580
        %p582 = pneg %p320
        %p583 = pneg %p317
        %p584 = scmp.lt.s32.totalorder %s32, 1
        %s585 = scalar_select %p584, %s32, 1
        %s586 = smul.addr %s585, 8
        %s587 = scalar_lea.vmem %s11, %s586
        %p588 = pneg %p346
        %p589 = pneg %p343
        %p590 = pneg %p367
        %p591 = pneg %p364
        %p592 = pneg %p395
        %p593 = pneg %p392
        %s594 = sand.u32 %s382, 1
        %s595 = scalar_lea.sflag [#allocation6], %s594
        %s596 = sand.u32 %s382, 1
        %s597 = smul.addr %s596, 8
        %s598 = scalar_lea.vmem [#allocation5], %s597
        %s599 = smul.u32 2, %s31
        %p600 = scmp.lt.s32.totalorder %s599, 3
        %s601 = scalar_select %p600, %s599, 3
        %s602 = smul.addr %s601, 8
        %s603 = scalar_lea.vmem %s0, %s602
        %s604 = smul.u32 2, %s31
        %s605 = smul.u32 2, %s31
        %p606 = scmp.lt.s32.totalorder %s605, 3
        %s607 = scalar_select %p606, %s605, 3
        %s608 = smul.addr %s607, 8
        %s609 = scalar_lea.vmem %s1, %s608
        %s610 = smul.u32 2, %s31
        %p611 = scmp.lt.s32.totalorder %s31, 1
        %s612 = scalar_select %p611, %s31, 1
        %s613 = smul.addr %s612, 8
        %s614 = scalar_lea.vmem %s2, %s613
        %p615 = scmp.lt.s32.totalorder %s32, 1
        %s616 = scalar_select %p615, %s32, 1
        %s617 = smul.addr %s616, 8
        %s618 = smul.addr %s617, 8
        %s619 = scalar_lea.vmem %s3, %s618
        %p620 = scmp.lt.s32.totalorder %s32, 1
        %s621 = scalar_select %p620, %s32, 1
        %s622 = smul.addr %s621, 2
        %s623 = scalar_lea.vmem %s4, %s622
        %p624 = scmp.lt.s32.totalorder %s32, 1
        %s625 = scalar_select %p624, %s32, 1
        %s626 = smul.addr %s625, 8
        %s627 = smul.addr %s626, 8
        %s628 = scalar_lea.vmem %s5, %s627
        %p629 = scmp.lt.s32.totalorder %s32, 1
        %s630 = scalar_select %p629, %s32, 1
        %s631 = smul.addr %s630, 2
        %s632 = scalar_lea.vmem %s6, %s631
        %p633 = scmp.lt.s32.totalorder %s32, 1
        %s634 = scalar_select %p633, %s32, 1
        %s635 = smul.addr %s634, 4
        %s636 = smul.addr %s635, 8
        %s637 = scalar_lea.vmem %s7, %s636
        %p638 = scmp.lt.s32.totalorder %s32, 1
        %s639 = scalar_select %p638, %s32, 1
        %s640 = scalar_lea.vmem %s8, %s639
        %p641 = scmp.lt.s32.totalorder %s32, 1
        %s642 = scalar_select %p641, %s32, 1
        %s643 = smul.addr %s642, 8
        %s644 = smul.addr %s643, 8
        %s645 = scalar_lea.vmem %s9, %s644
        %p646 = scmp.lt.s32.totalorder %s32, 1
        %s647 = scalar_select %p646, %s32, 1
        %s648 = scalar_lea.vmem %s10, %s647
        %p649 = scmp.lt.s32.totalorder %s32, 1
        %s650 = scalar_select %p649, %s32, 1
        %s651 = smul.addr %s650, 8
        %s652 = scalar_lea.vmem %s11, %s651
        %p653 = scmp.eq.s32.totalorder %s32, 0
        // Predicated region
        $region73: #{tpu_custom_call.1} parent=71 // pred_check
          %p654 = pneg %p653
        $region74: #{tpu_custom_call.1} parent=71 // pred_check_branch
          %656 = sbr.rel (%p654) target = $region76
        $region75: #{tpu_custom_call.1} parent=71 // pred_region
          %vm657 = vcmask 261120
          %658 = vst.msk [vmem:[#allocation2] sm:$0xff] %vm657, 0.0
          %v659 = vld [vmem:[%s603] sm:$0xff]
          %v660 = vld [vmem:[%s603 + $0x8] sm:$0xff]
          %v661 = vld [vmem:[%s609] sm:$0xff]
          %v662 = vld [vmem:[%s609 + $0x8] sm:$0xff]
          %v663 = vadd.f32 %v659, %v661
          %v664 = vadd.f32 %v660, %v662
          %665 = vst.msk [vmem:[#allocation3] sm:$0xff] %vm657, %v663
          %666 = vst.msk [vmem:[#allocation3 + $0x8] sm:$0xff] %vm657, %v664
          %v667 = vld [vmem:[%s603] sm:$0xff]
          %v668 = vld [vmem:[%s603 + $0x8] sm:$0xff]
          %s669 = scalar_lea.vmem [#allocation3], 16
          %670 = vst.msk [vmem:[%s669] sm:$0xff] %vm657, %v667
          %671 = vst.msk [vmem:[%s669 + $0x8] sm:$0xff] %vm657, %v668
        $region76: #{tpu_custom_call.1} parent=71 // pred_fallthru
          _
        %v672 = vld [vmem:[#allocation2] sm:$0xff]
        %v673 = vld [vmem:[%s614] sm:$0xff]
        %v674 = vld [vmem:[%s619] sm:$0xff]
        %v675 = vld [vmem:[%s619 + $0x8] sm:$0xff]
        %v676 = vld [vmem:[%s619 + $0x10] sm:$0xff]
        %v677 = vld [vmem:[%s619 + $0x18] sm:$0xff]
        %v678 = vld [vmem:[%s619 + $0x20] sm:$0xff]
        %v679 = vld [vmem:[%s619 + $0x28] sm:$0xff]
        %v680 = vld [vmem:[%s619 + $0x30] sm:$0xff]
        %v681 = vld [vmem:[%s619 + $0x38] sm:$0xff]
        %v682 = vld [vmem:[%s623] sm:$0x3]
        %v683 = vld [vmem:[%s628] sm:$0xff]
        %v684 = vld [vmem:[%s628 + $0x8] sm:$0xff]
        %v685 = vld [vmem:[%s628 + $0x10] sm:$0xff]
        %v686 = vld [vmem:[%s628 + $0x18] sm:$0xff]
        %v687 = vld [vmem:[%s628 + $0x20] sm:$0xff]
        %v688 = vld [vmem:[%s628 + $0x28] sm:$0xff]
        %v689 = vld [vmem:[%s628 + $0x30] sm:$0xff]
        %v690 = vld [vmem:[%s628 + $0x38] sm:$0xff]
        %v691 = vld [vmem:[%s632] sm:$0x3]
        %v692 = vld [vmem:[%s652] sm:$0x3f]
        %v693 = vadd.f32 %v672, %v673
        %v694 = vlaneseq
        %v695 = vshrl.u32 %v694, 7
        %v696 = vsub.s32 0, %v695
        %v697 = vrot.slane %v682, %v696
        %vm698 = vcmask 261120
        %v700 = vsel %vm698, %v693, 0
        %702 = vmatprep.subr.mxu0 0.0
        %703 = vmatpush1.msra.mxu0 %v674
        %704 = vmatprep.subr.mxu0 0.0
        %705 = vmatpush1.msra.mxu0 %v675
        %706 = vmatprep.subr.mxu0 0.0
        %707 = vmatpush1.msra.mxu0 %v676
        %708 = vmatprep.subr.mxu0 0.0
        %709 = vmatpush1.msra.mxu0 %v677
        %710 = vmatprep.subr.mxu0 0.0
        %711 = vmatpush1.msra.mxu0 0.0
        %712 = vmatprep.subr.mxu0 0.0
        %713 = vmatpush1.msra.mxu0 0.0
        %714 = vmatprep.subr.mxu0 0.0
        %715 = vmatpush1.msra.mxu0 0.0
        %716 = vmatprep.subr.mxu0 0.0
        %717 = vmatpush1.msra.mxu0 0.0
        %718 = vmatprep.subr.mxu0 0.0
        %719 = vmatpush1.msra.mxu0 0.0
        %720 = vmatprep.subr.mxu0 0.0
        %721 = vmatpush1.msra.mxu0 0.0
        %722 = vmatprep.subr.mxu0 0.0
        %723 = vmatpush1.msra.mxu0 0.0
        %724 = vmatprep.subr.mxu0 0.0
        %725 = vmatpush1.msra.mxu0 0.0
        %726 = vmatprep.subr.mxu0 0.0
        %727 = vmatpush1.msra.mxu0 0.0
        %728 = vmatprep.subr.mxu0 0.0
        %729 = vmatpush1.msra.mxu0 0.0
        %730 = vmatprep.subr.mxu0 0.0
        %731 = vmatpush1.msra.mxu0 0.0
        %732 = vmatprep.subr.mxu0 0.0
        %733 = vmatpush1.msra.mxu0 0.0
        %734 = vmatprep.subr.mxu0 0.0
        %735 = vmatpush1.msra.mxu0 0.0
        %736 = vmatprep.subr.mxu0 0.0
        %737 = vmatpush1.msra.mxu0 0.0
        %738 = vmatprep.subr.mxu0 0.0
        %739 = vmatpush1.msra.mxu0 0.0
        %740 = vmatprep.subr.mxu0 0.0
        %741 = vmatpush1.msra.mxu0 0.0
        %742 = vmatprep.subr.mxu0 0.0
        %743 = vmatpush1.msra.mxu0 0.0
        %744 = vmatprep.subr.mxu0 0.0
        %745 = vmatpush1.msra.mxu0 0.0
        %746 = vmatprep.subr.mxu0 0.0
        %747 = vmatpush1.msra.mxu0 0.0
        %748 = vmatprep.subr.mxu0 0.0
        %749 = vmatpush1.msra.mxu0 0.0
        %750 = vmatprep.subr.mxu0 0.0
        %751 = vmatpush1.msra.mxu0 0.0
        %752 = vmatprep.subr.mxu0 0.0
        %753 = vmatpush1.msra.mxu0 0.0
        %754 = vmatprep.subr.mxu0 0.0
        %755 = vmatpush1.msra.mxu0 0.0
        %756 = vmatprep.subr.mxu0 0.0
        %757 = vmatpush1.msra.mxu0 0.0
        %758 = vmatprep.subr.mxu0 0.0
        %759 = vmatpush1.msra.mxu0 0.0
        %760 = vmatprep.subr.mxu0 0.0
        %761 = vmatpush1.msra.mxu0 0.0
        %762 = vmatprep.subr.mxu0 0.0
        %763 = vmatpush1.msra.mxu0 0.0
        %764 = vmatprep.subr.mxu0 0.0
        %765 = vmatpush1.msra.mxu0 0.0
        %766 = vmatprep.mubr.f32.mxu0 0.0
        %767 = vmatmul.mubr.f32.gmra.mrb[0].mxu0 %v700
        %v768 = vpop.f32.mrb[0].mxu0
        %v769 = vadd.f32 %v697, %v768
        %v770 = vpop.f32.mrb[0].mxu0
        %771 = vdwg.mxu0
        %776 = vrot.lane.b32.xlu0 %v674, 96
        %v777 = vpop.permute.xlu0 %776
        %778 = vrot.lane.b32.xlu0 %v675, 96
        %v779 = vpop.permute.xlu0 %778
        %780 = vrot.lane.b32.xlu0 %v676, 96
        %v781 = vpop.permute.xlu0 %780
        %782 = vrot.lane.b32.xlu0 %v677, 96
        %v783 = vpop.permute.xlu0 %782
        %789 = vrot.lane.b32.xlu0 %v697, 96
        %v790 = vpop.permute.xlu0 %789
        %792 = vmatprep.subr.mxu0 0.0
        %793 = vmatpush1.msra.mxu0 %v777
        %794 = vmatprep.subr.mxu0 0.0
        %795 = vmatpush1.msra.mxu0 %v779
        %796 = vmatprep.subr.mxu0 0.0
        %797 = vmatpush1.msra.mxu0 %v781
        %798 = vmatprep.subr.mxu0 0.0
        %799 = vmatpush1.msra.mxu0 %v783
        %800 = vmatprep.subr.mxu0 0.0
        %801 = vmatpush1.msra.mxu0 0.0
        %802 = vmatprep.subr.mxu0 0.0
        %803 = vmatpush1.msra.mxu0 0.0
        %804 = vmatprep.subr.mxu0 0.0
        %805 = vmatpush1.msra.mxu0 0.0
        %806 = vmatprep.subr.mxu0 0.0
        %807 = vmatpush1.msra.mxu0 0.0
        %808 = vmatprep.subr.mxu0 0.0
        %809 = vmatpush1.msra.mxu0 0.0
        %810 = vmatprep.subr.mxu0 0.0
        %811 = vmatpush1.msra.mxu0 0.0
        %812 = vmatprep.subr.mxu0 0.0
        %813 = vmatpush1.msra.mxu0 0.0
        %814 = vmatprep.subr.mxu0 0.0
        %815 = vmatpush1.msra.mxu0 0.0
        %816 = vmatprep.subr.mxu0 0.0
        %817 = vmatpush1.msra.mxu0 0.0
        %818 = vmatprep.subr.mxu0 0.0
        %819 = vmatpush1.msra.mxu0 0.0
        %820 = vmatprep.subr.mxu0 0.0
        %821 = vmatpush1.msra.mxu0 0.0
        %822 = vmatprep.subr.mxu0 0.0
        %823 = vmatpush1.msra.mxu0 0.0
        %824 = vmatprep.subr.mxu0 0.0
        %825 = vmatpush1.msra.mxu0 0.0
        %826 = vmatprep.subr.mxu0 0.0
        %827 = vmatpush1.msra.mxu0 0.0
        %828 = vmatprep.subr.mxu0 0.0
        %829 = vmatpush1.msra.mxu0 0.0
        %830 = vmatprep.subr.mxu0 0.0
        %831 = vmatpush1.msra.mxu0 0.0
        %832 = vmatprep.subr.mxu0 0.0
        %833 = vmatpush1.msra.mxu0 0.0
        %834 = vmatprep.subr.mxu0 0.0
        %835 = vmatpush1.msra.mxu0 0.0
        %836 = vmatprep.subr.mxu0 0.0
        %837 = vmatpush1.msra.mxu0 0.0
        %838 = vmatprep.subr.mxu0 0.0
        %839 = vmatpush1.msra.mxu0 0.0
        %840 = vmatprep.subr.mxu0 0.0
        %841 = vmatpush1.msra.mxu0 0.0
        %842 = vmatprep.subr.mxu0 0.0
        %843 = vmatpush1.msra.mxu0 0.0
        %844 = vmatprep.subr.mxu0 0.0
        %845 = vmatpush1.msra.mxu0 0.0
        %846 = vmatprep.subr.mxu0 0.0
        %847 = vmatpush1.msra.mxu0 0.0
        %848 = vmatprep.subr.mxu0 0.0
        %849 = vmatpush1.msra.mxu0 0.0
        %850 = vmatprep.subr.mxu0 0.0
        %851 = vmatpush1.msra.mxu0 0.0
        %852 = vmatprep.subr.mxu0 0.0
        %853 = vmatpush1.msra.mxu0 0.0
        %854 = vmatprep.subr.mxu0 0.0
        %855 = vmatpush1.msra.mxu0 0.0
        %856 = vmatprep.mubr.f32.mxu0 0.0
        %857 = vmatmul.mubr.f32.gmra.mrb[0].mxu0 %v700
        %v858 = vpop.f32.mrb[0].mxu0
        %v859 = vadd.f32 %v790, %v858
        %v860 = vpop.f32.mrb[0].mxu0
        %861 = vdwg.mxu0
        %862 = vrot.lane.b32.xlu0 %v674, 64
        %v863 = vpop.permute.xlu0 %862
        %864 = vrot.lane.b32.xlu0 %v675, 64
        %v865 = vpop.permute.xlu0 %864
        %866 = vrot.lane.b32.xlu0 %v676, 64
        %v867 = vpop.permute.xlu0 %866
        %868 = vrot.lane.b32.xlu0 %v677, 64
        %v869 = vpop.permute.xlu0 %868
        %874 = vrot.lane.b32.xlu0 %v697, 64
        %v875 = vpop.permute.xlu0 %874
        %v878 = vsel %vm698, %v672, 0
        %880 = vmatprep.subr.mxu0 0.0
        %881 = vmatpush1.msra.mxu0 %v863
        %882 = vmatprep.subr.mxu0 0.0
        %883 = vmatpush1.msra.mxu0 %v865
        %884 = vmatprep.subr.mxu0 0.0
        %885 = vmatpush1.msra.mxu0 %v867
        %886 = vmatprep.subr.mxu0 0.0
        %887 = vmatpush1.msra.mxu0 %v869
        %888 = vmatprep.subr.mxu0 0.0
        %889 = vmatpush1.msra.mxu0 0.0
        %890 = vmatprep.subr.mxu0 0.0
        %891 = vmatpush1.msra.mxu0 0.0
        %892 = vmatprep.subr.mxu0 0.0
        %893 = vmatpush1.msra.mxu0 0.0
        %894 = vmatprep.subr.mxu0 0.0
        %895 = vmatpush1.msra.mxu0 0.0
        %896 = vmatprep.subr.mxu0 0.0
        %897 = vmatpush1.msra.mxu0 0.0
        %898 = vmatprep.subr.mxu0 0.0
        %899 = vmatpush1.msra.mxu0 0.0
        %900 = vmatprep.subr.mxu0 0.0
        %901 = vmatpush1.msra.mxu0 0.0
        %902 = vmatprep.subr.mxu0 0.0
        %903 = vmatpush1.msra.mxu0 0.0
        %904 = vmatprep.subr.mxu0 0.0
        %905 = vmatpush1.msra.mxu0 0.0
        %906 = vmatprep.subr.mxu0 0.0
        %907 = vmatpush1.msra.mxu0 0.0
        %908 = vmatprep.subr.mxu0 0.0
        %909 = vmatpush1.msra.mxu0 0.0
        %910 = vmatprep.subr.mxu0 0.0
        %911 = vmatpush1.msra.mxu0 0.0
        %912 = vmatprep.subr.mxu0 0.0
        %913 = vmatpush1.msra.mxu0 0.0
        %914 = vmatprep.subr.mxu0 0.0
        %915 = vmatpush1.msra.mxu0 0.0
        %916 = vmatprep.subr.mxu0 0.0
        %917 = vmatpush1.msra.mxu0 0.0
        %918 = vmatprep.subr.mxu0 0.0
        %919 = vmatpush1.msra.mxu0 0.0
        %920 = vmatprep.subr.mxu0 0.0
        %921 = vmatpush1.msra.mxu0 0.0
        %922 = vmatprep.subr.mxu0 0.0
        %923 = vmatpush1.msra.mxu0 0.0
        %924 = vmatprep.subr.mxu0 0.0
        %925 = vmatpush1.msra.mxu0 0.0
        %926 = vmatprep.subr.mxu0 0.0
        %927 = vmatpush1.msra.mxu0 0.0
        %928 = vmatprep.subr.mxu0 0.0
        %929 = vmatpush1.msra.mxu0 0.0
        %930 = vmatprep.subr.mxu0 0.0
        %931 = vmatpush1.msra.mxu0 0.0
        %932 = vmatprep.subr.mxu0 0.0
        %933 = vmatpush1.msra.mxu0 0.0
        %934 = vmatprep.subr.mxu0 0.0
        %935 = vmatpush1.msra.mxu0 0.0
        %936 = vmatprep.subr.mxu0 0.0
        %937 = vmatpush1.msra.mxu0 0.0
        %938 = vmatprep.subr.mxu0 0.0
        %939 = vmatpush1.msra.mxu0 0.0
        %940 = vmatprep.subr.mxu0 0.0
        %941 = vmatpush1.msra.mxu0 0.0
        %942 = vmatprep.subr.mxu0 0.0
        %943 = vmatpush1.msra.mxu0 0.0
        %944 = vmatprep.mubr.f32.mxu0 0.0
        %945 = vmatmul.mubr.f32.gmra.mrb[0].mxu0 %v878
        %v946 = vpop.f32.mrb[0].mxu0
        %v947 = vadd.f32 %v875, %v946
        %v948 = vpop.f32.mrb[0].mxu0
        %949 = vdwg.mxu0
        %vm950 = vcmask 64512
        %v952 = vsel %vm950, %v769, 0
        %v955 = vsel %vm950, %v859, 0
        %957 = vmatprep.subr.mxu0 0.0
        %958 = vmatpush1.xpose.msra.mxu0 %v955
        %959 = vmatprep.subr.mxu0 0.0
        %960 = vmatpush1.xpose.msra.mxu0 0.0
        %961 = vmatprep.subr.mxu0 0.0
        %962 = vmatpush1.xpose.msra.mxu0 0.0
        %963 = vmatprep.subr.mxu0 0.0
        %964 = vmatpush1.xpose.msra.mxu0 0.0
        %965 = vmatprep.subr.mxu0 0.0
        %966 = vmatpush1.xpose.msra.mxu0 0.0
        %967 = vmatprep.subr.mxu0 0.0
        %968 = vmatpush1.xpose.msra.mxu0 0.0
        %969 = vmatprep.subr.mxu0 0.0
        %970 = vmatpush1.xpose.msra.mxu0 0.0
        %971 = vmatprep.subr.mxu0 0.0
        %972 = vmatpush1.xpose.msra.mxu0 0.0
        %973 = vmatprep.subr.mxu0 0.0
        %974 = vmatpush1.xpose.msra.mxu0 0.0
        %975 = vmatprep.subr.mxu0 0.0
        %976 = vmatpush1.xpose.msra.mxu0 0.0
        %977 = vmatprep.subr.mxu0 0.0
        %978 = vmatpush1.xpose.msra.mxu0 0.0
        %979 = vmatprep.subr.mxu0 0.0
        %980 = vmatpush1.xpose.msra.mxu0 0.0
        %981 = vmatprep.subr.mxu0 0.0
        %982 = vmatpush1.xpose.msra.mxu0 0.0
        %983 = vmatprep.subr.mxu0 0.0
        %984 = vmatpush1.xpose.msra.mxu0 0.0
        %985 = vmatprep.subr.mxu0 0.0
        %986 = vmatpush1.xpose.msra.mxu0 0.0
        %987 = vmatprep.subr.mxu0 0.0
        %988 = vmatpush1.xpose.msra.mxu0 0.0
        %989 = vmatprep.subr.mxu0 0.0
        %990 = vmatpush1.xpose.msra.mxu0 0.0
        %991 = vmatprep.subr.mxu0 0.0
        %992 = vmatpush1.xpose.msra.mxu0 0.0
        %993 = vmatprep.subr.mxu0 0.0
        %994 = vmatpush1.xpose.msra.mxu0 0.0
        %995 = vmatprep.subr.mxu0 0.0
        %996 = vmatpush1.xpose.msra.mxu0 0.0
        %997 = vmatprep.subr.mxu0 0.0
        %998 = vmatpush1.xpose.msra.mxu0 0.0
        %999 = vmatprep.subr.mxu0 0.0
        %1000 = vmatpush1.xpose.msra.mxu0 0.0
        %1001 = vmatprep.subr.mxu0 0.0
        %1002 = vmatpush1.xpose.msra.mxu0 0.0
        %1003 = vmatprep.subr.mxu0 0.0
        %1004 = vmatpush1.xpose.msra.mxu0 0.0
        %1005 = vmatprep.subr.mxu0 0.0
        %1006 = vmatpush1.xpose.msra.mxu0 0.0
        %1007 = vmatprep.subr.mxu0 0.0
        %1008 = vmatpush1.xpose.msra.mxu0 0.0
        %1009 = vmatprep.subr.mxu0 0.0
        %1010 = vmatpush1.xpose.msra.mxu0 0.0
        %1011 = vmatprep.subr.mxu0 0.0
        %1012 = vmatpush1.xpose.msra.mxu0 0.0
        %1013 = vmatprep.subr.mxu0 0.0
        %1014 = vmatpush1.xpose.msra.mxu0 0.0
        %1015 = vmatprep.subr.mxu0 0.0
        %1016 = vmatpush1.xpose.msra.mxu0 0.0
        %1017 = vmatprep.subr.mxu0 0.0
        %1018 = vmatpush1.xpose.msra.mxu0 0.0
        %1019 = vmatprep.subr.mxu0 0.0
        %1020 = vmatpush1.xpose.msra.mxu0 0.0
        %1021 = vmatprep.mubr.f32.mxu0 0.0
        %1022 = vmatmul.mubr.f32.gmra.mrb[0].mxu0 %v952
        %v1023 = vpop.f32.mrb[0].mxu0
        %v1024 = vadd.f32 0.0, %v1023
        %v1025 = vpop.f32.mrb[0].mxu0
        %1026 = vdwg.mxu0
        %v1027 = vsel %vm950, %v1024, -inf
        %1028 = vmax.xlane.f32.xlu0 %v1027
        %v1029 = vpop.xlane.xlu0 %1028
        %v1030 = vsub.f32 %v1024, %v1029
        %v1031 = vmul.f32 %v1030, 1.442695
        %v1032 = vpow.pop %v1031
        %v1033 = vsel %vm950, %v1032, 0.0
        %1034 = vadd.xlane.f32.xlu0 %v1033
        %v1035 = vpop.xlane.xlu0 %1034
        %v1036 = vrcp.pop %v1035
        %v1037 = vmul.f32 %v1032, %v1036
        %v1039 = vsel %vm950, %v1037, 0
        %1041 = vmatprep.subr.mxu0 0.0
        %1042 = vmatpush1.msra.mxu0 %v947
        %1043 = vmatprep.subr.mxu0 0.0
        %1044 = vmatpush1.msra.mxu0 0.0
        %1045 = vmatprep.subr.mxu0 0.0
        %1046 = vmatpush1.msra.mxu0 0.0
        %1047 = vmatprep.subr.mxu0 0.0
        %1048 = vmatpush1.msra.mxu0 0.0
        %1049 = vmatprep.subr.mxu0 0.0
        %1050 = vmatpush1.msra.mxu0 0.0
        %1051 = vmatprep.subr.mxu0 0.0
        %1052 = vmatpush1.msra.mxu0 0.0
        %1053 = vmatprep.subr.mxu0 0.0
        %1054 = vmatpush1.msra.mxu0 0.0
        %1055 = vmatprep.subr.mxu0 0.0
        %1056 = vmatpush1.msra.mxu0 0.0
        %1057 = vmatprep.subr.mxu0 0.0
        %1058 = vmatpush1.msra.mxu0 0.0
        %1059 = vmatprep.subr.mxu0 0.0
        %1060 = vmatpush1.msra.mxu0 0.0
        %1061 = vmatprep.subr.mxu0 0.0
        %1062 = vmatpush1.msra.mxu0 0.0
        %1063 = vmatprep.subr.mxu0 0.0
        %1064 = vmatpush1.msra.mxu0 0.0
        %1065 = vmatprep.subr.mxu0 0.0
        %1066 = vmatpush1.msra.mxu0 0.0
        %1067 = vmatprep.subr.mxu0 0.0
        %1068 = vmatpush1.msra.mxu0 0.0
        %1069 = vmatprep.subr.mxu0 0.0
        %1070 = vmatpush1.msra.mxu0 0.0
        %1071 = vmatprep.subr.mxu0 0.0
        %1072 = vmatpush1.msra.mxu0 0.0
        %1073 = vmatprep.subr.mxu0 0.0
        %1074 = vmatpush1.msra.mxu0 0.0
        %1075 = vmatprep.subr.mxu0 0.0
        %1076 = vmatpush1.msra.mxu0 0.0
        %1077 = vmatprep.subr.mxu0 0.0
        %1078 = vmatpush1.msra.mxu0 0.0
        %1079 = vmatprep.subr.mxu0 0.0
        %1080 = vmatpush1.msra.mxu0 0.0
        %1081 = vmatprep.subr.mxu0 0.0
        %1082 = vmatpush1.msra.mxu0 0.0
        %1083 = vmatprep.subr.mxu0 0.0
        %1084 = vmatpush1.msra.mxu0 0.0
        %1085 = vmatprep.subr.mxu0 0.0
        %1086 = vmatpush1.msra.mxu0 0.0
        %1087 = vmatprep.subr.mxu0 0.0
        %1088 = vmatpush1.msra.mxu0 0.0
        %1089 = vmatprep.subr.mxu0 0.0
        %1090 = vmatpush1.msra.mxu0 0.0
        %1091 = vmatprep.subr.mxu0 0.0
        %1092 = vmatpush1.msra.mxu0 0.0
        %1093 = vmatprep.subr.mxu0 0.0
        %1094 = vmatpush1.msra.mxu0 0.0
        %1095 = vmatprep.subr.mxu0 0.0
        %1096 = vmatpush1.msra.mxu0 0.0
        %1097 = vmatprep.subr.mxu0 0.0
        %1098 = vmatpush1.msra.mxu0 0.0
        %1099 = vmatprep.subr.mxu0 0.0
        %1100 = vmatpush1.msra.mxu0 0.0
        %1101 = vmatprep.subr.mxu0 0.0
        %1102 = vmatpush1.msra.mxu0 0.0
        %1103 = vmatprep.subr.mxu0 0.0
        %1104 = vmatpush1.msra.mxu0 0.0
        %1105 = vmatprep.mubr.f32.mxu0 0.0
        %1106 = vmatmul.mubr.f32.gmra.mrb[0].mxu0 %v1039
        %v1107 = vpop.f32.mrb[0].mxu0
        %v1108 = vadd.f32 0.0, %v1107
        %v1109 = vpop.f32.mrb[0].mxu0
        %1110 = vdwg.mxu0
        %1111 = vst.msk [vmem:[#allocation4] sm:$0xff] %vm950, %v1108
        %1112 = vrot.lane.b32.xlu0 %v769, 120
        %v1113 = vpop.permute.xlu0 %1112
        %1114 = vrot.lane.b32.xlu0 %v859, 120
        %v1115 = vpop.permute.xlu0 %1114
        %v1116 = vsel %vm950, %v1113, 0
        %v1118 = vsel %vm950, %v1115, 0
        %1120 = vmatprep.subr.mxu0 0.0
        %1121 = vmatpush1.xpose.msra.mxu0 %v1118
        %1122 = vmatprep.subr.mxu0 0.0
        %1123 = vmatpush1.xpose.msra.mxu0 0.0
        %1124 = vmatprep.subr.mxu0 0.0
        %1125 = vmatpush1.xpose.msra.mxu0 0.0
        %1126 = vmatprep.subr.mxu0 0.0
        %1127 = vmatpush1.xpose.msra.mxu0 0.0
        %1128 = vmatprep.subr.mxu0 0.0
        %1129 = vmatpush1.xpose.msra.mxu0 0.0
        %1130 = vmatprep.subr.mxu0 0.0
        %1131 = vmatpush1.xpose.msra.mxu0 0.0
        %1132 = vmatprep.subr.mxu0 0.0
        %1133 = vmatpush1.xpose.msra.mxu0 0.0
        %1134 = vmatprep.subr.mxu0 0.0
        %1135 = vmatpush1.xpose.msra.mxu0 0.0
        %1136 = vmatprep.subr.mxu0 0.0
        %1137 = vmatpush1.xpose.msra.mxu0 0.0
        %1138 = vmatprep.subr.mxu0 0.0
        %1139 = vmatpush1.xpose.msra.mxu0 0.0
        %1140 = vmatprep.subr.mxu0 0.0
        %1141 = vmatpush1.xpose.msra.mxu0 0.0
        %1142 = vmatprep.subr.mxu0 0.0
        %1143 = vmatpush1.xpose.msra.mxu0 0.0
        %1144 = vmatprep.subr.mxu0 0.0
        %1145 = vmatpush1.xpose.msra.mxu0 0.0
        %1146 = vmatprep.subr.mxu0 0.0
        %1147 = vmatpush1.xpose.msra.mxu0 0.0
        %1148 = vmatprep.subr.mxu0 0.0
        %1149 = vmatpush1.xpose.msra.mxu0 0.0
        %1150 = vmatprep.subr.mxu0 0.0
        %1151 = vmatpush1.xpose.msra.mxu0 0.0
        %1152 = vmatprep.subr.mxu0 0.0
        %1153 = vmatpush1.xpose.msra.mxu0 0.0
        %1154 = vmatprep.subr.mxu0 0.0
        %1155 = vmatpush1.xpose.msra.mxu0 0.0
        %1156 = vmatprep.subr.mxu0 0.0
        %1157 = vmatpush1.xpose.msra.mxu0 0.0
        %1158 = vmatprep.subr.mxu0 0.0
        %1159 = vmatpush1.xpose.msra.mxu0 0.0
        %1160 = vmatprep.subr.mxu0 0.0
        %1161 = vmatpush1.xpose.msra.mxu0 0.0
        %1162 = vmatprep.subr.mxu0 0.0
        %1163 = vmatpush1.xpose.msra.mxu0 0.0
        %1164 = vmatprep.subr.mxu0 0.0
        %1165 = vmatpush1.xpose.msra.mxu0 0.0
        %1166 = vmatprep.subr.mxu0 0.0
        %1167 = vmatpush1.xpose.msra.mxu0 0.0
        %1168 = vmatprep.subr.mxu0 0.0
        %1169 = vmatpush1.xpose.msra.mxu0 0.0
        %1170 = vmatprep.subr.mxu0 0.0
        %1171 = vmatpush1.xpose.msra.mxu0 0.0
        %1172 = vmatprep.subr.mxu0 0.0
        %1173 = vmatpush1.xpose.msra.mxu0 0.0
        %1174 = vmatprep.subr.mxu0 0.0
        %1175 = vmatpush1.xpose.msra.mxu0 0.0
        %1176 = vmatprep.subr.mxu0 0.0
        %1177 = vmatpush1.xpose.msra.mxu0 0.0
        %1178 = vmatprep.subr.mxu0 0.0
        %1179 = vmatpush1.xpose.msra.mxu0 0.0
        %1180 = vmatprep.subr.mxu0 0.0
        %1181 = vmatpush1.xpose.msra.mxu0 0.0
        %1182 = vmatprep.subr.mxu0 0.0
        %1183 = vmatpush1.xpose.msra.mxu0 0.0
        %1184 = vmatprep.mubr.f32.mxu0 0.0
        %1185 = vmatmul.mubr.f32.gmra.mrb[0].mxu0 %v1116
        %v1186 = vpop.f32.mrb[0].mxu0
        %v1187 = vadd.f32 0.0, %v1186
        %v1188 = vpop.f32.mrb[0].mxu0
        %1189 = vdwg.mxu0
        %v1190 = vsel %vm950, %v1187, -inf
        %1191 = vmax.xlane.f32.xlu0 %v1190
        %v1192 = vpop.xlane.xlu0 %1191
        %v1193 = vsub.f32 %v1187, %v1192
        %v1194 = vmul.f32 %v1193, 1.442695
        %v1195 = vpow.pop %v1194
        %v1196 = vsel %vm950, %v1195, 0.0
        %1197 = vadd.xlane.f32.xlu0 %v1196
        %v1198 = vpop.xlane.xlu0 %1197
        %v1199 = vrcp.pop %v1198
        %v1200 = vmul.f32 %v1195, %v1199
        %1202 = vrot.lane.b32.xlu0 %v947, 120
        %v1203 = vpop.permute.xlu0 %1202
        %v1206 = vsel %vm950, %v1200, 0
        %1208 = vmatprep.subr.mxu0 0.0
        %1209 = vmatpush1.msra.mxu0 %v1203
        %1210 = vmatprep.subr.mxu0 0.0
        %1211 = vmatpush1.msra.mxu0 0.0
        %1212 = vmatprep.subr.mxu0 0.0
        %1213 = vmatpush1.msra.mxu0 0.0
        %1214 = vmatprep.subr.mxu0 0.0
        %1215 = vmatpush1.msra.mxu0 0.0
        %1216 = vmatprep.subr.mxu0 0.0
        %1217 = vmatpush1.msra.mxu0 0.0
        %1218 = vmatprep.subr.mxu0 0.0
        %1219 = vmatpush1.msra.mxu0 0.0
        %1220 = vmatprep.subr.mxu0 0.0
        %1221 = vmatpush1.msra.mxu0 0.0
        %1222 = vmatprep.subr.mxu0 0.0
        %1223 = vmatpush1.msra.mxu0 0.0
        %1224 = vmatprep.subr.mxu0 0.0
        %1225 = vmatpush1.msra.mxu0 0.0
        %1226 = vmatprep.subr.mxu0 0.0
        %1227 = vmatpush1.msra.mxu0 0.0
        %1228 = vmatprep.subr.mxu0 0.0
        %1229 = vmatpush1.msra.mxu0 0.0
        %1230 = vmatprep.subr.mxu0 0.0
        %1231 = vmatpush1.msra.mxu0 0.0
        %1232 = vmatprep.subr.mxu0 0.0
        %1233 = vmatpush1.msra.mxu0 0.0
        %1234 = vmatprep.subr.mxu0 0.0
        %1235 = vmatpush1.msra.mxu0 0.0
        %1236 = vmatprep.subr.mxu0 0.0
        %1237 = vmatpush1.msra.mxu0 0.0
        %1238 = vmatprep.subr.mxu0 0.0
        %1239 = vmatpush1.msra.mxu0 0.0
        %1240 = vmatprep.subr.mxu0 0.0
        %1241 = vmatpush1.msra.mxu0 0.0
        %1242 = vmatprep.subr.mxu0 0.0
        %1243 = vmatpush1.msra.mxu0 0.0
        %1244 = vmatprep.subr.mxu0 0.0
        %1245 = vmatpush1.msra.mxu0 0.0
        %1246 = vmatprep.subr.mxu0 0.0
        %1247 = vmatpush1.msra.mxu0 0.0
        %1248 = vmatprep.subr.mxu0 0.0
        %1249 = vmatpush1.msra.mxu0 0.0
        %1250 = vmatprep.subr.mxu0 0.0
        %1251 = vmatpush1.msra.mxu0 0.0
        %1252 = vmatprep.subr.mxu0 0.0
        %1253 = vmatpush1.msra.mxu0 0.0
        %1254 = vmatprep.subr.mxu0 0.0
        %1255 = vmatpush1.msra.mxu0 0.0
        %1256 = vmatprep.subr.mxu0 0.0
        %1257 = vmatpush1.msra.mxu0 0.0
        %1258 = vmatprep.subr.mxu0 0.0
        %1259 = vmatpush1.msra.mxu0 0.0
        %1260 = vmatprep.subr.mxu0 0.0
        %1261 = vmatpush1.msra.mxu0 0.0
        %1262 = vmatprep.subr.mxu0 0.0
        %1263 = vmatpush1.msra.mxu0 0.0
        %1264 = vmatprep.subr.mxu0 0.0
        %1265 = vmatpush1.msra.mxu0 0.0
        %1266 = vmatprep.subr.mxu0 0.0
        %1267 = vmatpush1.msra.mxu0 0.0
        %1268 = vmatprep.subr.mxu0 0.0
        %1269 = vmatpush1.msra.mxu0 0.0
        %1270 = vmatprep.subr.mxu0 0.0
        %1271 = vmatpush1.msra.mxu0 0.0
        %1272 = vmatprep.mubr.f32.mxu0 0.0
        %1273 = vmatmul.mubr.f32.gmra.mrb[0].mxu0 %v1206
        %v1274 = vpop.f32.mrb[0].mxu0
        %v1275 = vadd.f32 0.0, %v1274
        %v1276 = vpop.f32.mrb[0].mxu0
        %1277 = vdwg.mxu0
        %1279 = vrot.lane.b32.xlu0 %v1275, 8
        %v1280 = vpop.permute.xlu0 %1279
        %vm1282 = vcmask 130112
        %1283 = vst.msk [vmem:[#allocation4] sm:$0xff] %vm1282, %v1280
        %1284 = vrot.lane.b32.xlu0 %v769, 112
        %v1285 = vpop.permute.xlu0 %1284
        %1286 = vrot.lane.b32.xlu0 %v859, 112
        %v1287 = vpop.permute.xlu0 %1286
        %v1288 = vsel %vm950, %v1285, 0
        %v1290 = vsel %vm950, %v1287, 0
        %1292 = vmatprep.subr.mxu0 0.0
        %1293 = vmatpush1.xpose.msra.mxu0 %v1290
        %1294 = vmatprep.subr.mxu0 0.0
        %1295 = vmatpush1.xpose.msra.mxu0 0.0
        %1296 = vmatprep.subr.mxu0 0.0
        %1297 = vmatpush1.xpose.msra.mxu0 0.0
        %1298 = vmatprep.subr.mxu0 0.0
        %1299 = vmatpush1.xpose.msra.mxu0 0.0
        %1300 = vmatprep.subr.mxu0 0.0
        %1301 = vmatpush1.xpose.msra.mxu0 0.0
        %1302 = vmatprep.subr.mxu0 0.0
        %1303 = vmatpush1.xpose.msra.mxu0 0.0
        %1304 = vmatprep.subr.mxu0 0.0
        %1305 = vmatpush1.xpose.msra.mxu0 0.0
        %1306 = vmatprep.subr.mxu0 0.0
        %1307 = vmatpush1.xpose.msra.mxu0 0.0
        %1308 = vmatprep.subr.mxu0 0.0
        %1309 = vmatpush1.xpose.msra.mxu0 0.0
        %1310 = vmatprep.subr.mxu0 0.0
        %1311 = vmatpush1.xpose.msra.mxu0 0.0
        %1312 = vmatprep.subr.mxu0 0.0
        %1313 = vmatpush1.xpose.msra.mxu0 0.0
        %1314 = vmatprep.subr.mxu0 0.0
        %1315 = vmatpush1.xpose.msra.mxu0 0.0
        %1316 = vmatprep.subr.mxu0 0.0
        %1317 = vmatpush1.xpose.msra.mxu0 0.0
        %1318 = vmatprep.subr.mxu0 0.0
        %1319 = vmatpush1.xpose.msra.mxu0 0.0
        %1320 = vmatprep.subr.mxu0 0.0
        %1321 = vmatpush1.xpose.msra.mxu0 0.0
        %1322 = vmatprep.subr.mxu0 0.0
        %1323 = vmatpush1.xpose.msra.mxu0 0.0
        %1324 = vmatprep.subr.mxu0 0.0
        %1325 = vmatpush1.xpose.msra.mxu0 0.0
        %1326 = vmatprep.subr.mxu0 0.0
        %1327 = vmatpush1.xpose.msra.mxu0 0.0
        %1328 = vmatprep.subr.mxu0 0.0
        %1329 = vmatpush1.xpose.msra.mxu0 0.0
        %1330 = vmatprep.subr.mxu0 0.0
        %1331 = vmatpush1.xpose.msra.mxu0 0.0
        %1332 = vmatprep.subr.mxu0 0.0
        %1333 = vmatpush1.xpose.msra.mxu0 0.0
        %1334 = vmatprep.subr.mxu0 0.0
        %1335 = vmatpush1.xpose.msra.mxu0 0.0
        %1336 = vmatprep.subr.mxu0 0.0
        %1337 = vmatpush1.xpose.msra.mxu0 0.0
        %1338 = vmatprep.subr.mxu0 0.0
        %1339 = vmatpush1.xpose.msra.mxu0 0.0
        %1340 = vmatprep.subr.mxu0 0.0
        %1341 = vmatpush1.xpose.msra.mxu0 0.0
        %1342 = vmatprep.subr.mxu0 0.0
        %1343 = vmatpush1.xpose.msra.mxu0 0.0
        %1344 = vmatprep.subr.mxu0 0.0
        %1345 = vmatpush1.xpose.msra.mxu0 0.0
        %1346 = vmatprep.subr.mxu0 0.0
        %1347 = vmatpush1.xpose.msra.mxu0 0.0
        %1348 = vmatprep.subr.mxu0 0.0
        %1349 = vmatpush1.xpose.msra.mxu0 0.0
        %1350 = vmatprep.subr.mxu0 0.0
        %1351 = vmatpush1.xpose.msra.mxu0 0.0
        %1352 = vmatprep.subr.mxu0 0.0
        %1353 = vmatpush1.xpose.msra.mxu0 0.0
        %1354 = vmatprep.subr.mxu0 0.0
        %1355 = vmatpush1.xpose.msra.mxu0 0.0
        %1356 = vmatprep.mubr.f32.mxu0 0.0
        %1357 = vmatmul.mubr.f32.gmra.mrb[0].mxu0 %v1288
        %v1358 = vpop.f32.mrb[0].mxu0
        %v1359 = vadd.f32 0.0, %v1358
        %v1360 = vpop.f32.mrb[0].mxu0
        %1361 = vdwg.mxu0
        %v1362 = vsel %vm950, %v1359, -inf
        %1363 = vmax.xlane.f32.xlu0 %v1362
        %v1364 = vpop.xlane.xlu0 %1363
        %v1365 = vsub.f32 %v1359, %v1364
        %v1366 = vmul.f32 %v1365, 1.442695
        %v1367 = vpow.pop %v1366
        %v1368 = vsel %vm950, %v1367, 0.0
        %1369 = vadd.xlane.f32.xlu0 %v1368
        %v1370 = vpop.xlane.xlu0 %1369
        %v1371 = vrcp.pop %v1370
        %v1372 = vmul.f32 %v1367, %v1371
        %1373 = vrot.lane.b32.xlu0 %v947, 112
        %v1374 = vpop.permute.xlu0 %1373
        %v1377 = vsel %vm950, %v1372, 0
        %1379 = vmatprep.subr.mxu0 0.0
        %1380 = vmatpush1.msra.mxu0 %v1374
        %1381 = vmatprep.subr.mxu0 0.0
        %1382 = vmatpush1.msra.mxu0 0.0
        %1383 = vmatprep.subr.mxu0 0.0
        %1384 = vmatpush1.msra.mxu0 0.0
        %1385 = vmatprep.subr.mxu0 0.0
        %1386 = vmatpush1.msra.mxu0 0.0
        %1387 = vmatprep.subr.mxu0 0.0
        %1388 = vmatpush1.msra.mxu0 0.0
        %1389 = vmatprep.subr.mxu0 0.0
        %1390 = vmatpush1.msra.mxu0 0.0
        %1391 = vmatprep.subr.mxu0 0.0
        %1392 = vmatpush1.msra.mxu0 0.0
        %1393 = vmatprep.subr.mxu0 0.0
        %1394 = vmatpush1.msra.mxu0 0.0
        %1395 = vmatprep.subr.mxu0 0.0
        %1396 = vmatpush1.msra.mxu0 0.0
        %1397 = vmatprep.subr.mxu0 0.0
        %1398 = vmatpush1.msra.mxu0 0.0
        %1399 = vmatprep.subr.mxu0 0.0
        %1400 = vmatpush1.msra.mxu0 0.0
        %1401 = vmatprep.subr.mxu0 0.0
        %1402 = vmatpush1.msra.mxu0 0.0
        %1403 = vmatprep.subr.mxu0 0.0
        %1404 = vmatpush1.msra.mxu0 0.0
        %1405 = vmatprep.subr.mxu0 0.0
        %1406 = vmatpush1.msra.mxu0 0.0
        %1407 = vmatprep.subr.mxu0 0.0
        %1408 = vmatpush1.msra.mxu0 0.0
        %1409 = vmatprep.subr.mxu0 0.0
        %1410 = vmatpush1.msra.mxu0 0.0
        %1411 = vmatprep.subr.mxu0 0.0
        %1412 = vmatpush1.msra.mxu0 0.0
        %1413 = vmatprep.subr.mxu0 0.0
        %1414 = vmatpush1.msra.mxu0 0.0
        %1415 = vmatprep.subr.mxu0 0.0
        %1416 = vmatpush1.msra.mxu0 0.0
        %1417 = vmatprep.subr.mxu0 0.0
        %1418 = vmatpush1.msra.mxu0 0.0
        %1419 = vmatprep.subr.mxu0 0.0
        %1420 = vmatpush1.msra.mxu0 0.0
        %1421 = vmatprep.subr.mxu0 0.0
        %1422 = vmatpush1.msra.mxu0 0.0
        %1423 = vmatprep.subr.mxu0 0.0
        %1424 = vmatpush1.msra.mxu0 0.0
        %1425 = vmatprep.subr.mxu0 0.0
        %1426 = vmatpush1.msra.mxu0 0.0
        %1427 = vmatprep.subr.mxu0 0.0
        %1428 = vmatpush1.msra.mxu0 0.0
        %1429 = vmatprep.subr.mxu0 0.0
        %1430 = vmatpush1.msra.mxu0 0.0
        %1431 = vmatprep.subr.mxu0 0.0
        %1432 = vmatpush1.msra.mxu0 0.0
        %1433 = vmatprep.subr.mxu0 0.0
        %1434 = vmatpush1.msra.mxu0 0.0
        %1435 = vmatprep.subr.mxu0 0.0
        %1436 = vmatpush1.msra.mxu0 0.0
        %1437 = vmatprep.subr.mxu0 0.0
        %1438 = vmatpush1.msra.mxu0 0.0
        %1439 = vmatprep.subr.mxu0 0.0
        %1440 = vmatpush1.msra.mxu0 0.0
        %1441 = vmatprep.subr.mxu0 0.0
        %1442 = vmatpush1.msra.mxu0 0.0
        %1443 = vmatprep.mubr.f32.mxu0 0.0
        %1444 = vmatmul.mubr.f32.gmra.mrb[0].mxu0 %v1377
        %v1445 = vpop.f32.mrb[0].mxu0
        %v1446 = vadd.f32 0.0, %v1445
        %v1447 = vpop.f32.mrb[0].mxu0
        %1448 = vdwg.mxu0
        %1450 = vrot.lane.b32.xlu0 %v1446, 16
        %v1451 = vpop.permute.xlu0 %1450
        %vm1453 = vcmask 195712
        %1454 = vst.msk [vmem:[#allocation4] sm:$0xff] %vm1453, %v1451
        %1455 = vrot.lane.b32.xlu0 %v769, 104
        %v1456 = vpop.permute.xlu0 %1455
        %1457 = vrot.lane.b32.xlu0 %v859, 104
        %v1458 = vpop.permute.xlu0 %1457
        %v1459 = vsel %vm950, %v1456, 0
        %v1461 = vsel %vm950, %v1458, 0
        %1463 = vmatprep.subr.mxu0 0.0
        %1464 = vmatpush1.xpose.msra.mxu0 %v1461
        %1465 = vmatprep.subr.mxu0 0.0
        %1466 = vmatpush1.xpose.msra.mxu0 0.0
        %1467 = vmatprep.subr.mxu0 0.0
        %1468 = vmatpush1.xpose.msra.mxu0 0.0
        %1469 = vmatprep.subr.mxu0 0.0
        %1470 = vmatpush1.xpose.msra.mxu0 0.0
        %1471 = vmatprep.subr.mxu0 0.0
        %1472 = vmatpush1.xpose.msra.mxu0 0.0
        %1473 = vmatprep.subr.mxu0 0.0
        %1474 = vmatpush1.xpose.msra.mxu0 0.0
        %1475 = vmatprep.subr.mxu0 0.0
        %1476 = vmatpush1.xpose.msra.mxu0 0.0
        %1477 = vmatprep.subr.mxu0 0.0
        %1478 = vmatpush1.xpose.msra.mxu0 0.0
        %1479 = vmatprep.subr.mxu0 0.0
        %1480 = vmatpush1.xpose.msra.mxu0 0.0
        %1481 = vmatprep.subr.mxu0 0.0
        %1482 = vmatpush1.xpose.msra.mxu0 0.0
        %1483 = vmatprep.subr.mxu0 0.0
        %1484 = vmatpush1.xpose.msra.mxu0 0.0
        %1485 = vmatprep.subr.mxu0 0.0
        %1486 = vmatpush1.xpose.msra.mxu0 0.0
        %1487 = vmatprep.subr.mxu0 0.0
        %1488 = vmatpush1.xpose.msra.mxu0 0.0
        %1489 = vmatprep.subr.mxu0 0.0
        %1490 = vmatpush1.xpose.msra.mxu0 0.0
        %1491 = vmatprep.subr.mxu0 0.0
        %1492 = vmatpush1.xpose.msra.mxu0 0.0
        %1493 = vmatprep.subr.mxu0 0.0
        %1494 = vmatpush1.xpose.msra.mxu0 0.0
        %1495 = vmatprep.subr.mxu0 0.0
        %1496 = vmatpush1.xpose.msra.mxu0 0.0
        %1497 = vmatprep.subr.mxu0 0.0
        %1498 = vmatpush1.xpose.msra.mxu0 0.0
        %1499 = vmatprep.subr.mxu0 0.0
        %1500 = vmatpush1.xpose.msra.mxu0 0.0
        %1501 = vmatprep.subr.mxu0 0.0
        %1502 = vmatpush1.xpose.msra.mxu0 0.0
        %1503 = vmatprep.subr.mxu0 0.0
        %1504 = vmatpush1.xpose.msra.mxu0 0.0
        %1505 = vmatprep.subr.mxu0 0.0
        %1506 = vmatpush1.xpose.msra.mxu0 0.0
        %1507 = vmatprep.subr.mxu0 0.0
        %1508 = vmatpush1.xpose.msra.mxu0 0.0
        %1509 = vmatprep.subr.mxu0 0.0
        %1510 = vmatpush1.xpose.msra.mxu0 0.0
        %1511 = vmatprep.subr.mxu0 0.0
        %1512 = vmatpush1.xpose.msra.mxu0 0.0
        %1513 = vmatprep.subr.mxu0 0.0
        %1514 = vmatpush1.xpose.msra.mxu0 0.0
        %1515 = vmatprep.subr.mxu0 0.0
        %1516 = vmatpush1.xpose.msra.mxu0 0.0
        %1517 = vmatprep.subr.mxu0 0.0
        %1518 = vmatpush1.xpose.msra.mxu0 0.0
        %1519 = vmatprep.subr.mxu0 0.0
        %1520 = vmatpush1.xpose.msra.mxu0 0.0
        %1521 = vmatprep.subr.mxu0 0.0
        %1522 = vmatpush1.xpose.msra.mxu0 0.0
        %1523 = vmatprep.subr.mxu0 0.0
        %1524 = vmatpush1.xpose.msra.mxu0 0.0
        %1525 = vmatprep.subr.mxu0 0.0
        %1526 = vmatpush1.xpose.msra.mxu0 0.0
        %1527 = vmatprep.mubr.f32.mxu0 0.0
        %1528 = vmatmul.mubr.f32.gmra.mrb[0].mxu0 %v1459
        %v1529 = vpop.f32.mrb[0].mxu0
        %v1530 = vadd.f32 0.0, %v1529
        %v1531 = vpop.f32.mrb[0].mxu0
        %1532 = vdwg.mxu0
        %v1533 = vsel %vm950, %v1530, -inf
        %1534 = vmax.xlane.f32.xlu0 %v1533
        %v1535 = vpop.xlane.xlu0 %1534
        %v1536 = vsub.f32 %v1530, %v1535
        %v1537 = vmul.f32 %v1536, 1.442695
        %v1538 = vpow.pop %v1537
        %v1539 = vsel %vm950, %v1538, 0.0
        %1540 = vadd.xlane.f32.xlu0 %v1539
        %v1541 = vpop.xlane.xlu0 %1540
        %v1542 = vrcp.pop %v1541
        %v1543 = vmul.f32 %v1538, %v1542
        %1544 = vrot.lane.b32.xlu0 %v947, 104
        %v1545 = vpop.permute.xlu0 %1544
        %v1548 = vsel %vm950, %v1543, 0
        %1550 = vmatprep.subr.mxu0 0.0
        %1551 = vmatpush1.msra.mxu0 %v1545
        %1552 = vmatprep.subr.mxu0 0.0
        %1553 = vmatpush1.msra.mxu0 0.0
        %1554 = vmatprep.subr.mxu0 0.0
        %1555 = vmatpush1.msra.mxu0 0.0
        %1556 = vmatprep.subr.mxu0 0.0
        %1557 = vmatpush1.msra.mxu0 0.0
        %1558 = vmatprep.subr.mxu0 0.0
        %1559 = vmatpush1.msra.mxu0 0.0
        %1560 = vmatprep.subr.mxu0 0.0
        %1561 = vmatpush1.msra.mxu0 0.0
        %1562 = vmatprep.subr.mxu0 0.0
        %1563 = vmatpush1.msra.mxu0 0.0
        %1564 = vmatprep.subr.mxu0 0.0
        %1565 = vmatpush1.msra.mxu0 0.0
        %1566 = vmatprep.subr.mxu0 0.0
        %1567 = vmatpush1.msra.mxu0 0.0
        %1568 = vmatprep.subr.mxu0 0.0
        %1569 = vmatpush1.msra.mxu0 0.0
        %1570 = vmatprep.subr.mxu0 0.0
        %1571 = vmatpush1.msra.mxu0 0.0
        %1572 = vmatprep.subr.mxu0 0.0
        %1573 = vmatpush1.msra.mxu0 0.0
        %1574 = vmatprep.subr.mxu0 0.0
        %1575 = vmatpush1.msra.mxu0 0.0
        %1576 = vmatprep.subr.mxu0 0.0
        %1577 = vmatpush1.msra.mxu0 0.0
        %1578 = vmatprep.subr.mxu0 0.0
        %1579 = vmatpush1.msra.mxu0 0.0
        %1580 = vmatprep.subr.mxu0 0.0
        %1581 = vmatpush1.msra.mxu0 0.0
        %1582 = vmatprep.subr.mxu0 0.0
        %1583 = vmatpush1.msra.mxu0 0.0
        %1584 = vmatprep.subr.mxu0 0.0
        %1585 = vmatpush1.msra.mxu0 0.0
        %1586 = vmatprep.subr.mxu0 0.0
        %1587 = vmatpush1.msra.mxu0 0.0
        %1588 = vmatprep.subr.mxu0 0.0
        %1589 = vmatpush1.msra.mxu0 0.0
        %1590 = vmatprep.subr.mxu0 0.0
        %1591 = vmatpush1.msra.mxu0 0.0
        %1592 = vmatprep.subr.mxu0 0.0
        %1593 = vmatpush1.msra.mxu0 0.0
        %1594 = vmatprep.subr.mxu0 0.0
        %1595 = vmatpush1.msra.mxu0 0.0
        %1596 = vmatprep.subr.mxu0 0.0
        %1597 = vmatpush1.msra.mxu0 0.0
        %1598 = vmatprep.subr.mxu0 0.0
        %1599 = vmatpush1.msra.mxu0 0.0
        %1600 = vmatprep.subr.mxu0 0.0
        %1601 = vmatpush1.msra.mxu0 0.0
        %1602 = vmatprep.subr.mxu0 0.0
        %1603 = vmatpush1.msra.mxu0 0.0
        %1604 = vmatprep.subr.mxu0 0.0
        %1605 = vmatpush1.msra.mxu0 0.0
        %1606 = vmatprep.subr.mxu0 0.0
        %1607 = vmatpush1.msra.mxu0 0.0
        %1608 = vmatprep.subr.mxu0 0.0
        %1609 = vmatpush1.msra.mxu0 0.0
        %1610 = vmatprep.subr.mxu0 0.0
        %1611 = vmatpush1.msra.mxu0 0.0
        %1612 = vmatprep.subr.mxu0 0.0
        %1613 = vmatpush1.msra.mxu0 0.0
        %1614 = vmatprep.mubr.f32.mxu0 0.0
        %1615 = vmatmul.mubr.f32.gmra.mrb[0].mxu0 %v1548
        %v1616 = vpop.f32.mrb[0].mxu0
        %v1617 = vadd.f32 0.0, %v1616
        %v1618 = vpop.f32.mrb[0].mxu0
        %1619 = vdwg.mxu0
        %1621 = vrot.lane.b32.xlu0 %v1617, 24
        %v1622 = vpop.permute.xlu0 %1621
        %vm1624 = vcmask 261312
        %1625 = vst.msk [vmem:[#allocation4] sm:$0xff] %vm1624, %v1622
        %v1626 = vld [vmem:[#allocation4] sm:$0xff]
        %v1627 = vlaneseq
        %v1628 = vshrl.u32 %v1627, 7
        %v1629 = vsub.s32 0, %v1628
        %v1630 = vrot.slane %v691, %v1629
        %v1632 = vsel %vm698, %v1626, 0
        %1634 = vmatprep.subr.mxu0 0.0
        %1635 = vmatpush1.msra.mxu0 %v683
        %1636 = vmatprep.subr.mxu0 0.0
        %1637 = vmatpush1.msra.mxu0 %v684
        %1638 = vmatprep.subr.mxu0 0.0
        %1639 = vmatpush1.msra.mxu0 %v685
        %1640 = vmatprep.subr.mxu0 0.0
        %1641 = vmatpush1.msra.mxu0 %v686
        %1642 = vmatprep.subr.mxu0 0.0
        %1643 = vmatpush1.msra.mxu0 0.0
        %1644 = vmatprep.subr.mxu0 0.0
        %1645 = vmatpush1.msra.mxu0 0.0
        %1646 = vmatprep.subr.mxu0 0.0
        %1647 = vmatpush1.msra.mxu0 0.0
        %1648 = vmatprep.subr.mxu0 0.0
        %1649 = vmatpush1.msra.mxu0 0.0
        %1650 = vmatprep.subr.mxu0 0.0
        %1651 = vmatpush1.msra.mxu0 0.0
        %1652 = vmatprep.subr.mxu0 0.0
        %1653 = vmatpush1.msra.mxu0 0.0
        %1654 = vmatprep.subr.mxu0 0.0
        %1655 = vmatpush1.msra.mxu0 0.0
        %1656 = vmatprep.subr.mxu0 0.0
        %1657 = vmatpush1.msra.mxu0 0.0
        %1658 = vmatprep.subr.mxu0 0.0
        %1659 = vmatpush1.msra.mxu0 0.0
        %1660 = vmatprep.subr.mxu0 0.0
        %1661 = vmatpush1.msra.mxu0 0.0
        %1662 = vmatprep.subr.mxu0 0.0
        %1663 = vmatpush1.msra.mxu0 0.0
        %1664 = vmatprep.subr.mxu0 0.0
        %1665 = vmatpush1.msra.mxu0 0.0
        %1666 = vmatprep.subr.mxu0 0.0
        %1667 = vmatpush1.msra.mxu0 0.0
        %1668 = vmatprep.subr.mxu0 0.0
        %1669 = vmatpush1.msra.mxu0 0.0
        %1670 = vmatprep.subr.mxu0 0.0
        %1671 = vmatpush1.msra.mxu0 0.0
        %1672 = vmatprep.subr.mxu0 0.0
        %1673 = vmatpush1.msra.mxu0 0.0
        %1674 = vmatprep.subr.mxu0 0.0
        %1675 = vmatpush1.msra.mxu0 0.0
        %1676 = vmatprep.subr.mxu0 0.0
        %1677 = vmatpush1.msra.mxu0 0.0
        %1678 = vmatprep.subr.mxu0 0.0
        %1679 = vmatpush1.msra.mxu0 0.0
        %1680 = vmatprep.subr.mxu0 0.0
        %1681 = vmatpush1.msra.mxu0 0.0
        %1682 = vmatprep.subr.mxu0 0.0
        %1683 = vmatpush1.msra.mxu0 0.0
        %1684 = vmatprep.subr.mxu0 0.0
        %1685 = vmatpush1.msra.mxu0 0.0
        %1686 = vmatprep.subr.mxu0 0.0
        %1687 = vmatpush1.msra.mxu0 0.0
        %1688 = vmatprep.subr.mxu0 0.0
        %1689 = vmatpush1.msra.mxu0 0.0
        %1690 = vmatprep.subr.mxu0 0.0
        %1691 = vmatpush1.msra.mxu0 0.0
        %1692 = vmatprep.subr.mxu0 0.0
        %1693 = vmatpush1.msra.mxu0 0.0
        %1694 = vmatprep.subr.mxu0 0.0
        %1695 = vmatpush1.msra.mxu0 0.0
        %1696 = vmatprep.subr.mxu0 0.0
        %1697 = vmatpush1.msra.mxu0 0.0
        %1698 = vmatprep.mubr.f32.mxu0 0.0
        %1699 = vmatmul.mubr.f32.gmra.mrb[0].mxu0 %v1632
        %v1700 = vpop.f32.mrb[0].mxu0
        %v1701 = vadd.f32 %v1630, %v1700
        %v1702 = vpop.f32.mrb[0].mxu0
        %1703 = vdwg.mxu0
        %v1704 = vadd.f32 %v672, %v1701
        %v1705 = vsel %vm698, %v1704, 0.0
        %1706 = vadd.xlane.f32.xlu0 %v1705
        %v1707 = vpop.xlane.xlu0 %1706
        %v1708 = vrcp.pop 32.0
        %v1709 = vmul.f32 %v1707, %v1708
        %v1710 = vsub.f32 %v1704, %v1709
        %v1711 = vmul.f32 %v1710, %v1710
        %v1712 = vsel %vm698, %v1711, 0.0
        %1713 = vadd.xlane.f32.xlu0 %v1712
        %v1714 = vpop.xlane.xlu0 %1713
        %v1715 = vmul.f32 %v1714, %v1708
        %v1716 = vadd.f32 %v1715, 1e-05
        %v1717 = vrsqrt.pop %v1716
        %v1718 = vmul.f32 %v1710, %v1717
        %v1719 = vlaneseq
        %v1720 = vshrl.u32 %v1719, 7
        %v1721 = vsub.s32 0, %v1720
        %v1722 = vrot.slane %v692, %v1721
        %v1723 = vmul.f32 %v1718, %v1722
        %v1724 = vlaneseq
        %v1725 = vshrl.u32 %v1724, 7
        %v1726 = vsub.s32 1, %v1725
        %v1727 = vrot.slane %v692, %v1726
        %v1728 = vadd.f32 %v1723, %v1727
        %v1729 = vadd.f32 %v1728, %v673
        %v1730 = vld [vmem:[#allocation3] sm:$0xff]
        %v1731 = vld [vmem:[#allocation3 + $0x8] sm:$0xff]
        %s1732 = scalar_lea.vmem [#allocation3], 16
        %v1733 = vld [vmem:[%s1732] sm:$0xff]
        %v1734 = vld [vmem:[%s1732 + $0x8] sm:$0xff]
        %v1735 = vlaneseq
        %v1736 = vshrl.u32 %v1735, 7
        %v1737 = vsub.s32 1, %v1736
        %v1738 = vrot.slane %v682, %v1737
        %v1740 = vsel %vm698, %v1729, 0
        %1742 = vmatprep.subr.mxu0 0.0
        %1743 = vmatpush1.msra.mxu0 %v678
        %1744 = vmatprep.subr.mxu0 0.0
        %1745 = vmatpush1.msra.mxu0 %v679
        %1746 = vmatprep.subr.mxu0 0.0
        %1747 = vmatpush1.msra.mxu0 %v680
        %1748 = vmatprep.subr.mxu0 0.0
        %1749 = vmatpush1.msra.mxu0 %v681
        %1750 = vmatprep.subr.mxu0 0.0
        %1751 = vmatpush1.msra.mxu0 0.0
        %1752 = vmatprep.subr.mxu0 0.0
        %1753 = vmatpush1.msra.mxu0 0.0
        %1754 = vmatprep.subr.mxu0 0.0
        %1755 = vmatpush1.msra.mxu0 0.0
        %1756 = vmatprep.subr.mxu0 0.0
        %1757 = vmatpush1.msra.mxu0 0.0
        %1758 = vmatprep.subr.mxu0 0.0
        %1759 = vmatpush1.msra.mxu0 0.0
        %1760 = vmatprep.subr.mxu0 0.0
        %1761 = vmatpush1.msra.mxu0 0.0
        %1762 = vmatprep.subr.mxu0 0.0
        %1763 = vmatpush1.msra.mxu0 0.0
        %1764 = vmatprep.subr.mxu0 0.0
        %1765 = vmatpush1.msra.mxu0 0.0
        %1766 = vmatprep.subr.mxu0 0.0
        %1767 = vmatpush1.msra.mxu0 0.0
        %1768 = vmatprep.subr.mxu0 0.0
        %1769 = vmatpush1.msra.mxu0 0.0
        %1770 = vmatprep.subr.mxu0 0.0
        %1771 = vmatpush1.msra.mxu0 0.0
        %1772 = vmatprep.subr.mxu0 0.0
        %1773 = vmatpush1.msra.mxu0 0.0
        %1774 = vmatprep.subr.mxu0 0.0
        %1775 = vmatpush1.msra.mxu0 0.0
        %1776 = vmatprep.subr.mxu0 0.0
        %1777 = vmatpush1.msra.mxu0 0.0
        %1778 = vmatprep.subr.mxu0 0.0
        %1779 = vmatpush1.msra.mxu0 0.0
        %1780 = vmatprep.subr.mxu0 0.0
        %1781 = vmatpush1.msra.mxu0 0.0
        %1782 = vmatprep.subr.mxu0 0.0
        %1783 = vmatpush1.msra.mxu0 0.0
        %1784 = vmatprep.subr.mxu0 0.0
        %1785 = vmatpush1.msra.mxu0 0.0
        %1786 = vmatprep.subr.mxu0 0.0
        %1787 = vmatpush1.msra.mxu0 0.0
        %1788 = vmatprep.subr.mxu0 0.0
        %1789 = vmatpush1.msra.mxu0 0.0
        %1790 = vmatprep.subr.mxu0 0.0
        %1791 = vmatpush1.msra.mxu0 0.0
        %1792 = vmatprep.subr.mxu0 0.0
        %1793 = vmatpush1.msra.mxu0 0.0
        %1794 = vmatprep.subr.mxu0 0.0
        %1795 = vmatpush1.msra.mxu0 0.0
        %1796 = vmatprep.subr.mxu0 0.0
        %1797 = vmatpush1.msra.mxu0 0.0
        %1798 = vmatprep.subr.mxu0 0.0
        %1799 = vmatpush1.msra.mxu0 0.0
        %1800 = vmatprep.subr.mxu0 0.0
        %1801 = vmatpush1.msra.mxu0 0.0
        %1802 = vmatprep.subr.mxu0 0.0
        %1803 = vmatpush1.msra.mxu0 0.0
        %1804 = vmatprep.subr.mxu0 0.0
        %1805 = vmatpush1.msra.mxu0 0.0
        %1806 = vmatprep.mubr.f32.mxu0 0.0
        %1807 = vmatmul.mubr.f32.gmra.mrb[0].mxu0 %v1740
        %v1808 = vpop.f32.mrb[0].mxu0
        %v1809 = vadd.f32 %v1738, %v1808
        %v1810 = vpop.f32.mrb[0].mxu0
        %1811 = vdwg.mxu0
        %1816 = vrot.lane.b32.xlu0 %v678, 96
        %v1817 = vpop.permute.xlu0 %1816
        %1818 = vrot.lane.b32.xlu0 %v679, 96
        %v1819 = vpop.permute.xlu0 %1818
        %1820 = vrot.lane.b32.xlu0 %v680, 96
        %v1821 = vpop.permute.xlu0 %1820
        %1822 = vrot.lane.b32.xlu0 %v681, 96
        %v1823 = vpop.permute.xlu0 %1822
        %1829 = vrot.lane.b32.xlu0 %v1738, 96
        %v1830 = vpop.permute.xlu0 %1829
        %v1833 = vsel %vm698, %v1730, 0
        %v1836 = vsel %vm698, %v1731, 0
        %1838 = vmatprep.subr.mxu0 0.0
        %1839 = vmatpush1.msra.mxu0 %v1817
        %1840 = vmatprep.subr.mxu0 0.0
        %1841 = vmatpush1.msra.mxu0 %v1819
        %1842 = vmatprep.subr.mxu0 0.0
        %1843 = vmatpush1.msra.mxu0 %v1821
        %1844 = vmatprep.subr.mxu0 0.0
        %1845 = vmatpush1.msra.mxu0 %v1823
        %1846 = vmatprep.subr.mxu0 0.0
        %1847 = vmatpush1.msra.mxu0 0.0
        %1848 = vmatprep.subr.mxu0 0.0
        %1849 = vmatpush1.msra.mxu0 0.0
        %1850 = vmatprep.subr.mxu0 0.0
        %1851 = vmatpush1.msra.mxu0 0.0
        %1852 = vmatprep.subr.mxu0 0.0
        %1853 = vmatpush1.msra.mxu0 0.0
        %1854 = vmatprep.subr.mxu0 0.0
        %1855 = vmatpush1.msra.mxu0 0.0
        %1856 = vmatprep.subr.mxu0 0.0
        %1857 = vmatpush1.msra.mxu0 0.0
        %1858 = vmatprep.subr.mxu0 0.0
        %1859 = vmatpush1.msra.mxu0 0.0
        %1860 = vmatprep.subr.mxu0 0.0
        %1861 = vmatpush1.msra.mxu0 0.0
        %1862 = vmatprep.subr.mxu0 0.0
        %1863 = vmatpush1.msra.mxu0 0.0
        %1864 = vmatprep.subr.mxu0 0.0
        %1865 = vmatpush1.msra.mxu0 0.0
        %1866 = vmatprep.subr.mxu0 0.0
        %1867 = vmatpush1.msra.mxu0 0.0
        %1868 = vmatprep.subr.mxu0 0.0
        %1869 = vmatpush1.msra.mxu0 0.0
        %1870 = vmatprep.subr.mxu0 0.0
        %1871 = vmatpush1.msra.mxu0 0.0
        %1872 = vmatprep.subr.mxu0 0.0
        %1873 = vmatpush1.msra.mxu0 0.0
        %1874 = vmatprep.subr.mxu0 0.0
        %1875 = vmatpush1.msra.mxu0 0.0
        %1876 = vmatprep.subr.mxu0 0.0
        %1877 = vmatpush1.msra.mxu0 0.0
        %1878 = vmatprep.subr.mxu0 0.0
        %1879 = vmatpush1.msra.mxu0 0.0
        %1880 = vmatprep.subr.mxu0 0.0
        %1881 = vmatpush1.msra.mxu0 0.0
        %1882 = vmatprep.subr.mxu0 0.0
        %1883 = vmatpush1.msra.mxu0 0.0
        %1884 = vmatprep.subr.mxu0 0.0
        %1885 = vmatpush1.msra.mxu0 0.0
        %1886 = vmatprep.subr.mxu0 0.0
        %1887 = vmatpush1.msra.mxu0 0.0
        %1888 = vmatprep.subr.mxu0 0.0
        %1889 = vmatpush1.msra.mxu0 0.0
        %1890 = vmatprep.subr.mxu0 0.0
        %1891 = vmatpush1.msra.mxu0 0.0
        %1892 = vmatprep.subr.mxu0 0.0
        %1893 = vmatpush1.msra.mxu0 0.0
        %1894 = vmatprep.subr.mxu0 0.0
        %1895 = vmatpush1.msra.mxu0 0.0
        %1896 = vmatprep.subr.mxu0 0.0
        %1897 = vmatpush1.msra.mxu0 0.0
        %1898 = vmatprep.subr.mxu0 0.0
        %1899 = vmatpush1.msra.mxu0 0.0
        %1900 = vmatprep.subr.mxu0 0.0
        %1901 = vmatpush1.msra.mxu0 0.0
        %1902 = vmatprep.mubr.f32.mxu0 0.0
        %1903 = vmatmul.mubr.f32.gmra.mrb[0].mxu0 %v1833
        %v1904 = vpop.f32.mrb[0].mxu0
        %v1905 = vadd.f32 %v1830, %v1904
        %v1906 = vpop.f32.mrb[0].mxu0
        %1907 = vmatprep.mubr.f32.mxu0 0.0
        %1908 = vmatmul.mubr.f32.gmra.mrb[0].mxu0 %v1836
        %v1909 = vpop.f32.mrb[0].mxu0
        %v1910 = vadd.f32 %v1830, %v1909
        %v1911 = vpop.f32.mrb[0].mxu0
        %1912 = vdwg.mxu0
        %1913 = vrot.lane.b32.xlu0 %v678, 64
        %v1914 = vpop.permute.xlu0 %1913
        %1915 = vrot.lane.b32.xlu0 %v679, 64
        %v1916 = vpop.permute.xlu0 %1915
        %1917 = vrot.lane.b32.xlu0 %v680, 64
        %v1918 = vpop.permute.xlu0 %1917
        %1919 = vrot.lane.b32.xlu0 %v681, 64
        %v1920 = vpop.permute.xlu0 %1919
        %1925 = vrot.lane.b32.xlu0 %v1738, 64
        %v1926 = vpop.permute.xlu0 %1925
        %v1929 = vsel %vm698, %v1733, 0
        %v1932 = vsel %vm698, %v1734, 0
        %1934 = vmatprep.subr.mxu0 0.0
        %1935 = vmatpush1.msra.mxu0 %v1914
        %1936 = vmatprep.subr.mxu0 0.0
        %1937 = vmatpush1.msra.mxu0 %v1916
        %1938 = vmatprep.subr.mxu0 0.0
        %1939 = vmatpush1.msra.mxu0 %v1918
        %1940 = vmatprep.subr.mxu0 0.0
        %1941 = vmatpush1.msra.mxu0 %v1920
        %1942 = vmatprep.subr.mxu0 0.0
        %1943 = vmatpush1.msra.mxu0 0.0
        %1944 = vmatprep.subr.mxu0 0.0
        %1945 = vmatpush1.msra.mxu0 0.0
        %1946 = vmatprep.subr.mxu0 0.0
        %1947 = vmatpush1.msra.mxu0 0.0
        %1948 = vmatprep.subr.mxu0 0.0
        %1949 = vmatpush1.msra.mxu0 0.0
        %1950 = vmatprep.subr.mxu0 0.0
        %1951 = vmatpush1.msra.mxu0 0.0
        %1952 = vmatprep.subr.mxu0 0.0
        %1953 = vmatpush1.msra.mxu0 0.0
        %1954 = vmatprep.subr.mxu0 0.0
        %1955 = vmatpush1.msra.mxu0 0.0
        %1956 = vmatprep.subr.mxu0 0.0
        %1957 = vmatpush1.msra.mxu0 0.0
        %1958 = vmatprep.subr.mxu0 0.0
        %1959 = vmatpush1.msra.mxu0 0.0
        %1960 = vmatprep.subr.mxu0 0.0
        %1961 = vmatpush1.msra.mxu0 0.0
        %1962 = vmatprep.subr.mxu0 0.0
        %1963 = vmatpush1.msra.mxu0 0.0
        %1964 = vmatprep.subr.mxu0 0.0
        %1965 = vmatpush1.msra.mxu0 0.0
        %1966 = vmatprep.subr.mxu0 0.0
        %1967 = vmatpush1.msra.mxu0 0.0
        %1968 = vmatprep.subr.mxu0 0.0
        %1969 = vmatpush1.msra.mxu0 0.0
        %1970 = vmatprep.subr.mxu0 0.0
        %1971 = vmatpush1.msra.mxu0 0.0
        %1972 = vmatprep.subr.mxu0 0.0
        %1973 = vmatpush1.msra.mxu0 0.0
        %1974 = vmatprep.subr.mxu0 0.0
        %1975 = vmatpush1.msra.mxu0 0.0
        %1976 = vmatprep.subr.mxu0 0.0
        %1977 = vmatpush1.msra.mxu0 0.0
        %1978 = vmatprep.subr.mxu0 0.0
        %1979 = vmatpush1.msra.mxu0 0.0
        %1980 = vmatprep.subr.mxu0 0.0
        %1981 = vmatpush1.msra.mxu0 0.0
        %1982 = vmatprep.subr.mxu0 0.0
        %1983 = vmatpush1.msra.mxu0 0.0
        %1984 = vmatprep.subr.mxu0 0.0
        %1985 = vmatpush1.msra.mxu0 0.0
        %1986 = vmatprep.subr.mxu0 0.0
        %1987 = vmatpush1.msra.mxu0 0.0
        %1988 = vmatprep.subr.mxu0 0.0
        %1989 = vmatpush1.msra.mxu0 0.0
        %1990 = vmatprep.subr.mxu0 0.0
        %1991 = vmatpush1.msra.mxu0 0.0
        %1992 = vmatprep.subr.mxu0 0.0
        %1993 = vmatpush1.msra.mxu0 0.0
        %1994 = vmatprep.subr.mxu0 0.0
        %1995 = vmatpush1.msra.mxu0 0.0
        %1996 = vmatprep.subr.mxu0 0.0
        %1997 = vmatpush1.msra.mxu0 0.0
        %1998 = vmatprep.mubr.f32.mxu0 0.0
        %1999 = vmatmul.mubr.f32.gmra.mrb[0].mxu0 %v1929
        %v2000 = vpop.f32.mrb[0].mxu0
        %v2001 = vadd.f32 %v1926, %v2000
        %v2002 = vpop.f32.mrb[0].mxu0
        %2003 = vmatprep.mubr.f32.mxu0 0.0
        %2004 = vmatmul.mubr.f32.gmra.mrb[0].mxu0 %v1932
        %v2005 = vpop.f32.mrb[0].mxu0
        %v2006 = vadd.f32 %v1926, %v2005
        %v2007 = vpop.f32.mrb[0].mxu0
        %2008 = vdwg.mxu0
        %v2010 = vsel %vm950, %v1809, 0
        %v2013 = vsel %vm950, %v1905, 0
        %v2016 = vsel %vm950, %v1910, 0
        %2018 = vmatprep.subr.mxu0 0.0
        %2019 = vmatpush1.xpose.msra.mxu0 %v2013
        %2020 = vmatprep.subr.mxu0 0.0
        %2021 = vmatpush1.xpose.msra.mxu0 %v2016
        %2022 = vmatprep.subr.mxu0 0.0
        %2023 = vmatpush1.xpose.msra.mxu0 0.0
        %2024 = vmatprep.subr.mxu0 0.0
        %2025 = vmatpush1.xpose.msra.mxu0 0.0
        %2026 = vmatprep.subr.mxu0 0.0
        %2027 = vmatpush1.xpose.msra.mxu0 0.0
        %2028 = vmatprep.subr.mxu0 0.0
        %2029 = vmatpush1.xpose.msra.mxu0 0.0
        %2030 = vmatprep.subr.mxu0 0.0
        %2031 = vmatpush1.xpose.msra.mxu0 0.0
        %2032 = vmatprep.subr.mxu0 0.0
        %2033 = vmatpush1.xpose.msra.mxu0 0.0
        %2034 = vmatprep.subr.mxu0 0.0
        %2035 = vmatpush1.xpose.msra.mxu0 0.0
        %2036 = vmatprep.subr.mxu0 0.0
        %2037 = vmatpush1.xpose.msra.mxu0 0.0
        %2038 = vmatprep.subr.mxu0 0.0
        %2039 = vmatpush1.xpose.msra.mxu0 0.0
        %2040 = vmatprep.subr.mxu0 0.0
        %2041 = vmatpush1.xpose.msra.mxu0 0.0
        %2042 = vmatprep.subr.mxu0 0.0
        %2043 = vmatpush1.xpose.msra.mxu0 0.0
        %2044 = vmatprep.subr.mxu0 0.0
        %2045 = vmatpush1.xpose.msra.mxu0 0.0
        %2046 = vmatprep.subr.mxu0 0.0
        %2047 = vmatpush1.xpose.msra.mxu0 0.0
        %2048 = vmatprep.subr.mxu0 0.0
        %2049 = vmatpush1.xpose.msra.mxu0 0.0
        %2050 = vmatprep.subr.mxu0 0.0
        %2051 = vmatpush1.xpose.msra.mxu0 0.0
        %2052 = vmatprep.subr.mxu0 0.0
        %2053 = vmatpush1.xpose.msra.mxu0 0.0
        %2054 = vmatprep.subr.mxu0 0.0
        %2055 = vmatpush1.xpose.msra.mxu0 0.0
        %2056 = vmatprep.subr.mxu0 0.0
        %2057 = vmatpush1.xpose.msra.mxu0 0.0
        %2058 = vmatprep.subr.mxu0 0.0
        %2059 = vmatpush1.xpose.msra.mxu0 0.0
        %2060 = vmatprep.subr.mxu0 0.0
        %2061 = vmatpush1.xpose.msra.mxu0 0.0
        %2062 = vmatprep.subr.mxu0 0.0
        %2063 = vmatpush1.xpose.msra.mxu0 0.0
        %2064 = vmatprep.subr.mxu0 0.0
        %2065 = vmatpush1.xpose.msra.mxu0 0.0
        %2066 = vmatprep.subr.mxu0 0.0
        %2067 = vmatpush1.xpose.msra.mxu0 0.0
        %2068 = vmatprep.subr.mxu0 0.0
        %2069 = vmatpush1.xpose.msra.mxu0 0.0
        %2070 = vmatprep.subr.mxu0 0.0
        %2071 = vmatpush1.xpose.msra.mxu0 0.0
        %2072 = vmatprep.subr.mxu0 0.0
        %2073 = vmatpush1.xpose.msra.mxu0 0.0
        %2074 = vmatprep.subr.mxu0 0.0
        %2075 = vmatpush1.xpose.msra.mxu0 0.0
        %2076 = vmatprep.subr.mxu0 0.0
        %2077 = vmatpush1.xpose.msra.mxu0 0.0
        %2078 = vmatprep.subr.mxu0 0.0
        %2079 = vmatpush1.xpose.msra.mxu0 0.0
        %2080 = vmatprep.subr.mxu0 0.0
        %2081 = vmatpush1.xpose.msra.mxu0 0.0
        %2082 = vmatprep.mubr.f32.mxu0 0.0
        %2083 = vmatmul.mubr.f32.gmra.mrb[0].mxu0 %v2010
        %v2084 = vpop.f32.mrb[0].mxu0
        %v2085 = vadd.f32 0.0, %v2084
        %v2086 = vpop.f32.mrb[0].mxu0
        %2087 = vdwg.mxu0
        %vm2088 = vcmask 130048
        %v2089 = vsel %vm2088, %v2085, -inf
        %2090 = vmax.xlane.f32.xlu0 %v2089
        %v2091 = vpop.xlane.xlu0 %2090
        %v2092 = vsub.f32 %v2085, %v2091
        %v2093 = vmul.f32 %v2092, 1.442695
        %v2094 = vpow.pop %v2093
        %v2095 = vsel %vm2088, %v2094, 0.0
        %2096 = vadd.xlane.f32.xlu0 %v2095
        %v2097 = vpop.xlane.xlu0 %2096
        %v2098 = vrcp.pop %v2097
        %v2099 = vmul.f32 %v2094, %v2098
        %v2101 = vsel %vm2088, %v2099, 0
        %2103 = vmatprep.subr.mxu0 0.0
        %2104 = vmatpush1.msra.mxu0 %v2001
        %2105 = vmatprep.subr.mxu0 0.0
        %2106 = vmatpush1.msra.mxu0 %v2006
        %2107 = vmatprep.subr.mxu0 0.0
        %2108 = vmatpush1.msra.mxu0 0.0
        %2109 = vmatprep.subr.mxu0 0.0
        %2110 = vmatpush1.msra.mxu0 0.0
        %2111 = vmatprep.subr.mxu0 0.0
        %2112 = vmatpush1.msra.mxu0 0.0
        %2113 = vmatprep.subr.mxu0 0.0
        %2114 = vmatpush1.msra.mxu0 0.0
        %2115 = vmatprep.subr.mxu0 0.0
        %2116 = vmatpush1.msra.mxu0 0.0
        %2117 = vmatprep.subr.mxu0 0.0
        %2118 = vmatpush1.msra.mxu0 0.0
        %2119 = vmatprep.subr.mxu0 0.0
        %2120 = vmatpush1.msra.mxu0 0.0
        %2121 = vmatprep.subr.mxu0 0.0
        %2122 = vmatpush1.msra.mxu0 0.0
        %2123 = vmatprep.subr.mxu0 0.0
        %2124 = vmatpush1.msra.mxu0 0.0
        %2125 = vmatprep.subr.mxu0 0.0
        %2126 = vmatpush1.msra.mxu0 0.0
        %2127 = vmatprep.subr.mxu0 0.0
        %2128 = vmatpush1.msra.mxu0 0.0
        %2129 = vmatprep.subr.mxu0 0.0
        %2130 = vmatpush1.msra.mxu0 0.0
        %2131 = vmatprep.subr.mxu0 0.0
        %2132 = vmatpush1.msra.mxu0 0.0
        %2133 = vmatprep.subr.mxu0 0.0
        %2134 = vmatpush1.msra.mxu0 0.0
        %2135 = vmatprep.subr.mxu0 0.0
        %2136 = vmatpush1.msra.mxu0 0.0
        %2137 = vmatprep.subr.mxu0 0.0
        %2138 = vmatpush1.msra.mxu0 0.0
        %2139 = vmatprep.subr.mxu0 0.0
        %2140 = vmatpush1.msra.mxu0 0.0
        %2141 = vmatprep.subr.mxu0 0.0
        %2142 = vmatpush1.msra.mxu0 0.0
        %2143 = vmatprep.subr.mxu0 0.0
        %2144 = vmatpush1.msra.mxu0 0.0
        %2145 = vmatprep.subr.mxu0 0.0
        %2146 = vmatpush1.msra.mxu0 0.0
        %2147 = vmatprep.subr.mxu0 0.0
        %2148 = vmatpush1.msra.mxu0 0.0
        %2149 = vmatprep.subr.mxu0 0.0
        %2150 = vmatpush1.msra.mxu0 0.0
        %2151 = vmatprep.subr.mxu0 0.0
        %2152 = vmatpush1.msra.mxu0 0.0
        %2153 = vmatprep.subr.mxu0 0.0
        %2154 = vmatpush1.msra.mxu0 0.0
        %2155 = vmatprep.subr.mxu0 0.0
        %2156 = vmatpush1.msra.mxu0 0.0
        %2157 = vmatprep.subr.mxu0 0.0
        %2158 = vmatpush1.msra.mxu0 0.0
        %2159 = vmatprep.subr.mxu0 0.0
        %2160 = vmatpush1.msra.mxu0 0.0
        %2161 = vmatprep.subr.mxu0 0.0
        %2162 = vmatpush1.msra.mxu0 0.0
        %2163 = vmatprep.subr.mxu0 0.0
        %2164 = vmatpush1.msra.mxu0 0.0
        %2165 = vmatprep.subr.mxu0 0.0
        %2166 = vmatpush1.msra.mxu0 0.0
        %2167 = vmatprep.mubr.f32.mxu0 0.0
        %2168 = vmatmul.mubr.f32.gmra.mrb[0].mxu0 %v2101
        %v2169 = vpop.f32.mrb[0].mxu0
        %v2170 = vadd.f32 0.0, %v2169
        %v2171 = vpop.f32.mrb[0].mxu0
        %2172 = vdwg.mxu0
        %2173 = vst.msk [vmem:[#allocation4] sm:$0xff] %vm950, %v2170
        %2174 = vrot.lane.b32.xlu0 %v1809, 120
        %v2175 = vpop.permute.xlu0 %2174
        %2176 = vrot.lane.b32.xlu0 %v1905, 120
        %v2177 = vpop.permute.xlu0 %2176
        %2178 = vrot.lane.b32.xlu0 %v1910, 120
        %v2179 = vpop.permute.xlu0 %2178
        %v2180 = vsel %vm950, %v2175, 0
        %v2182 = vsel %vm950, %v2177, 0
        %v2184 = vsel %vm950, %v2179, 0
        %2186 = vmatprep.subr.mxu0 0.0
        %2187 = vmatpush1.xpose.msra.mxu0 %v2182
        %2188 = vmatprep.subr.mxu0 0.0
        %2189 = vmatpush1.xpose.msra.mxu0 %v2184
        %2190 = vmatprep.subr.mxu0 0.0
        %2191 = vmatpush1.xpose.msra.mxu0 0.0
        %2192 = vmatprep.subr.mxu0 0.0
        %2193 = vmatpush1.xpose.msra.mxu0 0.0
        %2194 = vmatprep.subr.mxu0 0.0
        %2195 = vmatpush1.xpose.msra.mxu0 0.0
        %2196 = vmatprep.subr.mxu0 0.0
        %2197 = vmatpush1.xpose.msra.mxu0 0.0
        %2198 = vmatprep.subr.mxu0 0.0
        %2199 = vmatpush1.xpose.msra.mxu0 0.0
        %2200 = vmatprep.subr.mxu0 0.0
        %2201 = vmatpush1.xpose.msra.mxu0 0.0
        %2202 = vmatprep.subr.mxu0 0.0
        %2203 = vmatpush1.xpose.msra.mxu0 0.0
        %2204 = vmatprep.subr.mxu0 0.0
        %2205 = vmatpush1.xpose.msra.mxu0 0.0
        %2206 = vmatprep.subr.mxu0 0.0
        %2207 = vmatpush1.xpose.msra.mxu0 0.0
        %2208 = vmatprep.subr.mxu0 0.0
        %2209 = vmatpush1.xpose.msra.mxu0 0.0
        %2210 = vmatprep.subr.mxu0 0.0
        %2211 = vmatpush1.xpose.msra.mxu0 0.0
        %2212 = vmatprep.subr.mxu0 0.0
        %2213 = vmatpush1.xpose.msra.mxu0 0.0
        %2214 = vmatprep.subr.mxu0 0.0
        %2215 = vmatpush1.xpose.msra.mxu0 0.0
        %2216 = vmatprep.subr.mxu0 0.0
        %2217 = vmatpush1.xpose.msra.mxu0 0.0
        %2218 = vmatprep.subr.mxu0 0.0
        %2219 = vmatpush1.xpose.msra.mxu0 0.0
        %2220 = vmatprep.subr.mxu0 0.0
        %2221 = vmatpush1.xpose.msra.mxu0 0.0
        %2222 = vmatprep.subr.mxu0 0.0
        %2223 = vmatpush1.xpose.msra.mxu0 0.0
        %2224 = vmatprep.subr.mxu0 0.0
        %2225 = vmatpush1.xpose.msra.mxu0 0.0
        %2226 = vmatprep.subr.mxu0 0.0
        %2227 = vmatpush1.xpose.msra.mxu0 0.0
        %2228 = vmatprep.subr.mxu0 0.0
        %2229 = vmatpush1.xpose.msra.mxu0 0.0
        %2230 = vmatprep.subr.mxu0 0.0
        %2231 = vmatpush1.xpose.msra.mxu0 0.0
        %2232 = vmatprep.subr.mxu0 0.0
        %2233 = vmatpush1.xpose.msra.mxu0 0.0
        %2234 = vmatprep.subr.mxu0 0.0
        %2235 = vmatpush1.xpose.msra.mxu0 0.0
        %2236 = vmatprep.subr.mxu0 0.0
        %2237 = vmatpush1.xpose.msra.mxu0 0.0
        %2238 = vmatprep.subr.mxu0 0.0
        %2239 = vmatpush1.xpose.msra.mxu0 0.0
        %2240 = vmatprep.subr.mxu0 0.0
        %2241 = vmatpush1.xpose.msra.mxu0 0.0
        %2242 = vmatprep.subr.mxu0 0.0
        %2243 = vmatpush1.xpose.msra.mxu0 0.0
        %2244 = vmatprep.subr.mxu0 0.0
        %2245 = vmatpush1.xpose.msra.mxu0 0.0
        %2246 = vmatprep.subr.mxu0 0.0
        %2247 = vmatpush1.xpose.msra.mxu0 0.0
        %2248 = vmatprep.subr.mxu0 0.0
        %2249 = vmatpush1.xpose.msra.mxu0 0.0
        %2250 = vmatprep.mubr.f32.mxu0 0.0
        %2251 = vmatmul.mubr.f32.gmra.mrb[0].mxu0 %v2180
        %v2252 = vpop.f32.mrb[0].mxu0
        %v2253 = vadd.f32 0.0, %v2252
        %v2254 = vpop.f32.mrb[0].mxu0
        %2255 = vdwg.mxu0
        %v2256 = vsel %vm2088, %v2253, -inf
        %2257 = vmax.xlane.f32.xlu0 %v2256
        %v2258 = vpop.xlane.xlu0 %2257
        %v2259 = vsub.f32 %v2253, %v2258
        %v2260 = vmul.f32 %v2259, 1.442695
        %v2261 = vpow.pop %v2260
        %v2262 = vsel %vm2088, %v2261, 0.0
        %2263 = vadd.xlane.f32.xlu0 %v2262
        %v2264 = vpop.xlane.xlu0 %2263
        %v2265 = vrcp.pop %v2264
        %v2266 = vmul.f32 %v2261, %v2265
        %2269 = vrot.lane.b32.xlu0 %v2001, 120
        %v2270 = vpop.permute.xlu0 %2269
        %2271 = vrot.lane.b32.xlu0 %v2006, 120
        %v2272 = vpop.permute.xlu0 %2271
        %v2276 = vsel %vm2088, %v2266, 0
        %2278 = vmatprep.subr.mxu0 0.0
        %2279 = vmatpush1.msra.mxu0 %v2270
        %2280 = vmatprep.subr.mxu0 0.0
        %2281 = vmatpush1.msra.mxu0 %v2272
        %2282 = vmatprep.subr.mxu0 0.0
        %2283 = vmatpush1.msra.mxu0 0.0
        %2284 = vmatprep.subr.mxu0 0.0
        %2285 = vmatpush1.msra.mxu0 0.0
        %2286 = vmatprep.subr.mxu0 0.0
        %2287 = vmatpush1.msra.mxu0 0.0
        %2288 = vmatprep.subr.mxu0 0.0
        %2289 = vmatpush1.msra.mxu0 0.0
        %2290 = vmatprep.subr.mxu0 0.0
        %2291 = vmatpush1.msra.mxu0 0.0
        %2292 = vmatprep.subr.mxu0 0.0
        %2293 = vmatpush1.msra.mxu0 0.0
        %2294 = vmatprep.subr.mxu0 0.0
        %2295 = vmatpush1.msra.mxu0 0.0
        %2296 = vmatprep.subr.mxu0 0.0
        %2297 = vmatpush1.msra.mxu0 0.0
        %2298 = vmatprep.subr.mxu0 0.0
        %2299 = vmatpush1.msra.mxu0 0.0
        %2300 = vmatprep.subr.mxu0 0.0
        %2301 = vmatpush1.msra.mxu0 0.0
        %2302 = vmatprep.subr.mxu0 0.0
        %2303 = vmatpush1.msra.mxu0 0.0
        %2304 = vmatprep.subr.mxu0 0.0
        %2305 = vmatpush1.msra.mxu0 0.0
        %2306 = vmatprep.subr.mxu0 0.0
        %2307 = vmatpush1.msra.mxu0 0.0
        %2308 = vmatprep.subr.mxu0 0.0
        %2309 = vmatpush1.msra.mxu0 0.0
        %2310 = vmatprep.subr.mxu0 0.0
        %2311 = vmatpush1.msra.mxu0 0.0
        %2312 = vmatprep.subr.mxu0 0.0
        %2313 = vmatpush1.msra.mxu0 0.0
        %2314 = vmatprep.subr.mxu0 0.0
        %2315 = vmatpush1.msra.mxu0 0.0
        %2316 = vmatprep.subr.mxu0 0.0
        %2317 = vmatpush1.msra.mxu0 0.0
        %2318 = vmatprep.subr.mxu0 0.0
        %2319 = vmatpush1.msra.mxu0 0.0
        %2320 = vmatprep.subr.mxu0 0.0
        %2321 = vmatpush1.msra.mxu0 0.0
        %2322 = vmatprep.subr.mxu0 0.0
        %2323 = vmatpush1.msra.mxu0 0.0
        %2324 = vmatprep.subr.mxu0 0.0
        %2325 = vmatpush1.msra.mxu0 0.0
        %2326 = vmatprep.subr.mxu0 0.0
        %2327 = vmatpush1.msra.mxu0 0.0
        %2328 = vmatprep.subr.mxu0 0.0
        %2329 = vmatpush1.msra.mxu0 0.0
        %2330 = vmatprep.subr.mxu0 0.0
        %2331 = vmatpush1.msra.mxu0 0.0
        %2332 = vmatprep.subr.mxu0 0.0
        %2333 = vmatpush1.msra.mxu0 0.0
        %2334 = vmatprep.subr.mxu0 0.0
        %2335 = vmatpush1.msra.mxu0 0.0
        %2336 = vmatprep.subr.mxu0 0.0
        %2337 = vmatpush1.msra.mxu0 0.0
        %2338 = vmatprep.subr.mxu0 0.0
        %2339 = vmatpush1.msra.mxu0 0.0
        %2340 = vmatprep.subr.mxu0 0.0
        %2341 = vmatpush1.msra.mxu0 0.0
        %2342 = vmatprep.mubr.f32.mxu0 0.0
        %2343 = vmatmul.mubr.f32.gmra.mrb[0].mxu0 %v2276
        %v2344 = vpop.f32.mrb[0].mxu0
        %v2345 = vadd.f32 0.0, %v2344
        %v2346 = vpop.f32.mrb[0].mxu0
        %2347 = vdwg.mxu0
        %2349 = vrot.lane.b32.xlu0 %v2345, 8
        %v2350 = vpop.permute.xlu0 %2349
        %2352 = vst.msk [vmem:[#allocation4] sm:$0xff] %vm1282, %v2350
        %2353 = vrot.lane.b32.xlu0 %v1809, 112
        %v2354 = vpop.permute.xlu0 %2353
        %2355 = vrot.lane.b32.xlu0 %v1905, 112
        %v2356 = vpop.permute.xlu0 %2355
        %2357 = vrot.lane.b32.xlu0 %v1910, 112
        %v2358 = vpop.permute.xlu0 %2357
        %v2359 = vsel %vm950, %v2354, 0
        %v2361 = vsel %vm950, %v2356, 0
        %v2363 = vsel %vm950, %v2358, 0
        %2365 = vmatprep.subr.mxu0 0.0
        %2366 = vmatpush1.xpose.msra.mxu0 %v2361
        %2367 = vmatprep.subr.mxu0 0.0
        %2368 = vmatpush1.xpose.msra.mxu0 %v2363
        %2369 = vmatprep.subr.mxu0 0.0
        %2370 = vmatpush1.xpose.msra.mxu0 0.0
        %2371 = vmatprep.subr.mxu0 0.0
        %2372 = vmatpush1.xpose.msra.mxu0 0.0
        %2373 = vmatprep.subr.mxu0 0.0
        %2374 = vmatpush1.xpose.msra.mxu0 0.0
        %2375 = vmatprep.subr.mxu0 0.0
        %2376 = vmatpush1.xpose.msra.mxu0 0.0
        %2377 = vmatprep.subr.mxu0 0.0
        %2378 = vmatpush1.xpose.msra.mxu0 0.0
        %2379 = vmatprep.subr.mxu0 0.0
        %2380 = vmatpush1.xpose.msra.mxu0 0.0
        %2381 = vmatprep.subr.mxu0 0.0
        %2382 = vmatpush1.xpose.msra.mxu0 0.0
        %2383 = vmatprep.subr.mxu0 0.0
        %2384 = vmatpush1.xpose.msra.mxu0 0.0
        %2385 = vmatprep.subr.mxu0 0.0
        %2386 = vmatpush1.xpose.msra.mxu0 0.0
        %2387 = vmatprep.subr.mxu0 0.0
        %2388 = vmatpush1.xpose.msra.mxu0 0.0
        %2389 = vmatprep.subr.mxu0 0.0
        %2390 = vmatpush1.xpose.msra.mxu0 0.0
        %2391 = vmatprep.subr.mxu0 0.0
        %2392 = vmatpush1.xpose.msra.mxu0 0.0
        %2393 = vmatprep.subr.mxu0 0.0
        %2394 = vmatpush1.xpose.msra.mxu0 0.0
        %2395 = vmatprep.subr.mxu0 0.0
        %2396 = vmatpush1.xpose.msra.mxu0 0.0
        %2397 = vmatprep.subr.mxu0 0.0
        %2398 = vmatpush1.xpose.msra.mxu0 0.0
        %2399 = vmatprep.subr.mxu0 0.0
        %2400 = vmatpush1.xpose.msra.mxu0 0.0
        %2401 = vmatprep.subr.mxu0 0.0
        %2402 = vmatpush1.xpose.msra.mxu0 0.0
        %2403 = vmatprep.subr.mxu0 0.0
        %2404 = vmatpush1.xpose.msra.mxu0 0.0
        %2405 = vmatprep.subr.mxu0 0.0
        %2406 = vmatpush1.xpose.msra.mxu0 0.0
        %2407 = vmatprep.subr.mxu0 0.0
        %2408 = vmatpush1.xpose.msra.mxu0 0.0
        %2409 = vmatprep.subr.mxu0 0.0
        %2410 = vmatpush1.xpose.msra.mxu0 0.0
        %2411 = vmatprep.subr.mxu0 0.0
        %2412 = vmatpush1.xpose.msra.mxu0 0.0
        %2413 = vmatprep.subr.mxu0 0.0
        %2414 = vmatpush1.xpose.msra.mxu0 0.0
        %2415 = vmatprep.subr.mxu0 0.0
        %2416 = vmatpush1.xpose.msra.mxu0 0.0
        %2417 = vmatprep.subr.mxu0 0.0
        %2418 = vmatpush1.xpose.msra.mxu0 0.0
        %2419 = vmatprep.subr.mxu0 0.0
        %2420 = vmatpush1.xpose.msra.mxu0 0.0
        %2421 = vmatprep.subr.mxu0 0.0
        %2422 = vmatpush1.xpose.msra.mxu0 0.0
        %2423 = vmatprep.subr.mxu0 0.0
        %2424 = vmatpush1.xpose.msra.mxu0 0.0
        %2425 = vmatprep.subr.mxu0 0.0
        %2426 = vmatpush1.xpose.msra.mxu0 0.0
        %2427 = vmatprep.subr.mxu0 0.0
        %2428 = vmatpush1.xpose.msra.mxu0 0.0
        %2429 = vmatprep.mubr.f32.mxu0 0.0
        %2430 = vmatmul.mubr.f32.gmra.mrb[0].mxu0 %v2359
        %v2431 = vpop.f32.mrb[0].mxu0
        %v2432 = vadd.f32 0.0, %v2431
        %v2433 = vpop.f32.mrb[0].mxu0
        %2434 = vdwg.mxu0
        %v2435 = vsel %vm2088, %v2432, -inf
        %2436 = vmax.xlane.f32.xlu0 %v2435
        %v2437 = vpop.xlane.xlu0 %2436
        %v2438 = vsub.f32 %v2432, %v2437
        %v2439 = vmul.f32 %v2438, 1.442695
        %v2440 = vpow.pop %v2439
        %v2441 = vsel %vm2088, %v2440, 0.0
        %2442 = vadd.xlane.f32.xlu0 %v2441
        %v2443 = vpop.xlane.xlu0 %2442
        %v2444 = vrcp.pop %v2443
        %v2445 = vmul.f32 %v2440, %v2444
        %2446 = vrot.lane.b32.xlu0 %v2001, 112
        %v2447 = vpop.permute.xlu0 %2446
        %2448 = vrot.lane.b32.xlu0 %v2006, 112
        %v2449 = vpop.permute.xlu0 %2448
        %v2453 = vsel %vm2088, %v2445, 0
        %2455 = vmatprep.subr.mxu0 0.0
        %2456 = vmatpush1.msra.mxu0 %v2447
        %2457 = vmatprep.subr.mxu0 0.0
        %2458 = vmatpush1.msra.mxu0 %v2449
        %2459 = vmatprep.subr.mxu0 0.0
        %2460 = vmatpush1.msra.mxu0 0.0
        %2461 = vmatprep.subr.mxu0 0.0
        %2462 = vmatpush1.msra.mxu0 0.0
        %2463 = vmatprep.subr.mxu0 0.0
        %2464 = vmatpush1.msra.mxu0 0.0
        %2465 = vmatprep.subr.mxu0 0.0
        %2466 = vmatpush1.msra.mxu0 0.0
        %2467 = vmatprep.subr.mxu0 0.0
        %2468 = vmatpush1.msra.mxu0 0.0
        %2469 = vmatprep.subr.mxu0 0.0
        %2470 = vmatpush1.msra.mxu0 0.0
        %2471 = vmatprep.subr.mxu0 0.0
        %2472 = vmatpush1.msra.mxu0 0.0
        %2473 = vmatprep.subr.mxu0 0.0
        %2474 = vmatpush1.msra.mxu0 0.0
        %2475 = vmatprep.subr.mxu0 0.0
        %2476 = vmatpush1.msra.mxu0 0.0
        %2477 = vmatprep.subr.mxu0 0.0
        %2478 = vmatpush1.msra.mxu0 0.0
        %2479 = vmatprep.subr.mxu0 0.0
        %2480 = vmatpush1.msra.mxu0 0.0
        %2481 = vmatprep.subr.mxu0 0.0
        %2482 = vmatpush1.msra.mxu0 0.0
        %2483 = vmatprep.subr.mxu0 0.0
        %2484 = vmatpush1.msra.mxu0 0.0
        %2485 = vmatprep.subr.mxu0 0.0
        %2486 = vmatpush1.msra.mxu0 0.0
        %2487 = vmatprep.subr.mxu0 0.0
        %2488 = vmatpush1.msra.mxu0 0.0
        %2489 = vmatprep.subr.mxu0 0.0
        %2490 = vmatpush1.msra.mxu0 0.0
        %2491 = vmatprep.subr.mxu0 0.0
        %2492 = vmatpush1.msra.mxu0 0.0
        %2493 = vmatprep.subr.mxu0 0.0
        %2494 = vmatpush1.msra.mxu0 0.0
        %2495 = vmatprep.subr.mxu0 0.0
        %2496 = vmatpush1.msra.mxu0 0.0
        %2497 = vmatprep.subr.mxu0 0.0
        %2498 = vmatpush1.msra.mxu0 0.0
        %2499 = vmatprep.subr.mxu0 0.0
        %2500 = vmatpush1.msra.mxu0 0.0
        %2501 = vmatprep.subr.mxu0 0.0
        %2502 = vmatpush1.msra.mxu0 0.0
        %2503 = vmatprep.subr.mxu0 0.0
        %2504 = vmatpush1.msra.mxu0 0.0
        %2505 = vmatprep.subr.mxu0 0.0
        %2506 = vmatpush1.msra.mxu0 0.0
        %2507 = vmatprep.subr.mxu0 0.0
        %2508 = vmatpush1.msra.mxu0 0.0
        %2509 = vmatprep.subr.mxu0 0.0
        %2510 = vmatpush1.msra.mxu0 0.0
        %2511 = vmatprep.subr.mxu0 0.0
        %2512 = vmatpush1.msra.mxu0 0.0
        %2513 = vmatprep.subr.mxu0 0.0
        %2514 = vmatpush1.msra.mxu0 0.0
        %2515 = vmatprep.subr.mxu0 0.0
        %2516 = vmatpush1.msra.mxu0 0.0
        %2517 = vmatprep.subr.mxu0 0.0
        %2518 = vmatpush1.msra.mxu0 0.0
        %2519 = vmatprep.mubr.f32.mxu0 0.0
        %2520 = vmatmul.mubr.f32.gmra.mrb[0].mxu0 %v2453
        %v2521 = vpop.f32.mrb[0].mxu0
        %v2522 = vadd.f32 0.0, %v2521
        %v2523 = vpop.f32.mrb[0].mxu0
        %2524 = vdwg.mxu0
        %2526 = vrot.lane.b32.xlu0 %v2522, 16
        %v2527 = vpop.permute.xlu0 %2526
        %2529 = vst.msk [vmem:[#allocation4] sm:$0xff] %vm1453, %v2527
        %2530 = vrot.lane.b32.xlu0 %v1809, 104
        %v2531 = vpop.permute.xlu0 %2530
        %2532 = vrot.lane.b32.xlu0 %v1905, 104
        %v2533 = vpop.permute.xlu0 %2532
        %2534 = vrot.lane.b32.xlu0 %v1910, 104
        %v2535 = vpop.permute.xlu0 %2534
        %v2536 = vsel %vm950, %v2531, 0
        %v2538 = vsel %vm950, %v2533, 0
        %v2540 = vsel %vm950, %v2535, 0
        %2542 = vmatprep.subr.mxu0 0.0
        %2543 = vmatpush1.xpose.msra.mxu0 %v2538
        %2544 = vmatprep.subr.mxu0 0.0
        %2545 = vmatpush1.xpose.msra.mxu0 %v2540
        %2546 = vmatprep.subr.mxu0 0.0
        %2547 = vmatpush1.xpose.msra.mxu0 0.0
        %2548 = vmatprep.subr.mxu0 0.0
        %2549 = vmatpush1.xpose.msra.mxu0 0.0
        %2550 = vmatprep.subr.mxu0 0.0
        %2551 = vmatpush1.xpose.msra.mxu0 0.0
        %2552 = vmatprep.subr.mxu0 0.0
        %2553 = vmatpush1.xpose.msra.mxu0 0.0
        %2554 = vmatprep.subr.mxu0 0.0
        %2555 = vmatpush1.xpose.msra.mxu0 0.0
        %2556 = vmatprep.subr.mxu0 0.0
        %2557 = vmatpush1.xpose.msra.mxu0 0.0
        %2558 = vmatprep.subr.mxu0 0.0
        %2559 = vmatpush1.xpose.msra.mxu0 0.0
        %2560 = vmatprep.subr.mxu0 0.0
        %2561 = vmatpush1.xpose.msra.mxu0 0.0
        %2562 = vmatprep.subr.mxu0 0.0
        %2563 = vmatpush1.xpose.msra.mxu0 0.0
        %2564 = vmatprep.subr.mxu0 0.0
        %2565 = vmatpush1.xpose.msra.mxu0 0.0
        %2566 = vmatprep.subr.mxu0 0.0
        %2567 = vmatpush1.xpose.msra.mxu0 0.0
        %2568 = vmatprep.subr.mxu0 0.0
        %2569 = vmatpush1.xpose.msra.mxu0 0.0
        %2570 = vmatprep.subr.mxu0 0.0
        %2571 = vmatpush1.xpose.msra.mxu0 0.0
        %2572 = vmatprep.subr.mxu0 0.0
        %2573 = vmatpush1.xpose.msra.mxu0 0.0
        %2574 = vmatprep.subr.mxu0 0.0
        %2575 = vmatpush1.xpose.msra.mxu0 0.0
        %2576 = vmatprep.subr.mxu0 0.0
        %2577 = vmatpush1.xpose.msra.mxu0 0.0
        %2578 = vmatprep.subr.mxu0 0.0
        %2579 = vmatpush1.xpose.msra.mxu0 0.0
        %2580 = vmatprep.subr.mxu0 0.0
        %2581 = vmatpush1.xpose.msra.mxu0 0.0
        %2582 = vmatprep.subr.mxu0 0.0
        %2583 = vmatpush1.xpose.msra.mxu0 0.0
        %2584 = vmatprep.subr.mxu0 0.0
        %2585 = vmatpush1.xpose.msra.mxu0 0.0
        %2586 = vmatprep.subr.mxu0 0.0
        %2587 = vmatpush1.xpose.msra.mxu0 0.0
        %2588 = vmatprep.subr.mxu0 0.0
        %2589 = vmatpush1.xpose.msra.mxu0 0.0
        %2590 = vmatprep.subr.mxu0 0.0
        %2591 = vmatpush1.xpose.msra.mxu0 0.0
        %2592 = vmatprep.subr.mxu0 0.0
        %2593 = vmatpush1.xpose.msra.mxu0 0.0
        %2594 = vmatprep.subr.mxu0 0.0
        %2595 = vmatpush1.xpose.msra.mxu0 0.0
        %2596 = vmatprep.subr.mxu0 0.0
        %2597 = vmatpush1.xpose.msra.mxu0 0.0
        %2598 = vmatprep.subr.mxu0 0.0
        %2599 = vmatpush1.xpose.msra.mxu0 0.0
        %2600 = vmatprep.subr.mxu0 0.0
        %2601 = vmatpush1.xpose.msra.mxu0 0.0
        %2602 = vmatprep.subr.mxu0 0.0
        %2603 = vmatpush1.xpose.msra.mxu0 0.0
        %2604 = vmatprep.subr.mxu0 0.0
        %2605 = vmatpush1.xpose.msra.mxu0 0.0
        %2606 = vmatprep.mubr.f32.mxu0 0.0
        %2607 = vmatmul.mubr.f32.gmra.mrb[0].mxu0 %v2536
        %v2608 = vpop.f32.mrb[0].mxu0
        %v2609 = vadd.f32 0.0, %v2608
        %v2610 = vpop.f32.mrb[0].mxu0
        %2611 = vdwg.mxu0
        %v2612 = vsel %vm2088, %v2609, -inf
        %2613 = vmax.xlane.f32.xlu0 %v2612
        %v2614 = vpop.xlane.xlu0 %2613
        %v2615 = vsub.f32 %v2609, %v2614
        %v2616 = vmul.f32 %v2615, 1.442695
        %v2617 = vpow.pop %v2616
        %v2618 = vsel %vm2088, %v2617, 0.0
        %2619 = vadd.xlane.f32.xlu0 %v2618
        %v2620 = vpop.xlane.xlu0 %2619
        %v2621 = vrcp.pop %v2620
        %v2622 = vmul.f32 %v2617, %v2621
        %2623 = vrot.lane.b32.xlu0 %v2001, 104
        %v2624 = vpop.permute.xlu0 %2623
        %2625 = vrot.lane.b32.xlu0 %v2006, 104
        %v2626 = vpop.permute.xlu0 %2625
        %v2630 = vsel %vm2088, %v2622, 0
        %2632 = vmatprep.subr.mxu0 0.0
        %2633 = vmatpush1.msra.mxu0 %v2624
        %2634 = vmatprep.subr.mxu0 0.0
        %2635 = vmatpush1.msra.mxu0 %v2626
        %2636 = vmatprep.subr.mxu0 0.0
        %2637 = vmatpush1.msra.mxu0 0.0
        %2638 = vmatprep.subr.mxu0 0.0
        %2639 = vmatpush1.msra.mxu0 0.0
        %2640 = vmatprep.subr.mxu0 0.0
        %2641 = vmatpush1.msra.mxu0 0.0
        %2642 = vmatprep.subr.mxu0 0.0
        %2643 = vmatpush1.msra.mxu0 0.0
        %2644 = vmatprep.subr.mxu0 0.0
        %2645 = vmatpush1.msra.mxu0 0.0
        %2646 = vmatprep.subr.mxu0 0.0
        %2647 = vmatpush1.msra.mxu0 0.0
        %2648 = vmatprep.subr.mxu0 0.0
        %2649 = vmatpush1.msra.mxu0 0.0
        %2650 = vmatprep.subr.mxu0 0.0
        %2651 = vmatpush1.msra.mxu0 0.0
        %2652 = vmatprep.subr.mxu0 0.0
        %2653 = vmatpush1.msra.mxu0 0.0
        %2654 = vmatprep.subr.mxu0 0.0
        %2655 = vmatpush1.msra.mxu0 0.0
        %2656 = vmatprep.subr.mxu0 0.0
        %2657 = vmatpush1.msra.mxu0 0.0
        %2658 = vmatprep.subr.mxu0 0.0
        %2659 = vmatpush1.msra.mxu0 0.0
        %2660 = vmatprep.subr.mxu0 0.0
        %2661 = vmatpush1.msra.mxu0 0.0
        %2662 = vmatprep.subr.mxu0 0.0
        %2663 = vmatpush1.msra.mxu0 0.0
        %2664 = vmatprep.subr.mxu0 0.0
        %2665 = vmatpush1.msra.mxu0 0.0
        %2666 = vmatprep.subr.mxu0 0.0
        %2667 = vmatpush1.msra.mxu0 0.0
        %2668 = vmatprep.subr.mxu0 0.0
        %2669 = vmatpush1.msra.mxu0 0.0
        %2670 = vmatprep.subr.mxu0 0.0
        %2671 = vmatpush1.msra.mxu0 0.0
        %2672 = vmatprep.subr.mxu0 0.0
        %2673 = vmatpush1.msra.mxu0 0.0
        %2674 = vmatprep.subr.mxu0 0.0
        %2675 = vmatpush1.msra.mxu0 0.0
        %2676 = vmatprep.subr.mxu0 0.0
        %2677 = vmatpush1.msra.mxu0 0.0
        %2678 = vmatprep.subr.mxu0 0.0
        %2679 = vmatpush1.msra.mxu0 0.0
        %2680 = vmatprep.subr.mxu0 0.0
        %2681 = vmatpush1.msra.mxu0 0.0
        %2682 = vmatprep.subr.mxu0 0.0
        %2683 = vmatpush1.msra.mxu0 0.0
        %2684 = vmatprep.subr.mxu0 0.0
        %2685 = vmatpush1.msra.mxu0 0.0
        %2686 = vmatprep.subr.mxu0 0.0
        %2687 = vmatpush1.msra.mxu0 0.0
        %2688 = vmatprep.subr.mxu0 0.0
        %2689 = vmatpush1.msra.mxu0 0.0
        %2690 = vmatprep.subr.mxu0 0.0
        %2691 = vmatpush1.msra.mxu0 0.0
        %2692 = vmatprep.subr.mxu0 0.0
        %2693 = vmatpush1.msra.mxu0 0.0
        %2694 = vmatprep.subr.mxu0 0.0
        %2695 = vmatpush1.msra.mxu0 0.0
        %2696 = vmatprep.mubr.f32.mxu0 0.0
        %2697 = vmatmul.mubr.f32.gmra.mrb[0].mxu0 %v2630
        %v2698 = vpop.f32.mrb[0].mxu0
        %v2699 = vadd.f32 0.0, %v2698
        %v2700 = vpop.f32.mrb[0].mxu0
        %2701 = vdwg.mxu0
        %2703 = vrot.lane.b32.xlu0 %v2699, 24
        %v2704 = vpop.permute.xlu0 %2703
        %2706 = vst.msk [vmem:[#allocation4] sm:$0xff] %vm1624, %v2704
        %v2707 = vld [vmem:[#allocation4] sm:$0xff]
        %v2708 = vlaneseq
        %v2709 = vshrl.u32 %v2708, 7
        %v2710 = vsub.s32 1, %v2709
        %v2711 = vrot.slane %v691, %v2710
        %v2713 = vsel %vm698, %v2707, 0
        %2715 = vmatprep.subr.mxu0 0.0
        %2716 = vmatpush1.msra.mxu0 %v687
        %2717 = vmatprep.subr.mxu0 0.0
        %2718 = vmatpush1.msra.mxu0 %v688
        %2719 = vmatprep.subr.mxu0 0.0
        %2720 = vmatpush1.msra.mxu0 %v689
        %2721 = vmatprep.subr.mxu0 0.0
        %2722 = vmatpush1.msra.mxu0 %v690
        %2723 = vmatprep.subr.mxu0 0.0
        %2724 = vmatpush1.msra.mxu0 0.0
        %2725 = vmatprep.subr.mxu0 0.0
        %2726 = vmatpush1.msra.mxu0 0.0
        %2727 = vmatprep.subr.mxu0 0.0
        %2728 = vmatpush1.msra.mxu0 0.0
        %2729 = vmatprep.subr.mxu0 0.0
        %2730 = vmatpush1.msra.mxu0 0.0
        %2731 = vmatprep.subr.mxu0 0.0
        %2732 = vmatpush1.msra.mxu0 0.0
        %2733 = vmatprep.subr.mxu0 0.0
        %2734 = vmatpush1.msra.mxu0 0.0
        %2735 = vmatprep.subr.mxu0 0.0
        %2736 = vmatpush1.msra.mxu0 0.0
        %2737 = vmatprep.subr.mxu0 0.0
        %2738 = vmatpush1.msra.mxu0 0.0
        %2739 = vmatprep.subr.mxu0 0.0
        %2740 = vmatpush1.msra.mxu0 0.0
        %2741 = vmatprep.subr.mxu0 0.0
        %2742 = vmatpush1.msra.mxu0 0.0
        %2743 = vmatprep.subr.mxu0 0.0
        %2744 = vmatpush1.msra.mxu0 0.0
        %2745 = vmatprep.subr.mxu0 0.0
        %2746 = vmatpush1.msra.mxu0 0.0
        %2747 = vmatprep.subr.mxu0 0.0
        %2748 = vmatpush1.msra.mxu0 0.0
        %2749 = vmatprep.subr.mxu0 0.0
        %2750 = vmatpush1.msra.mxu0 0.0
        %2751 = vmatprep.subr.mxu0 0.0
        %2752 = vmatpush1.msra.mxu0 0.0
        %2753 = vmatprep.subr.mxu0 0.0
        %2754 = vmatpush1.msra.mxu0 0.0
        %2755 = vmatprep.subr.mxu0 0.0
        %2756 = vmatpush1.msra.mxu0 0.0
        %2757 = vmatprep.subr.mxu0 0.0
        %2758 = vmatpush1.msra.mxu0 0.0
        %2759 = vmatprep.subr.mxu0 0.0
        %2760 = vmatpush1.msra.mxu0 0.0
        %2761 = vmatprep.subr.mxu0 0.0
        %2762 = vmatpush1.msra.mxu0 0.0
        %2763 = vmatprep.subr.mxu0 0.0
        %2764 = vmatpush1.msra.mxu0 0.0
        %2765 = vmatprep.subr.mxu0 0.0
        %2766 = vmatpush1.msra.mxu0 0.0
        %2767 = vmatprep.subr.mxu0 0.0
        %2768 = vmatpush1.msra.mxu0 0.0
        %2769 = vmatprep.subr.mxu0 0.0
        %2770 = vmatpush1.msra.mxu0 0.0
        %2771 = vmatprep.subr.mxu0 0.0
        %2772 = vmatpush1.msra.mxu0 0.0
        %2773 = vmatprep.subr.mxu0 0.0
        %2774 = vmatpush1.msra.mxu0 0.0
        %2775 = vmatprep.subr.mxu0 0.0
        %2776 = vmatpush1.msra.mxu0 0.0
        %2777 = vmatprep.subr.mxu0 0.0
        %2778 = vmatpush1.msra.mxu0 0.0
        %2779 = vmatprep.mubr.f32.mxu0 0.0
        %2780 = vmatmul.mubr.f32.gmra.mrb[0].mxu0 %v2713
        %v2781 = vpop.f32.mrb[0].mxu0
        %v2782 = vadd.f32 %v2711, %v2781
        %v2783 = vpop.f32.mrb[0].mxu0
        %2784 = vdwg.mxu0
        %v2785 = vadd.f32 %v1728, %v2782
        %v2786 = vsel %vm698, %v2785, 0.0
        %2787 = vadd.xlane.f32.xlu0 %v2786
        %v2788 = vpop.xlane.xlu0 %2787
        %v2789 = vmul.f32 %v2788, %v1708
        %v2790 = vsub.f32 %v2785, %v2789
        %v2791 = vmul.f32 %v2790, %v2790
        %v2792 = vsel %vm698, %v2791, 0.0
        %2793 = vadd.xlane.f32.xlu0 %v2792
        %v2794 = vpop.xlane.xlu0 %2793
        %v2795 = vmul.f32 %v2794, %v1708
        %v2796 = vadd.f32 %v2795, 1e-05
        %v2797 = vrsqrt.pop %v2796
        %v2798 = vmul.f32 %v2790, %v2797
        %v2799 = vlaneseq
        %v2800 = vshrl.u32 %v2799, 7
        %v2801 = vsub.s32 2, %v2800
        %v2802 = vrot.slane %v692, %v2801
        %v2803 = vmul.f32 %v2798, %v2802
        %v2804 = vlaneseq
        %v2805 = vshrl.u32 %v2804, 7
        %v2806 = vsub.s32 3, %v2805
        %v2807 = vrot.slane %v692, %v2806
        %v2808 = vadd.f32 %v2803, %v2807
        %v2809 = vld [vmem:[%s637] sm:$0xff]
        %v2810 = vld [vmem:[%s637 + $0x8] sm:$0xff]
        %v2811 = vld [vmem:[%s637 + $0x10] sm:$0xff]
        %v2812 = vld [vmem:[%s637 + $0x18] sm:$0xff]
        %v2813 = vld [vmem:[%s640] sm:$0x1]
        %v2815 = vlaneseq
        %v2816 = vshrl.u32 %v2815, 7
        %v2817 = vsub.s32 0, %v2816
        %v2818 = vrot.slane %v2813, %v2817
        %v2821 = vsel %vm698, %v2808, 0
        %2823 = vmatprep.subr.mxu0 0.0
        %2824 = vmatpush1.msra.mxu0 %v2809
        %2825 = vmatprep.subr.mxu0 0.0
        %2826 = vmatpush1.msra.mxu0 %v2810
        %2827 = vmatprep.subr.mxu0 0.0
        %2828 = vmatpush1.msra.mxu0 %v2811
        %2829 = vmatprep.subr.mxu0 0.0
        %2830 = vmatpush1.msra.mxu0 %v2812
        %2831 = vmatprep.subr.mxu0 0.0
        %2832 = vmatpush1.msra.mxu0 0.0
        %2833 = vmatprep.subr.mxu0 0.0
        %2834 = vmatpush1.msra.mxu0 0.0
        %2835 = vmatprep.subr.mxu0 0.0
        %2836 = vmatpush1.msra.mxu0 0.0
        %2837 = vmatprep.subr.mxu0 0.0
        %2838 = vmatpush1.msra.mxu0 0.0
        %2839 = vmatprep.subr.mxu0 0.0
        %2840 = vmatpush1.msra.mxu0 0.0
        %2841 = vmatprep.subr.mxu0 0.0
        %2842 = vmatpush1.msra.mxu0 0.0
        %2843 = vmatprep.subr.mxu0 0.0
        %2844 = vmatpush1.msra.mxu0 0.0
        %2845 = vmatprep.subr.mxu0 0.0
        %2846 = vmatpush1.msra.mxu0 0.0
        %2847 = vmatprep.subr.mxu0 0.0
        %2848 = vmatpush1.msra.mxu0 0.0
        %2849 = vmatprep.subr.mxu0 0.0
        %2850 = vmatpush1.msra.mxu0 0.0
        %2851 = vmatprep.subr.mxu0 0.0
        %2852 = vmatpush1.msra.mxu0 0.0
        %2853 = vmatprep.subr.mxu0 0.0
        %2854 = vmatpush1.msra.mxu0 0.0
        %2855 = vmatprep.subr.mxu0 0.0
        %2856 = vmatpush1.msra.mxu0 0.0
        %2857 = vmatprep.subr.mxu0 0.0
        %2858 = vmatpush1.msra.mxu0 0.0
        %2859 = vmatprep.subr.mxu0 0.0
        %2860 = vmatpush1.msra.mxu0 0.0
        %2861 = vmatprep.subr.mxu0 0.0
        %2862 = vmatpush1.msra.mxu0 0.0
        %2863 = vmatprep.subr.mxu0 0.0
        %2864 = vmatpush1.msra.mxu0 0.0
        %2865 = vmatprep.subr.mxu0 0.0
        %2866 = vmatpush1.msra.mxu0 0.0
        %2867 = vmatprep.subr.mxu0 0.0
        %2868 = vmatpush1.msra.mxu0 0.0
        %2869 = vmatprep.subr.mxu0 0.0
        %2870 = vmatpush1.msra.mxu0 0.0
        %2871 = vmatprep.subr.mxu0 0.0
        %2872 = vmatpush1.msra.mxu0 0.0
        %2873 = vmatprep.subr.mxu0 0.0
        %2874 = vmatpush1.msra.mxu0 0.0
        %2875 = vmatprep.subr.mxu0 0.0
        %2876 = vmatpush1.msra.mxu0 0.0
        %2877 = vmatprep.subr.mxu0 0.0
        %2878 = vmatpush1.msra.mxu0 0.0
        %2879 = vmatprep.subr.mxu0 0.0
        %2880 = vmatpush1.msra.mxu0 0.0
        %2881 = vmatprep.subr.mxu0 0.0
        %2882 = vmatpush1.msra.mxu0 0.0
        %2883 = vmatprep.subr.mxu0 0.0
        %2884 = vmatpush1.msra.mxu0 0.0
        %2885 = vmatprep.subr.mxu0 0.0
        %2886 = vmatpush1.msra.mxu0 0.0
        %2887 = vmatprep.mubr.f32.mxu0 0.0
        %2888 = vmatmul.mubr.f32.gmra.mrb[0].mxu0 %v2821
        %v2889 = vpop.f32.mrb[0].mxu0
        %v2890 = vadd.f32 %v2818, %v2889
        %v2891 = vpop.f32.mrb[0].mxu0
        %2892 = vdwg.mxu0
        %v2893 = vmax.f32 %v2890, 0.0
        %v2894 = vld [vmem:[%s645] sm:$0xff]
        %v2895 = vld [vmem:[%s645 + $0x8] sm:$0xff]
        %v2896 = vld [vmem:[%s645 + $0x10] sm:$0xff]
        %v2897 = vld [vmem:[%s645 + $0x18] sm:$0xff]
        %v2898 = vld [vmem:[%s645 + $0x20] sm:$0xff]
        %v2899 = vld [vmem:[%s645 + $0x28] sm:$0xff]
        %v2900 = vld [vmem:[%s645 + $0x30] sm:$0xff]
        %v2901 = vld [vmem:[%s645 + $0x38] sm:$0xff]
        %v2902 = vld [vmem:[%s648] sm:$0x1]
        %v2904 = vlaneseq
        %v2905 = vshrl.u32 %v2904, 7
        %v2906 = vsub.s32 0, %v2905
        %v2907 = vrot.slane %v2902, %v2906
        %vm2909 = vcmask 523264
        %v2911 = vsel %vm2909, %v2893, 0
        %2913 = vmatprep.subr.mxu0 0.0
        %2914 = vmatpush1.msra.mxu0 %v2894
        %2915 = vmatprep.subr.mxu0 0.0
        %2916 = vmatpush1.msra.mxu0 %v2895
        %2917 = vmatprep.subr.mxu0 0.0
        %2918 = vmatpush1.msra.mxu0 %v2896
        %2919 = vmatprep.subr.mxu0 0.0
        %2920 = vmatpush1.msra.mxu0 %v2897
        %2921 = vmatprep.subr.mxu0 0.0
        %2922 = vmatpush1.msra.mxu0 %v2898
        %2923 = vmatprep.subr.mxu0 0.0
        %2924 = vmatpush1.msra.mxu0 %v2899
        %2925 = vmatprep.subr.mxu0 0.0
        %2926 = vmatpush1.msra.mxu0 %v2900
        %2927 = vmatprep.subr.mxu0 0.0
        %2928 = vmatpush1.msra.mxu0 %v2901
        %2929 = vmatprep.subr.mxu0 0.0
        %2930 = vmatpush1.msra.mxu0 0.0
        %2931 = vmatprep.subr.mxu0 0.0
        %2932 = vmatpush1.msra.mxu0 0.0
        %2933 = vmatprep.subr.mxu0 0.0
        %2934 = vmatpush1.msra.mxu0 0.0
        %2935 = vmatprep.subr.mxu0 0.0
        %2936 = vmatpush1.msra.mxu0 0.0
        %2937 = vmatprep.subr.mxu0 0.0
        %2938 = vmatpush1.msra.mxu0 0.0
        %2939 = vmatprep.subr.mxu0 0.0
        %2940 = vmatpush1.msra.mxu0 0.0
        %2941 = vmatprep.subr.mxu0 0.0
        %2942 = vmatpush1.msra.mxu0 0.0
        %2943 = vmatprep.subr.mxu0 0.0
        %2944 = vmatpush1.msra.mxu0 0.0
        %2945 = vmatprep.subr.mxu0 0.0
        %2946 = vmatpush1.msra.mxu0 0.0
        %2947 = vmatprep.subr.mxu0 0.0
        %2948 = vmatpush1.msra.mxu0 0.0
        %2949 = vmatprep.subr.mxu0 0.0
        %2950 = vmatpush1.msra.mxu0 0.0
        %2951 = vmatprep.subr.mxu0 0.0
        %2952 = vmatpush1.msra.mxu0 0.0
        %2953 = vmatprep.subr.mxu0 0.0
        %2954 = vmatpush1.msra.mxu0 0.0
        %2955 = vmatprep.subr.mxu0 0.0
        %2956 = vmatpush1.msra.mxu0 0.0
        %2957 = vmatprep.subr.mxu0 0.0
        %2958 = vmatpush1.msra.mxu0 0.0
        %2959 = vmatprep.subr.mxu0 0.0
        %2960 = vmatpush1.msra.mxu0 0.0
        %2961 = vmatprep.subr.mxu0 0.0
        %2962 = vmatpush1.msra.mxu0 0.0
        %2963 = vmatprep.subr.mxu0 0.0
        %2964 = vmatpush1.msra.mxu0 0.0
        %2965 = vmatprep.subr.mxu0 0.0
        %2966 = vmatpush1.msra.mxu0 0.0
        %2967 = vmatprep.subr.mxu0 0.0
        %2968 = vmatpush1.msra.mxu0 0.0
        %2969 = vmatprep.subr.mxu0 0.0
        %2970 = vmatpush1.msra.mxu0 0.0
        %2971 = vmatprep.subr.mxu0 0.0
        %2972 = vmatpush1.msra.mxu0 0.0
        %2973 = vmatprep.subr.mxu0 0.0
        %2974 = vmatpush1.msra.mxu0 0.0
        %2975 = vmatprep.subr.mxu0 0.0
        %2976 = vmatpush1.msra.mxu0 0.0
        %2977 = vmatprep.mubr.f32.mxu0 0.0
        %2978 = vmatmul.mubr.f32.gmra.mrb[0].mxu0 %v2911
        %v2979 = vpop.f32.mrb[0].mxu0
        %v2980 = vadd.f32 %v2907, %v2979
        %v2981 = vpop.f32.mrb[0].mxu0
        %2982 = vdwg.mxu0
        %v2983 = vadd.f32 %v2808, %v2980
        %v2984 = vsel %vm698, %v2983, 0.0
        %2985 = vadd.xlane.f32.xlu0 %v2984
        %v2986 = vpop.xlane.xlu0 %2985
        %v2987 = vmul.f32 %v2986, %v1708
        %v2988 = vsub.f32 %v2983, %v2987
        %v2989 = vmul.f32 %v2988, %v2988
        %v2990 = vsel %vm698, %v2989, 0.0
        %2991 = vadd.xlane.f32.xlu0 %v2990
        %v2992 = vpop.xlane.xlu0 %2991
        %v2993 = vmul.f32 %v2992, %v1708
        %v2994 = vadd.f32 %v2993, 1e-05
        %v2995 = vrsqrt.pop %v2994
        %v2996 = vmul.f32 %v2988, %v2995
        %v2997 = vlaneseq
        %v2998 = vshrl.u32 %v2997, 7
        %v2999 = vsub.s32 4, %v2998
        %v3000 = vrot.slane %v692, %v2999
        %v3001 = vmul.f32 %v2996, %v3000
        %v3002 = vlaneseq
        %v3003 = vshrl.u32 %v3002, 7
        %v3004 = vsub.s32 5, %v3003
        %v3005 = vrot.slane %v692, %v3004
        %v3006 = vadd.f32 %v3001, %v3005
        %3007 = vst.msk [vmem:[#allocation2] sm:$0xff] %vm698, %v3006
        %v3008 = vld [vmem:[%s12] sm:$0x3]
        %v3009 = vsel %vm698, %v3006, 0.0
        %3010 = vadd.xlane.f32.xlu0 %v3009
        %v3011 = vpop.xlane.xlu0 %3010
        %v3012 = vmul.f32 %v3011, %v1708
        %v3013 = vsub.f32 %v3006, %v3012
        %v3014 = vmul.f32 %v3013, %v3013
        %v3015 = vsel %vm698, %v3014, 0.0
        %3016 = vadd.xlane.f32.xlu0 %v3015
        %v3017 = vpop.xlane.xlu0 %3016
        %v3018 = vmul.f32 %v3017, %v1708
        %v3019 = vadd.f32 %v3018, 1e-05
        %v3020 = vrsqrt.pop %v3019
        %v3021 = vmul.f32 %v3013, %v3020
        %v3022 = vlaneseq
        %v3023 = vshrl.u32 %v3022, 7
        %v3024 = vsub.s32 0, %v3023
        %v3025 = vrot.slane %v3008, %v3024
        %v3026 = vmul.f32 %v3021, %v3025
        %v3027 = vlaneseq
        %v3028 = vshrl.u32 %v3027, 7
        %v3029 = vsub.s32 1, %v3028
        %v3030 = vrot.slane %v3008, %v3029
        %v3031 = vadd.f32 %v3026, %v3030
        %3032 = vst.msk [vmem:[%s598] sm:$0xff] %vm698, %v3031
        %s3033 = sand.u32 %s382, 1
        %s3034 = scalar_lea.sflag [#allocation6], %s3033
        %s3035 = sand.u32 %s382, 1
        %s3036 = smul.addr %s3035, 8
        %s3037 = scalar_lea.vmem [#allocation5], %s3036
        // Predicated region
        $region77: #{tpu_custom_call.1} parent=71 // pred_check
          %p3038 = pneg %p392
        $region78: #{tpu_custom_call.1} parent=71 // pred_check_branch
          %3040 = sbr.rel (%p3038) target = $region80
        $region79: #{tpu_custom_call.1} parent=71 // pred_region
          %s3042 = ssub.s32 128, 128
          %3043 = vsyncadd %s3034, %s3042
          %s3044 = smul.addr %s32, 2
          %s3045 = sadd.s32 %s31, %s3044
          %s3046 = smul.addr %s3045, 128
          %s3047 = scalar_lea.hbm %s13, %s3046
          %s3049 = sshll.u32 %s3037, 4
          %s3050 = int_to_ptr.vmem [resolvable:$true] %s3049
          %3052 = dma.vmem_to_hbm [thread:$0]  %s3050, 128, %s3047, %s3034
        $region80: #{tpu_custom_call.1} parent=71 // pred_fallthru
          _
      $region72: #{tpu_custom_call.1} parent=5 // pred_fallthru
        _
      %p3053 = scmp.le.s32.totalorder 2, %s22
      // Predicated region
      $region81: #{tpu_custom_call.1} parent=5 // pred_check
        %p3054 = pneg %p3053
      $region82: #{tpu_custom_call.1} parent=5 // pred_check_branch
        %3056 = sbr.rel (%p3054) target = $region84
      $region83: #{tpu_custom_call.1} parent=5 // pred_region
        %s3057 = ssub.s32 %s22, 2
        // Predicated region
        $region85: #{tpu_custom_call.1} parent=83 // pred_check
          %p3058 = pneg %p398
        $region86: #{tpu_custom_call.1} parent=83 // pred_check_branch
          %3060 = sbr.rel (%p3058) target = $region88
        $region87: #{tpu_custom_call.1} parent=83 // pred_region
          %s3061 = sand.u32 %s383, 1
          %s3062 = scalar_lea.sflag [#allocation6], %s3061
          %s3063 = sand.u32 %s383, 1
          %s3064 = smul.addr %s3063, 8
          %s3065 = scalar_lea.vmem [#allocation5], %s3064
          %3066 = dma.done %s3062, 128
        $region88: #{tpu_custom_call.1} parent=83 // pred_fallthru
          _
      $region84: #{tpu_custom_call.1} parent=5 // pred_fallthru
        _
    $region6: #{tpu_custom_call.1} parent=1 // loop_footer
      %s26 = sadd.s32 1, %s22
    $region7: #{tpu_custom_call.1} parent=1 // loop_footer_branch
      %21 = sbr.rel target = $region3
    $region8: #{tpu_custom_call.1} parent=1 // loop_exit
      _
    %3067 = vsyncpa [#allocation6], 1
    %s3068 = scalar_lea.sflag [#allocation6], 1
    %3069 = vsyncpa %s3068, 1

</llo_original>
